<compile_context>
chip_gen: v6e
topology: v6e:2x2x1
jax: 0.10.0
libtpu: 0.0.40
codegen_flags: <defaults>
</compile_context>

<pallas_src>
import jax
import jax.numpy as jnp
from jax import lax
from jax.experimental import pallas as pl
from jax.experimental.pallas import tpu as pltpu


def _round_up(n, m):
    return ((n + m - 1) // m) * m


def _pad_to(a, shape):
    pads = [(0, s - d) for d, s in zip(a.shape, shape)]
    if all(p == (0, 0) for p in pads):
        return a
    return jnp.pad(a, pads)


def _num_tensorcores():
    """Best-effort TensorCore count (for batch-grid sizing). Defaults to 1."""
    try:
        info = pltpu.get_tpu_info()
        for attr in ("num_cores", "core_count", "num_tensorcores"):
            v = getattr(info, attr, None)
            if isinstance(v, int) and v > 0:
                return v
    except Exception:
        pass
    try:
        kind = jax.devices()[0].device_kind.lower()
    except Exception:
        return 1
    return 2 if any(s in kind for s in ("v4", "v5p", "v7")) else 1


def _contract_multiple(dim):
    """256-wide contraction tiles on v6e/v7x for realistic sizes, else 128."""
    if dim < 192:
        return 128
    try:
        kind = jax.devices()[0].device_kind.lower()
    except Exception:
        kind = ""
    return 256 if ("v6" in kind or "v7" in kind) else 128


def _vmem_capacity_bytes():
    try:
        return int(pltpu.get_tpu_info().vmem_capacity_bytes)
    except Exception:
        return 64 * 1024 * 1024


def _time_chunks(T, bb, H_p, target_bytes=2 * 1024 * 1024):
    """Static T-chunks so the transient projection value stays ~target_bytes."""
    per_t = 4 * bb * H_p
    tc = max(1, min(T, target_bytes // max(per_t, 1)))
    starts, lens, t = [], [], 0
    while t < T:
        clen = min(tc, T - t)
        starts.append(t)
        lens.append(clen)
        t += clen
    return tuple(starts), tuple(lens)


def _make_rnn_kernel(num_layers, T, Bblk, H, Din, C, chunk_starts, chunk_lens):
    """Kernel closure for static (layer count, padded shapes, T chunking).

    refs = [x,  (w_ih_t, w_hh_t, bias) * num_layers,  w_fc_t, b_fc,
            out,  buf_scratch, h_scratch]
    Weights arrive pre-transposed and in bf16; bias = b_ih + b_hh (f32, (1,H)).
    buf_scratch (T, Bblk, H) f32 holds the hoisted projection and is
    overwritten in place with the layer's hidden sequence.
    """
    n_chunks = len(chunk_starts)
    bf16 = jnp.bfloat16

    def kernel(*refs):
        x_ref = refs[0]
        idx = 1
        layer_refs = []
        for _ in range(num_layers):
            layer_refs.append(refs[idx:idx + 3])
            idx += 3
        w_fc_ref = refs[idx]        # (H, C)   bf16, pre-transposed
        b_fc_ref = refs[idx + 1]    # (1, C)   f32
        out_ref = refs[idx + 2]     # (Bblk, C) f32
        buf_ref = refs[idx + 3]     # (T, Bblk, H) f32: proj -> hidden seq
        h_ref = refs[idx + 4]       # (Bblk, H) f32 running hidden state

        for l in range(num_layers):
            w_ih_ref, w_hh_ref, b_ref = layer_refs[l]
            last_layer = (l == num_layers - 1)

            def project(c, l=l, w_ih_ref=w_ih_ref, b_ref=b_ref):
                """Hoisted, non-recurrent projection for one T-chunk.

                In-place safe: output row (t, b) depends only on input row
                (t, b) of the same chunk (full read happens before the store).
                """
                t0, clen = chunk_starts[c], chunk_lens[c]
                if l == 0:
                    inp = x_ref[pl.ds(t0, clen)].reshape(clen * Bblk, Din)
                else:
                    inp = buf_ref[pl.ds(t0, clen)].reshape(clen * Bblk, H)
                proj = jnp.dot(inp.astype(bf16), w_ih_ref[...],
                               preferred_element_type=jnp.float32) + b_ref[...]
                buf_ref[pl.ds(t0, clen)] = proj.reshape(clen, Bblk, H)

            h_ref[...] = jnp.zeros((Bblk, H), jnp.float32)

            # Hoist W_hh only while it fits comfortably in vregs (bf16 128x128
            # = 8 vregs); bigger sizes read the ref inside the step to avoid
            # spills on the serial critical path.
            if H <= 128:
                w_hh_val = w_hh_ref[...]
                get_whh = lambda v=w_hh_val: v          # noqa: E731
            else:
                get_whh = lambda r=w_hh_ref: r[...]      # noqa: E731
            # TODO(synk): pin W_hh in the MXU via pltpu.matmul_push_rhs /
            # matmul_acc_lhs / matmul_pop instead of a fresh dot per step.

            project(0)
            for c in range(n_chunks):
                # Issue the *next* chunk's independent projection before the
                # serial recurrence over this chunk so the MXU can overlap it.
                if c + 1 < n_chunks:
                    project(c + 1)
                t0, clen = chunk_starts[c], chunk_lens[c]

                def step(t, carry, last_layer=last_layer, get_whh=get_whh):
                    h_new = jnp.tanh(
                        buf_ref[t]
                        + jnp.dot(h_ref[...].astype(bf16), get_whh(),
                                  preferred_element_type=jnp.float32))
                    h_ref[...] = h_new
                    if not last_layer:          # last layer: skip dead stores
                        buf_ref[t] = h_new
                    return carry

                unroll = clen if clen <= 16 else 8
                lax.fori_loop(t0, t0 + clen, step, 0, unroll=unroll)

        # FC on the last time step's hidden state (== h_ref now).
        out_ref[...] = (jnp.dot(h_ref[...].astype(bf16), w_fc_ref[...],
                                preferred_element_type=jnp.float32)
                        + b_fc_ref[...])

    return kernel


def rnn_model_forward(x, params):
    """x: (B, T, D_in) float32 (batch_first, like the PyTorch module)."""
    B, T, Din = x.shape
    layers = params["layers"]
    num_layers = len(layers)
    H = layers[0]["w_hh"].shape[0]
    w_fc = params["fc_w"]                      # (C, H)
    b_fc = params["fc_b"]                      # (C,)
    C = w_fc.shape[0]

    f32, bf16 = jnp.float32, jnp.bfloat16

    # TPU-friendly padded sizes.
    cm = _contract_multiple(H)
    H_p = _round_up(H, cm)
    Din_p = _round_up(Din, cm if Din >= 192 else 128)
    C_p = _round_up(C, 128)

    # Batch blocking: >= 2 grid steps on multi-TC chips when the batch allows
    # (feeds both cores via dimension_semantics=("parallel",)); single big
    # block on single-TC chips (the recurrence is serial per grid step).
    B8 = _round_up(B, 8)
    bb = min(128, B8)
    if _num_tensorcores() >= 2 and B8 >= 16 and B8 // bb < 2:
        bb = _round_up((B8 + 1) // 2, 8)
    B_p = _round_up(B8, bb)

    # Time-major, padded input: (T, B_p, Din_p) f32.
    x_tm = jnp.transpose(x.astype(f32), (1, 0, 2))
    x_tm = _pad_to(x_tm, (T, B_p, Din_p))

    args = [x_tm]
    const_shapes = []
    for l, lp in enumerate(layers):
        din_p = Din_p if l == 0 else H_p
        w_ih_t = _pad_to(lp["w_ih"].astype(f32).T, (din_p, H_p)).astype(bf16)
        w_hh_t = _pad_to(lp["w_hh"].astype(f32).T, (H_p, H_p)).astype(bf16)
        bias = _pad_to((lp["b_ih"] + lp["b_hh"]).astype(f32).reshape(1, H),
                       (1, H_p))
        args += [w_ih_t, w_hh_t, bias]
        const_shapes += [(din_p, H_p), (H_p, H_p), (1, H_p)]

    w_fc_t = _pad_to(w_fc.astype(f32).T, (H_p, C_p)).astype(bf16)
    b_fc_p = _pad_to(b_fc.astype(f32).reshape(1, C), (1, C_p))
    args += [w_fc_t, b_fc_p]
    const_shapes += [(H_p, C_p), (1, C_p)]

    chunk_starts, chunk_lens = _time_chunks(T, bb, H_p)
    kernel = _make_rnn_kernel(num_layers, T, bb, H_p, Din_p, C_p,
                              chunk_starts, chunk_lens)

    weight_bytes = sum(int(a.size) * a.dtype.itemsize for a in args[1:])
    vmem_cap = _vmem_capacity_bytes()

    def run(use_buffered):
        def const_spec(shape):
            idx = lambda b: tuple(0 for _ in shape)            # noqa: E731
            if use_buffered:
                # Grid-constant blocks: single buffer instead of the default
                # double buffering -> saves a full weight copy of VMEM.
                return pl.BlockSpec(shape, idx, pipeline_mode=pl.Buffered(1))
            return pl.BlockSpec(shape, idx)

        in_specs = [pl.BlockSpec((T, bb, Din_p), lambda b: (0, b, 0))]
        in_specs += [const_spec(s) for s in const_shapes]
        out_spec = pl.BlockSpec((bb, C_p), lambda b: (b, 0))

        wf = 1 if use_buffered else 2
        vmem_need = (2 * (4 * T * bb * Din_p + 4 * bb * C_p)   # pipelined I/O
                     + wf * weight_bytes                        # weights/bias
                     + 4 * T * bb * H_p + 4 * bb * H_p)         # scratch
        vmem_limit = int(min(max(vmem_need + (8 << 20), 32 << 20),
                             int(vmem_cap * 0.85)))

        return pl.pallas_call(
            kernel,
            out_shape=jax.ShapeDtypeStruct((B_p, C_p), f32),
            grid=(B_p // bb,),
            in_specs=in_specs,
            out_specs=out_spec,
            scratch_shapes=[
                pltpu.VMEM((T, bb, H_p), f32),   # proj / hidden seq (in place)
                pltpu.VMEM((bb, H_p), f32),      # running hidden state
            ],
            compiler_params=pltpu.CompilerParams(
                dimension_semantics=("parallel",),
                vmem_limit_bytes=vmem_limit,
            ),
        )(*args)

    try:
        out_padded = jax.block_until_ready(run(use_buffered=True))
    except Exception:
        # Fallback if this JAX build rejects pipeline_mode=pl.Buffered(1).
        out_padded = jax.block_until_ready(run(use_buffered=False))

    return out_padded[:B, :C]


def rnn_model_reference(x, params):
    """Pure-JAX f32 reference matching PyTorch nn.RNN(tanh) + Linear."""
    B = x.shape[0]
    h_seq = x.astype(jnp.float32)
    for lp in params["layers"]:
        H = lp["w_hh"].shape[0]
        h_t = jnp.zeros((B, H), jnp.float32)
        outs = []
        for t in range(h_seq.shape[1]):
            h_t = jnp.tanh(h_seq[:, t, :] @ lp["w_ih"].T + lp["b_ih"]
                           + h_t @ lp["w_hh"].T + lp["b_hh"])
            outs.append(h_t)
        h_seq = jnp.stack(outs, axis=1)
    last = h_seq[:, -1, :]
    return last @ params["fc_w"].T + params["fc_b"]


def init_params(key, input_size, hidden_size, num_layers, num_classes):
    """Deterministic init mimicking PyTorch's U(-1/sqrt(H), 1/sqrt(H))."""
    bound = 1.0 / float(hidden_size) ** 0.5
    layers = []
    for l in range(num_layers):
        din = input_size if l == 0 else hidden_size
        key, k1, k2, k3, k4 = jax.random.split(key, 5)
        layers.append({
            "w_ih": jax.random.uniform(k1, (hidden_size, din), jnp.float32,
                                       -bound, bound),
            "w_hh": jax.random.uniform(k2, (hidden_size, hidden_size),
                                       jnp.float32, -bound, bound),
            "b_ih": jax.random.uniform(k3, (hidden_size,), jnp.float32,
                                       -bound, bound),
            "b_hh": jax.random.uniform(k4, (hidden_size,), jnp.float32,
                                       -bound, bound),
        })
    key, k1, k2 = jax.random.split(key, 3)
    fc_w = jax.random.uniform(k1, (num_classes, hidden_size), jnp.float32,
                              -bound, bound)
    fc_b = jax.random.uniform(k2, (num_classes,), jnp.float32, -bound, bound)
    return {"layers": layers, "fc_w": fc_w, "fc_b": fc_b}


if __name__ == "__main__":
    # Small, module-consistent shapes: batch=2, seq=8, input=16, hidden=32,
    # num_layers=2, num_classes=10.
    B, T, INPUT, HIDDEN, LAYERS, CLASSES = 2, 8, 16, 32, 2, 10

    key = jax.random.PRNGKey(0)
    key, kx = jax.random.split(key)
    x = jax.random.normal(kx, (B, T, INPUT), jnp.float32)
    params = init_params(key, INPUT, HIDDEN, LAYERS, CLASSES)

    out = rnn_model_forward(x, params)
    out = jax.block_until_ready(out)

    ref = rnn_model_reference(x, params)
    assert out.shape == (B, CLASSES)
    # bf16 matmul operands (f32 accumulation) -> slightly looser parity vs the
    # pure-f32 reference than the previous all-f32 kernel.
    max_err = float(jnp.max(jnp.abs(out - ref)))
    assert jnp.allclose(out, ref, atol=5e-2, rtol=5e-2), (
        f"max abs err {max_err}")

    print("KERNEL_OK")
</pallas_src>

<mosaic_0001>
module attributes {stable_mosaic.version = 11 : i64} {
  func.func @kernel(%arg0: i32, %arg1: memref<8x8x128xf32, #tpu.memory_space<vmem>>, %arg2: memref<128x128xbf16, #tpu.memory_space<vmem>>, %arg3: memref<128x128xbf16, #tpu.memory_space<vmem>>, %arg4: memref<1x128xf32, #tpu.memory_space<vmem>>, %arg5: memref<128x128xbf16, #tpu.memory_space<vmem>>, %arg6: memref<128x128xbf16, #tpu.memory_space<vmem>>, %arg7: memref<1x128xf32, #tpu.memory_space<vmem>>, %arg8: memref<128x128xbf16, #tpu.memory_space<vmem>>, %arg9: memref<1x128xf32, #tpu.memory_space<vmem>>, %arg10: memref<8x128xf32, #tpu.memory_space<vmem>>, %arg11: memref<8x8x128xf32, #tpu.memory_space<vmem>>, %arg12: memref<8x128xf32, #tpu.memory_space<vmem>>) attributes {dimension_semantics = [#tpu.dimension_semantics<parallel>], iteration_bounds = array<i64: 1>, scalar_prefetch = 0 : i64, scratch_operands = 2 : i64, tpu.core_type = #tpu.core_type<tc>, window_params = [{transform_indices = @transform_0, window_bounds = array<i64: 8, 8, 128>}, {pipeline_mode = #tpu.pipeline_mode<synchronous>, transform_indices = @transform_1, window_bounds = array<i64: 128, 128>}, {pipeline_mode = #tpu.pipeline_mode<synchronous>, transform_indices = @transform_2, window_bounds = array<i64: 128, 128>}, {pipeline_mode = #tpu.pipeline_mode<synchronous>, transform_indices = @transform_3, window_bounds = array<i64: 1, 128>}, {pipeline_mode = #tpu.pipeline_mode<synchronous>, transform_indices = @transform_4, window_bounds = array<i64: 128, 128>}, {pipeline_mode = #tpu.pipeline_mode<synchronous>, transform_indices = @transform_5, window_bounds = array<i64: 128, 128>}, {pipeline_mode = #tpu.pipeline_mode<synchronous>, transform_indices = @transform_6, window_bounds = array<i64: 1, 128>}, {pipeline_mode = #tpu.pipeline_mode<synchronous>, transform_indices = @transform_7, window_bounds = array<i64: 128, 128>}, {pipeline_mode = #tpu.pipeline_mode<synchronous>, transform_indices = @transform_8, window_bounds = array<i64: 1, 128>}, {transform_indices = @transform_9, window_bounds = array<i64: 8, 128>}]} {
    %cst = arith.constant 0.000000e+00 : f32
    %0 = vector.broadcast %cst : f32 to vector<8x128xf32>
    %c0 = arith.constant 0 : index
    %c0_0 = arith.constant 0 : index
    %1 = vector.load %arg12[%c0, %c0_0] : memref<8x128xf32, #tpu.memory_space<vmem>>, vector<8x128xf32>
    tpu.vector_store %arg12[%c0, %c0_0], %0 {strides = array<i32>} : memref<8x128xf32, #tpu.memory_space<vmem>>, vector<8x128xf32>,
    %c0_1 = arith.constant 0 : index
    %c0_2 = arith.constant 0 : index
    %2 = vector.load %arg3[%c0_1, %c0_2] : memref<128x128xbf16, #tpu.memory_space<vmem>>, vector<128x128xbf16>
    %c0_3 = arith.constant 0 : index
    %c0_4 = arith.constant 0 : index
    %c0_5 = arith.constant 0 : index
    %3 = vector.load %arg1[%c0_3, %c0_4, %c0_5] : memref<8x8x128xf32, #tpu.memory_space<vmem>>, vector<8x8x128xf32>
    %4 = vector.shape_cast %3 : vector<8x8x128xf32> to vector<64x128xf32>
    %5 = arith.truncf %4 : vector<64x128xf32> to vector<64x128xbf16>
    %c0_6 = arith.constant 0 : index
    %c0_7 = arith.constant 0 : index
    %6 = vector.load %arg2[%c0_6, %c0_7] : memref<128x128xbf16, #tpu.memory_space<vmem>>, vector<128x128xbf16>
    %cst_8 = arith.constant dense<0.000000e+00> : vector<64x128xf32>
    %7 = tpu.matmul %5, %6, %cst_8 {dimension_numbers = #tpu.dot_dimension_numbers<[1], [0], [0], [1], [0, 0, 1, 1], [], []>} : vector<64x128xbf16>, vector<128x128xbf16>, vector<64x128xf32> -> vector<64x128xf32>
    %c0_9 = arith.constant 0 : index
    %c0_10 = arith.constant 0 : index
    %8 = vector.load %arg4[%c0_9, %c0_10] : memref<1x128xf32, #tpu.memory_space<vmem>>, vector<1x128xf32>
    %9 = vector.broadcast %8 : vector<1x128xf32> to vector<64x128xf32>
    %10 = arith.addf %7, %9 : vector<64x128xf32>
    %11 = vector.shape_cast %10 : vector<64x128xf32> to vector<8x8x128xf32>
    %c0_11 = arith.constant 0 : index
    %c0_12 = arith.constant 0 : index
    %c0_13 = arith.constant 0 : index
    %12 = vector.load %arg11[%c0_11, %c0_12, %c0_13] : memref<8x8x128xf32, #tpu.memory_space<vmem>>, vector<8x8x128xf32>
    tpu.vector_store %arg11[%c0_11, %c0_12, %c0_13], %11 {strides = array<i32>} : memref<8x8x128xf32, #tpu.memory_space<vmem>>, vector<8x8x128xf32>,
    %c0_i32 = arith.constant 0 : i32
    %13 = arith.index_cast %c0_i32 : i32 to index
    %c0_14 = arith.constant 0 : index
    %c0_15 = arith.constant 0 : index
    %14 = vector.load %arg11[%13, %c0_14, %c0_15] : memref<8x8x128xf32, #tpu.memory_space<vmem>>, vector<1x8x128xf32>
    %15 = vector.shape_cast %14 : vector<1x8x128xf32> to vector<8x128xf32>
    %c0_16 = arith.constant 0 : index
    %c0_17 = arith.constant 0 : index
    %16 = vector.load %arg12[%c0_16, %c0_17] : memref<8x128xf32, #tpu.memory_space<vmem>>, vector<8x128xf32>
    %17 = arith.truncf %16 : vector<8x128xf32> to vector<8x128xbf16>
    %cst_18 = arith.constant dense<0.000000e+00> : vector<8x128xf32>
    %18 = tpu.matmul %17, %2, %cst_18 {dimension_numbers = #tpu.dot_dimension_numbers<[1], [0], [0], [1], [0, 0, 1, 1], [], []>} : vector<8x128xbf16>, vector<128x128xbf16>, vector<8x128xf32> -> vector<8x128xf32>
    %19 = arith.addf %15, %18 : vector<8x128xf32>
    %20 = math.tanh %19 : vector<8x128xf32>
    %c0_19 = arith.constant 0 : index
    %c0_20 = arith.constant 0 : index
    %21 = vector.load %arg12[%c0_19, %c0_20] : memref<8x128xf32, #tpu.memory_space<vmem>>, vector<8x128xf32>
    tpu.vector_store %arg12[%c0_19, %c0_20], %20 {strides = array<i32>} : memref<8x128xf32, #tpu.memory_space<vmem>>, vector<8x128xf32>,
    %22 = arith.index_cast %c0_i32 : i32 to index
    %c0_21 = arith.constant 0 : index
    %c0_22 = arith.constant 0 : index
    %23 = vector.load %arg11[%22, %c0_21, %c0_22] : memref<8x8x128xf32, #tpu.memory_space<vmem>>, vector<1x8x128xf32>
    %24 = vector.shape_cast %23 : vector<1x8x128xf32> to vector<8x128xf32>
    %25 = vector.shape_cast %20 : vector<8x128xf32> to vector<1x8x128xf32>
    tpu.vector_store %arg11[%22, %c0_21, %c0_22], %25 {strides = array<i32>} : memref<8x8x128xf32, #tpu.memory_space<vmem>>, vector<1x8x128xf32>,
    %c1_i32 = arith.constant 1 : i32
    %26 = arith.index_cast %c1_i32 : i32 to index
    %c0_23 = arith.constant 0 : index
    %c0_24 = arith.constant 0 : index
    %27 = vector.load %arg11[%26, %c0_23, %c0_24] : memref<8x8x128xf32, #tpu.memory_space<vmem>>, vector<1x8x128xf32>
    %28 = vector.shape_cast %27 : vector<1x8x128xf32> to vector<8x128xf32>
    %c0_25 = arith.constant 0 : index
    %c0_26 = arith.constant 0 : index
    %29 = vector.load %arg12[%c0_25, %c0_26] : memref<8x128xf32, #tpu.memory_space<vmem>>, vector<8x128xf32>
    %30 = arith.truncf %29 : vector<8x128xf32> to vector<8x128xbf16>
    %cst_27 = arith.constant dense<0.000000e+00> : vector<8x128xf32>
    %31 = tpu.matmul %30, %2, %cst_27 {dimension_numbers = #tpu.dot_dimension_numbers<[1], [0], [0], [1], [0, 0, 1, 1], [], []>} : vector<8x128xbf16>, vector<128x128xbf16>, vector<8x128xf32> -> vector<8x128xf32>
    %32 = arith.addf %28, %31 : vector<8x128xf32>
    %33 = math.tanh %32 : vector<8x128xf32>
    %c0_28 = arith.constant 0 : index
    %c0_29 = arith.constant 0 : index
    %34 = vector.load %arg12[%c0_28, %c0_29] : memref<8x128xf32, #tpu.memory_space<vmem>>, vector<8x128xf32>
    tpu.vector_store %arg12[%c0_28, %c0_29], %33 {strides = array<i32>} : memref<8x128xf32, #tpu.memory_space<vmem>>, vector<8x128xf32>,
    %35 = arith.index_cast %c1_i32 : i32 to index
    %c0_30 = arith.constant 0 : index
    %c0_31 = arith.constant 0 : index
    %36 = vector.load %arg11[%35, %c0_30, %c0_31] : memref<8x8x128xf32, #tpu.memory_space<vmem>>, vector<1x8x128xf32>
    %37 = vector.shape_cast %36 : vector<1x8x128xf32> to vector<8x128xf32>
    %38 = vector.shape_cast %33 : vector<8x128xf32> to vector<1x8x128xf32>
    tpu.vector_store %arg11[%35, %c0_30, %c0_31], %38 {strides = array<i32>} : memref<8x8x128xf32, #tpu.memory_space<vmem>>, vector<1x8x128xf32>,
    %c2_i32 = arith.constant 2 : i32
    %39 = arith.index_cast %c2_i32 : i32 to index
    %c0_32 = arith.constant 0 : index
    %c0_33 = arith.constant 0 : index
    %40 = vector.load %arg11[%39, %c0_32, %c0_33] : memref<8x8x128xf32, #tpu.memory_space<vmem>>, vector<1x8x128xf32>
    %41 = vector.shape_cast %40 : vector<1x8x128xf32> to vector<8x128xf32>
    %c0_34 = arith.constant 0 : index
    %c0_35 = arith.constant 0 : index
    %42 = vector.load %arg12[%c0_34, %c0_35] : memref<8x128xf32, #tpu.memory_space<vmem>>, vector<8x128xf32>
    %43 = arith.truncf %42 : vector<8x128xf32> to vector<8x128xbf16>
    %cst_36 = arith.constant dense<0.000000e+00> : vector<8x128xf32>
    %44 = tpu.matmul %43, %2, %cst_36 {dimension_numbers = #tpu.dot_dimension_numbers<[1], [0], [0], [1], [0, 0, 1, 1], [], []>} : vector<8x128xbf16>, vector<128x128xbf16>, vector<8x128xf32> -> vector<8x128xf32>
    %45 = arith.addf %41, %44 : vector<8x128xf32>
    %46 = math.tanh %45 : vector<8x128xf32>
    %c0_37 = arith.constant 0 : index
    %c0_38 = arith.constant 0 : index
    %47 = vector.load %arg12[%c0_37, %c0_38] : memref<8x128xf32, #tpu.memory_space<vmem>>, vector<8x128xf32>
    tpu.vector_store %arg12[%c0_37, %c0_38], %46 {strides = array<i32>} : memref<8x128xf32, #tpu.memory_space<vmem>>, vector<8x128xf32>,
    %48 = arith.index_cast %c2_i32 : i32 to index
    %c0_39 = arith.constant 0 : index
    %c0_40 = arith.constant 0 : index
    %49 = vector.load %arg11[%48, %c0_39, %c0_40] : memref<8x8x128xf32, #tpu.memory_space<vmem>>, vector<1x8x128xf32>
    %50 = vector.shape_cast %49 : vector<1x8x128xf32> to vector<8x128xf32>
    %51 = vector.shape_cast %46 : vector<8x128xf32> to vector<1x8x128xf32>
    tpu.vector_store %arg11[%48, %c0_39, %c0_40], %51 {strides = array<i32>} : memref<8x8x128xf32, #tpu.memory_space<vmem>>, vector<1x8x128xf32>,
    %c3_i32 = arith.constant 3 : i32
    %52 = arith.index_cast %c3_i32 : i32 to index
    %c0_41 = arith.constant 0 : index
    %c0_42 = arith.constant 0 : index
    %53 = vector.load %arg11[%52, %c0_41, %c0_42] : memref<8x8x128xf32, #tpu.memory_space<vmem>>, vector<1x8x128xf32>
    %54 = vector.shape_cast %53 : vector<1x8x128xf32> to vector<8x128xf32>
    %c0_43 = arith.constant 0 : index
    %c0_44 = arith.constant 0 : index
    %55 = vector.load %arg12[%c0_43, %c0_44] : memref<8x128xf32, #tpu.memory_space<vmem>>, vector<8x128xf32>
    %56 = arith.truncf %55 : vector<8x128xf32> to vector<8x128xbf16>
    %cst_45 = arith.constant dense<0.000000e+00> : vector<8x128xf32>
    %57 = tpu.matmul %56, %2, %cst_45 {dimension_numbers = #tpu.dot_dimension_numbers<[1], [0], [0], [1], [0, 0, 1, 1], [], []>} : vector<8x128xbf16>, vector<128x128xbf16>, vector<8x128xf32> -> vector<8x128xf32>
    %58 = arith.addf %54, %57 : vector<8x128xf32>
    %59 = math.tanh %58 : vector<8x128xf32>
    %c0_46 = arith.constant 0 : index
    %c0_47 = arith.constant 0 : index
    %60 = vector.load %arg12[%c0_46, %c0_47] : memref<8x128xf32, #tpu.memory_space<vmem>>, vector<8x128xf32>
    tpu.vector_store %arg12[%c0_46, %c0_47], %59 {strides = array<i32>} : memref<8x128xf32, #tpu.memory_space<vmem>>, vector<8x128xf32>,
    %61 = arith.index_cast %c3_i32 : i32 to index
    %c0_48 = arith.constant 0 : index
    %c0_49 = arith.constant 0 : index
    %62 = vector.load %arg11[%61, %c0_48, %c0_49] : memref<8x8x128xf32, #tpu.memory_space<vmem>>, vector<1x8x128xf32>
    %63 = vector.shape_cast %62 : vector<1x8x128xf32> to vector<8x128xf32>
    %64 = vector.shape_cast %59 : vector<8x128xf32> to vector<1x8x128xf32>
    tpu.vector_store %arg11[%61, %c0_48, %c0_49], %64 {strides = array<i32>} : memref<8x8x128xf32, #tpu.memory_space<vmem>>, vector<1x8x128xf32>,
    %c4_i32 = arith.constant 4 : i32
    %65 = arith.index_cast %c4_i32 : i32 to index
    %c0_50 = arith.constant 0 : index
    %c0_51 = arith.constant 0 : index
    %66 = vector.load %arg11[%65, %c0_50, %c0_51] : memref<8x8x128xf32, #tpu.memory_space<vmem>>, vector<1x8x128xf32>
    %67 = vector.shape_cast %66 : vector<1x8x128xf32> to vector<8x128xf32>
    %c0_52 = arith.constant 0 : index
    %c0_53 = arith.constant 0 : index
    %68 = vector.load %arg12[%c0_52, %c0_53] : memref<8x128xf32, #tpu.memory_space<vmem>>, vector<8x128xf32>
    %69 = arith.truncf %68 : vector<8x128xf32> to vector<8x128xbf16>
    %cst_54 = arith.constant dense<0.000000e+00> : vector<8x128xf32>
    %70 = tpu.matmul %69, %2, %cst_54 {dimension_numbers = #tpu.dot_dimension_numbers<[1], [0], [0], [1], [0, 0, 1, 1], [], []>} : vector<8x128xbf16>, vector<128x128xbf16>, vector<8x128xf32> -> vector<8x128xf32>
    %71 = arith.addf %67, %70 : vector<8x128xf32>
    %72 = math.tanh %71 : vector<8x128xf32>
    %c0_55 = arith.constant 0 : index
    %c0_56 = arith.constant 0 : index
    %73 = vector.load %arg12[%c0_55, %c0_56] : memref<8x128xf32, #tpu.memory_space<vmem>>, vector<8x128xf32>
    tpu.vector_store %arg12[%c0_55, %c0_56], %72 {strides = array<i32>} : memref<8x128xf32, #tpu.memory_space<vmem>>, vector<8x128xf32>,
    %74 = arith.index_cast %c4_i32 : i32 to index
    %c0_57 = arith.constant 0 : index
    %c0_58 = arith.constant 0 : index
    %75 = vector.load %arg11[%74, %c0_57, %c0_58] : memref<8x8x128xf32, #tpu.memory_space<vmem>>, vector<1x8x128xf32>
    %76 = vector.shape_cast %75 : vector<1x8x128xf32> to vector<8x128xf32>
    %77 = vector.shape_cast %72 : vector<8x128xf32> to vector<1x8x128xf32>
    tpu.vector_store %arg11[%74, %c0_57, %c0_58], %77 {strides = array<i32>} : memref<8x8x128xf32, #tpu.memory_space<vmem>>, vector<1x8x128xf32>,
    %c5_i32 = arith.constant 5 : i32
    %78 = arith.index_cast %c5_i32 : i32 to index
    %c0_59 = arith.constant 0 : index
    %c0_60 = arith.constant 0 : index
    %79 = vector.load %arg11[%78, %c0_59, %c0_60] : memref<8x8x128xf32, #tpu.memory_space<vmem>>, vector<1x8x128xf32>
    %80 = vector.shape_cast %79 : vector<1x8x128xf32> to vector<8x128xf32>
    %c0_61 = arith.constant 0 : index
    %c0_62 = arith.constant 0 : index
    %81 = vector.load %arg12[%c0_61, %c0_62] : memref<8x128xf32, #tpu.memory_space<vmem>>, vector<8x128xf32>
    %82 = arith.truncf %81 : vector<8x128xf32> to vector<8x128xbf16>
    %cst_63 = arith.constant dense<0.000000e+00> : vector<8x128xf32>
    %83 = tpu.matmul %82, %2, %cst_63 {dimension_numbers = #tpu.dot_dimension_numbers<[1], [0], [0], [1], [0, 0, 1, 1], [], []>} : vector<8x128xbf16>, vector<128x128xbf16>, vector<8x128xf32> -> vector<8x128xf32>
    %84 = arith.addf %80, %83 : vector<8x128xf32>
    %85 = math.tanh %84 : vector<8x128xf32>
    %c0_64 = arith.constant 0 : index
    %c0_65 = arith.constant 0 : index
    %86 = vector.load %arg12[%c0_64, %c0_65] : memref<8x128xf32, #tpu.memory_space<vmem>>, vector<8x128xf32>
    tpu.vector_store %arg12[%c0_64, %c0_65], %85 {strides = array<i32>} : memref<8x128xf32, #tpu.memory_space<vmem>>, vector<8x128xf32>,
    %87 = arith.index_cast %c5_i32 : i32 to index
    %c0_66 = arith.constant 0 : index
    %c0_67 = arith.constant 0 : index
    %88 = vector.load %arg11[%87, %c0_66, %c0_67] : memref<8x8x128xf32, #tpu.memory_space<vmem>>, vector<1x8x128xf32>
    %89 = vector.shape_cast %88 : vector<1x8x128xf32> to vector<8x128xf32>
    %90 = vector.shape_cast %85 : vector<8x128xf32> to vector<1x8x128xf32>
    tpu.vector_store %arg11[%87, %c0_66, %c0_67], %90 {strides = array<i32>} : memref<8x8x128xf32, #tpu.memory_space<vmem>>, vector<1x8x128xf32>,
    %c6_i32 = arith.constant 6 : i32
    %91 = arith.index_cast %c6_i32 : i32 to index
    %c0_68 = arith.constant 0 : index
    %c0_69 = arith.constant 0 : index
    %92 = vector.load %arg11[%91, %c0_68, %c0_69] : memref<8x8x128xf32, #tpu.memory_space<vmem>>, vector<1x8x128xf32>
    %93 = vector.shape_cast %92 : vector<1x8x128xf32> to vector<8x128xf32>
    %c0_70 = arith.constant 0 : index
    %c0_71 = arith.constant 0 : index
    %94 = vector.load %arg12[%c0_70, %c0_71] : memref<8x128xf32, #tpu.memory_space<vmem>>, vector<8x128xf32>
    %95 = arith.truncf %94 : vector<8x128xf32> to vector<8x128xbf16>
    %cst_72 = arith.constant dense<0.000000e+00> : vector<8x128xf32>
    %96 = tpu.matmul %95, %2, %cst_72 {dimension_numbers = #tpu.dot_dimension_numbers<[1], [0], [0], [1], [0, 0, 1, 1], [], []>} : vector<8x128xbf16>, vector<128x128xbf16>, vector<8x128xf32> -> vector<8x128xf32>
    %97 = arith.addf %93, %96 : vector<8x128xf32>
    %98 = math.tanh %97 : vector<8x128xf32>
    %c0_73 = arith.constant 0 : index
    %c0_74 = arith.constant 0 : index
    %99 = vector.load %arg12[%c0_73, %c0_74] : memref<8x128xf32, #tpu.memory_space<vmem>>, vector<8x128xf32>
    tpu.vector_store %arg12[%c0_73, %c0_74], %98 {strides = array<i32>} : memref<8x128xf32, #tpu.memory_space<vmem>>, vector<8x128xf32>,
    %100 = arith.index_cast %c6_i32 : i32 to index
    %c0_75 = arith.constant 0 : index
    %c0_76 = arith.constant 0 : index
    %101 = vector.load %arg11[%100, %c0_75, %c0_76] : memref<8x8x128xf32, #tpu.memory_space<vmem>>, vector<1x8x128xf32>
    %102 = vector.shape_cast %101 : vector<1x8x128xf32> to vector<8x128xf32>
    %103 = vector.shape_cast %98 : vector<8x128xf32> to vector<1x8x128xf32>
    tpu.vector_store %arg11[%100, %c0_75, %c0_76], %103 {strides = array<i32>} : memref<8x8x128xf32, #tpu.memory_space<vmem>>, vector<1x8x128xf32>,
    %c7_i32 = arith.constant 7 : i32
    %104 = arith.index_cast %c7_i32 : i32 to index
    %c0_77 = arith.constant 0 : index
    %c0_78 = arith.constant 0 : index
    %105 = vector.load %arg11[%104, %c0_77, %c0_78] : memref<8x8x128xf32, #tpu.memory_space<vmem>>, vector<1x8x128xf32>
    %106 = vector.shape_cast %105 : vector<1x8x128xf32> to vector<8x128xf32>
    %c0_79 = arith.constant 0 : index
    %c0_80 = arith.constant 0 : index
    %107 = vector.load %arg12[%c0_79, %c0_80] : memref<8x128xf32, #tpu.memory_space<vmem>>, vector<8x128xf32>
    %108 = arith.truncf %107 : vector<8x128xf32> to vector<8x128xbf16>
    %cst_81 = arith.constant dense<0.000000e+00> : vector<8x128xf32>
    %109 = tpu.matmul %108, %2, %cst_81 {dimension_numbers = #tpu.dot_dimension_numbers<[1], [0], [0], [1], [0, 0, 1, 1], [], []>} : vector<8x128xbf16>, vector<128x128xbf16>, vector<8x128xf32> -> vector<8x128xf32>
    %110 = arith.addf %106, %109 : vector<8x128xf32>
    %111 = math.tanh %110 : vector<8x128xf32>
    %c0_82 = arith.constant 0 : index
    %c0_83 = arith.constant 0 : index
    %112 = vector.load %arg12[%c0_82, %c0_83] : memref<8x128xf32, #tpu.memory_space<vmem>>, vector<8x128xf32>
    tpu.vector_store %arg12[%c0_82, %c0_83], %111 {strides = array<i32>} : memref<8x128xf32, #tpu.memory_space<vmem>>, vector<8x128xf32>,
    %113 = arith.index_cast %c7_i32 : i32 to index
    %c0_84 = arith.constant 0 : index
    %c0_85 = arith.constant 0 : index
    %114 = vector.load %arg11[%113, %c0_84, %c0_85] : memref<8x8x128xf32, #tpu.memory_space<vmem>>, vector<1x8x128xf32>
    %115 = vector.shape_cast %114 : vector<1x8x128xf32> to vector<8x128xf32>
    %116 = vector.shape_cast %111 : vector<8x128xf32> to vector<1x8x128xf32>
    tpu.vector_store %arg11[%113, %c0_84, %c0_85], %116 {strides = array<i32>} : memref<8x8x128xf32, #tpu.memory_space<vmem>>, vector<1x8x128xf32>,
    %c8_i32 = arith.constant 8 : i32
    %cst_86 = arith.constant 0.000000e+00 : f32
    %117 = vector.broadcast %cst_86 : f32 to vector<8x128xf32>
    %c0_87 = arith.constant 0 : index
    %c0_88 = arith.constant 0 : index
    %118 = vector.load %arg12[%c0_87, %c0_88] : memref<8x128xf32, #tpu.memory_space<vmem>>, vector<8x128xf32>
    tpu.vector_store %arg12[%c0_87, %c0_88], %117 {strides = array<i32>} : memref<8x128xf32, #tpu.memory_space<vmem>>, vector<8x128xf32>,
    %c0_89 = arith.constant 0 : index
    %c0_90 = arith.constant 0 : index
    %119 = vector.load %arg6[%c0_89, %c0_90] : memref<128x128xbf16, #tpu.memory_space<vmem>>, vector<128x128xbf16>
    %c0_91 = arith.constant 0 : index
    %c0_92 = arith.constant 0 : index
    %c0_93 = arith.constant 0 : index
    %120 = vector.load %arg11[%c0_91, %c0_92, %c0_93] : memref<8x8x128xf32, #tpu.memory_space<vmem>>, vector<8x8x128xf32>
    %121 = vector.shape_cast %120 : vector<8x8x128xf32> to vector<64x128xf32>
    %122 = arith.truncf %121 : vector<64x128xf32> to vector<64x128xbf16>
    %c0_94 = arith.constant 0 : index
    %c0_95 = arith.constant 0 : index
    %123 = vector.load %arg5[%c0_94, %c0_95] : memref<128x128xbf16, #tpu.memory_space<vmem>>, vector<128x128xbf16>
    %cst_96 = arith.constant dense<0.000000e+00> : vector<64x128xf32>
    %124 = tpu.matmul %122, %123, %cst_96 {dimension_numbers = #tpu.dot_dimension_numbers<[1], [0], [0], [1], [0, 0, 1, 1], [], []>} : vector<64x128xbf16>, vector<128x128xbf16>, vector<64x128xf32> -> vector<64x128xf32>
    %c0_97 = arith.constant 0 : index
    %c0_98 = arith.constant 0 : index
    %125 = vector.load %arg7[%c0_97, %c0_98] : memref<1x128xf32, #tpu.memory_space<vmem>>, vector<1x128xf32>
    %126 = vector.broadcast %125 : vector<1x128xf32> to vector<64x128xf32>
    %127 = arith.addf %124, %126 : vector<64x128xf32>
    %128 = vector.shape_cast %127 : vector<64x128xf32> to vector<8x8x128xf32>
    %c0_99 = arith.constant 0 : index
    %c0_100 = arith.constant 0 : index
    %c0_101 = arith.constant 0 : index
    %129 = vector.load %arg11[%c0_99, %c0_100, %c0_101] : memref<8x8x128xf32, #tpu.memory_space<vmem>>, vector<8x8x128xf32>
    tpu.vector_store %arg11[%c0_99, %c0_100, %c0_101], %128 {strides = array<i32>} : memref<8x8x128xf32, #tpu.memory_space<vmem>>, vector<8x8x128xf32>,
    %c0_i32_102 = arith.constant 0 : i32
    %130 = arith.index_cast %c0_i32_102 : i32 to index
    %c0_103 = arith.constant 0 : index
    %c0_104 = arith.constant 0 : index
    %131 = vector.load %arg11[%130, %c0_103, %c0_104] : memref<8x8x128xf32, #tpu.memory_space<vmem>>, vector<1x8x128xf32>
    %132 = vector.shape_cast %131 : vector<1x8x128xf32> to vector<8x128xf32>
    %c0_105 = arith.constant 0 : index
    %c0_106 = arith.constant 0 : index
    %133 = vector.load %arg12[%c0_105, %c0_106] : memref<8x128xf32, #tpu.memory_space<vmem>>, vector<8x128xf32>
    %134 = arith.truncf %133 : vector<8x128xf32> to vector<8x128xbf16>
    %cst_107 = arith.constant dense<0.000000e+00> : vector<8x128xf32>
    %135 = tpu.matmul %134, %119, %cst_107 {dimension_numbers = #tpu.dot_dimension_numbers<[1], [0], [0], [1], [0, 0, 1, 1], [], []>} : vector<8x128xbf16>, vector<128x128xbf16>, vector<8x128xf32> -> vector<8x128xf32>
    %136 = arith.addf %132, %135 : vector<8x128xf32>
    %137 = math.tanh %136 : vector<8x128xf32>
    %c0_108 = arith.constant 0 : index
    %c0_109 = arith.constant 0 : index
    %138 = vector.load %arg12[%c0_108, %c0_109] : memref<8x128xf32, #tpu.memory_space<vmem>>, vector<8x128xf32>
    tpu.vector_store %arg12[%c0_108, %c0_109], %137 {strides = array<i32>} : memref<8x128xf32, #tpu.memory_space<vmem>>, vector<8x128xf32>,
    %c1_i32_110 = arith.constant 1 : i32
    %139 = arith.index_cast %c1_i32_110 : i32 to index
    %c0_111 = arith.constant 0 : index
    %c0_112 = arith.constant 0 : index
    %140 = vector.load %arg11[%139, %c0_111, %c0_112] : memref<8x8x128xf32, #tpu.memory_space<vmem>>, vector<1x8x128xf32>
    %141 = vector.shape_cast %140 : vector<1x8x128xf32> to vector<8x128xf32>
    %c0_113 = arith.constant 0 : index
    %c0_114 = arith.constant 0 : index
    %142 = vector.load %arg12[%c0_113, %c0_114] : memref<8x128xf32, #tpu.memory_space<vmem>>, vector<8x128xf32>
    %143 = arith.truncf %142 : vector<8x128xf32> to vector<8x128xbf16>
    %cst_115 = arith.constant dense<0.000000e+00> : vector<8x128xf32>
    %144 = tpu.matmul %143, %119, %cst_115 {dimension_numbers = #tpu.dot_dimension_numbers<[1], [0], [0], [1], [0, 0, 1, 1], [], []>} : vector<8x128xbf16>, vector<128x128xbf16>, vector<8x128xf32> -> vector<8x128xf32>
    %145 = arith.addf %141, %144 : vector<8x128xf32>
    %146 = math.tanh %145 : vector<8x128xf32>
    %c0_116 = arith.constant 0 : index
    %c0_117 = arith.constant 0 : index
    %147 = vector.load %arg12[%c0_116, %c0_117] : memref<8x128xf32, #tpu.memory_space<vmem>>, vector<8x128xf32>
    tpu.vector_store %arg12[%c0_116, %c0_117], %146 {strides = array<i32>} : memref<8x128xf32, #tpu.memory_space<vmem>>, vector<8x128xf32>,
    %c2_i32_118 = arith.constant 2 : i32
    %148 = arith.index_cast %c2_i32_118 : i32 to index
    %c0_119 = arith.constant 0 : index
    %c0_120 = arith.constant 0 : index
    %149 = vector.load %arg11[%148, %c0_119, %c0_120] : memref<8x8x128xf32, #tpu.memory_space<vmem>>, vector<1x8x128xf32>
    %150 = vector.shape_cast %149 : vector<1x8x128xf32> to vector<8x128xf32>
    %c0_121 = arith.constant 0 : index
    %c0_122 = arith.constant 0 : index
    %151 = vector.load %arg12[%c0_121, %c0_122] : memref<8x128xf32, #tpu.memory_space<vmem>>, vector<8x128xf32>
    %152 = arith.truncf %151 : vector<8x128xf32> to vector<8x128xbf16>
    %cst_123 = arith.constant dense<0.000000e+00> : vector<8x128xf32>
    %153 = tpu.matmul %152, %119, %cst_123 {dimension_numbers = #tpu.dot_dimension_numbers<[1], [0], [0], [1], [0, 0, 1, 1], [], []>} : vector<8x128xbf16>, vector<128x128xbf16>, vector<8x128xf32> -> vector<8x128xf32>
    %154 = arith.addf %150, %153 : vector<8x128xf32>
    %155 = math.tanh %154 : vector<8x128xf32>
    %c0_124 = arith.constant 0 : index
    %c0_125 = arith.constant 0 : index
    %156 = vector.load %arg12[%c0_124, %c0_125] : memref<8x128xf32, #tpu.memory_space<vmem>>, vector<8x128xf32>
    tpu.vector_store %arg12[%c0_124, %c0_125], %155 {strides = array<i32>} : memref<8x128xf32, #tpu.memory_space<vmem>>, vector<8x128xf32>,
    %c3_i32_126 = arith.constant 3 : i32
    %157 = arith.index_cast %c3_i32_126 : i32 to index
    %c0_127 = arith.constant 0 : index
    %c0_128 = arith.constant 0 : index
    %158 = vector.load %arg11[%157, %c0_127, %c0_128] : memref<8x8x128xf32, #tpu.memory_space<vmem>>, vector<1x8x128xf32>
    %159 = vector.shape_cast %158 : vector<1x8x128xf32> to vector<8x128xf32>
    %c0_129 = arith.constant 0 : index
    %c0_130 = arith.constant 0 : index
    %160 = vector.load %arg12[%c0_129, %c0_130] : memref<8x128xf32, #tpu.memory_space<vmem>>, vector<8x128xf32>
    %161 = arith.truncf %160 : vector<8x128xf32> to vector<8x128xbf16>
    %cst_131 = arith.constant dense<0.000000e+00> : vector<8x128xf32>
    %162 = tpu.matmul %161, %119, %cst_131 {dimension_numbers = #tpu.dot_dimension_numbers<[1], [0], [0], [1], [0, 0, 1, 1], [], []>} : vector<8x128xbf16>, vector<128x128xbf16>, vector<8x128xf32> -> vector<8x128xf32>
    %163 = arith.addf %159, %162 : vector<8x128xf32>
    %164 = math.tanh %163 : vector<8x128xf32>
    %c0_132 = arith.constant 0 : index
    %c0_133 = arith.constant 0 : index
    %165 = vector.load %arg12[%c0_132, %c0_133] : memref<8x128xf32, #tpu.memory_space<vmem>>, vector<8x128xf32>
    tpu.vector_store %arg12[%c0_132, %c0_133], %164 {strides = array<i32>} : memref<8x128xf32, #tpu.memory_space<vmem>>, vector<8x128xf32>,
    %c4_i32_134 = arith.constant 4 : i32
    %166 = arith.index_cast %c4_i32_134 : i32 to index
    %c0_135 = arith.constant 0 : index
    %c0_136 = arith.constant 0 : index
    %167 = vector.load %arg11[%166, %c0_135, %c0_136] : memref<8x8x128xf32, #tpu.memory_space<vmem>>, vector<1x8x128xf32>
    %168 = vector.shape_cast %167 : vector<1x8x128xf32> to vector<8x128xf32>
    %c0_137 = arith.constant 0 : index
    %c0_138 = arith.constant 0 : index
    %169 = vector.load %arg12[%c0_137, %c0_138] : memref<8x128xf32, #tpu.memory_space<vmem>>, vector<8x128xf32>
    %170 = arith.truncf %169 : vector<8x128xf32> to vector<8x128xbf16>
    %cst_139 = arith.constant dense<0.000000e+00> : vector<8x128xf32>
    %171 = tpu.matmul %170, %119, %cst_139 {dimension_numbers = #tpu.dot_dimension_numbers<[1], [0], [0], [1], [0, 0, 1, 1], [], []>} : vector<8x128xbf16>, vector<128x128xbf16>, vector<8x128xf32> -> vector<8x128xf32>
    %172 = arith.addf %168, %171 : vector<8x128xf32>
    %173 = math.tanh %172 : vector<8x128xf32>
    %c0_140 = arith.constant 0 : index
    %c0_141 = arith.constant 0 : index
    %174 = vector.load %arg12[%c0_140, %c0_141] : memref<8x128xf32, #tpu.memory_space<vmem>>, vector<8x128xf32>
    tpu.vector_store %arg12[%c0_140, %c0_141], %173 {strides = array<i32>} : memref<8x128xf32, #tpu.memory_space<vmem>>, vector<8x128xf32>,
    %c5_i32_142 = arith.constant 5 : i32
    %175 = arith.index_cast %c5_i32_142 : i32 to index
    %c0_143 = arith.constant 0 : index
    %c0_144 = arith.constant 0 : index
    %176 = vector.load %arg11[%175, %c0_143, %c0_144] : memref<8x8x128xf32, #tpu.memory_space<vmem>>, vector<1x8x128xf32>
    %177 = vector.shape_cast %176 : vector<1x8x128xf32> to vector<8x128xf32>
    %c0_145 = arith.constant 0 : index
    %c0_146 = arith.constant 0 : index
    %178 = vector.load %arg12[%c0_145, %c0_146] : memref<8x128xf32, #tpu.memory_space<vmem>>, vector<8x128xf32>
    %179 = arith.truncf %178 : vector<8x128xf32> to vector<8x128xbf16>
    %cst_147 = arith.constant dense<0.000000e+00> : vector<8x128xf32>
    %180 = tpu.matmul %179, %119, %cst_147 {dimension_numbers = #tpu.dot_dimension_numbers<[1], [0], [0], [1], [0, 0, 1, 1], [], []>} : vector<8x128xbf16>, vector<128x128xbf16>, vector<8x128xf32> -> vector<8x128xf32>
    %181 = arith.addf %177, %180 : vector<8x128xf32>
    %182 = math.tanh %181 : vector<8x128xf32>
    %c0_148 = arith.constant 0 : index
    %c0_149 = arith.constant 0 : index
    %183 = vector.load %arg12[%c0_148, %c0_149] : memref<8x128xf32, #tpu.memory_space<vmem>>, vector<8x128xf32>
    tpu.vector_store %arg12[%c0_148, %c0_149], %182 {strides = array<i32>} : memref<8x128xf32, #tpu.memory_space<vmem>>, vector<8x128xf32>,
    %c6_i32_150 = arith.constant 6 : i32
    %184 = arith.index_cast %c6_i32_150 : i32 to index
    %c0_151 = arith.constant 0 : index
    %c0_152 = arith.constant 0 : index
    %185 = vector.load %arg11[%184, %c0_151, %c0_152] : memref<8x8x128xf32, #tpu.memory_space<vmem>>, vector<1x8x128xf32>
    %186 = vector.shape_cast %185 : vector<1x8x128xf32> to vector<8x128xf32>
    %c0_153 = arith.constant 0 : index
    %c0_154 = arith.constant 0 : index
    %187 = vector.load %arg12[%c0_153, %c0_154] : memref<8x128xf32, #tpu.memory_space<vmem>>, vector<8x128xf32>
    %188 = arith.truncf %187 : vector<8x128xf32> to vector<8x128xbf16>
    %cst_155 = arith.constant dense<0.000000e+00> : vector<8x128xf32>
    %189 = tpu.matmul %188, %119, %cst_155 {dimension_numbers = #tpu.dot_dimension_numbers<[1], [0], [0], [1], [0, 0, 1, 1], [], []>} : vector<8x128xbf16>, vector<128x128xbf16>, vector<8x128xf32> -> vector<8x128xf32>
    %190 = arith.addf %186, %189 : vector<8x128xf32>
    %191 = math.tanh %190 : vector<8x128xf32>
    %c0_156 = arith.constant 0 : index
    %c0_157 = arith.constant 0 : index
    %192 = vector.load %arg12[%c0_156, %c0_157] : memref<8x128xf32, #tpu.memory_space<vmem>>, vector<8x128xf32>
    tpu.vector_store %arg12[%c0_156, %c0_157], %191 {strides = array<i32>} : memref<8x128xf32, #tpu.memory_space<vmem>>, vector<8x128xf32>,
    %c7_i32_158 = arith.constant 7 : i32
    %193 = arith.index_cast %c7_i32_158 : i32 to index
    %c0_159 = arith.constant 0 : index
    %c0_160 = arith.constant 0 : index
    %194 = vector.load %arg11[%193, %c0_159, %c0_160] : memref<8x8x128xf32, #tpu.memory_space<vmem>>, vector<1x8x128xf32>
    %195 = vector.shape_cast %194 : vector<1x8x128xf32> to vector<8x128xf32>
    %c0_161 = arith.constant 0 : index
    %c0_162 = arith.constant 0 : index
    %196 = vector.load %arg12[%c0_161, %c0_162] : memref<8x128xf32, #tpu.memory_space<vmem>>, vector<8x128xf32>
    %197 = arith.truncf %196 : vector<8x128xf32> to vector<8x128xbf16>
    %cst_163 = arith.constant dense<0.000000e+00> : vector<8x128xf32>
    %198 = tpu.matmul %197, %119, %cst_163 {dimension_numbers = #tpu.dot_dimension_numbers<[1], [0], [0], [1], [0, 0, 1, 1], [], []>} : vector<8x128xbf16>, vector<128x128xbf16>, vector<8x128xf32> -> vector<8x128xf32>
    %199 = arith.addf %195, %198 : vector<8x128xf32>
    %200 = math.tanh %199 : vector<8x128xf32>
    %c0_164 = arith.constant 0 : index
    %c0_165 = arith.constant 0 : index
    %201 = vector.load %arg12[%c0_164, %c0_165] : memref<8x128xf32, #tpu.memory_space<vmem>>, vector<8x128xf32>
    tpu.vector_store %arg12[%c0_164, %c0_165], %200 {strides = array<i32>} : memref<8x128xf32, #tpu.memory_space<vmem>>, vector<8x128xf32>,
    %c8_i32_166 = arith.constant 8 : i32
    %c0_167 = arith.constant 0 : index
    %c0_168 = arith.constant 0 : index
    %202 = vector.load %arg12[%c0_167, %c0_168] : memref<8x128xf32, #tpu.memory_space<vmem>>, vector<8x128xf32>
    %203 = arith.truncf %202 : vector<8x128xf32> to vector<8x128xbf16>
    %c0_169 = arith.constant 0 : index
    %c0_170 = arith.constant 0 : index
    %204 = vector.load %arg8[%c0_169, %c0_170] : memref<128x128xbf16, #tpu.memory_space<vmem>>, vector<128x128xbf16>
    %cst_171 = arith.constant dense<0.000000e+00> : vector<8x128xf32>
    %205 = tpu.matmul %203, %204, %cst_171 {dimension_numbers = #tpu.dot_dimension_numbers<[1], [0], [0], [1], [0, 0, 1, 1], [], []>} : vector<8x128xbf16>, vector<128x128xbf16>, vector<8x128xf32> -> vector<8x128xf32>
    %c0_172 = arith.constant 0 : index
    %c0_173 = arith.constant 0 : index
    %206 = vector.load %arg9[%c0_172, %c0_173] : memref<1x128xf32, #tpu.memory_space<vmem>>, vector<1x128xf32>
    %207 = vector.broadcast %206 : vector<1x128xf32> to vector<8x128xf32>
    %208 = arith.addf %205, %207 : vector<8x128xf32>
    %c0_174 = arith.constant 0 : index
    %c0_175 = arith.constant 0 : index
    %209 = vector.load %arg10[%c0_174, %c0_175] : memref<8x128xf32, #tpu.memory_space<vmem>>, vector<8x128xf32>
    tpu.vector_store %arg10[%c0_174, %c0_175], %208 {strides = array<i32>} : memref<8x128xf32, #tpu.memory_space<vmem>>, vector<8x128xf32>,
    return
  }
  func.func @transform_0(%arg0: i32) -> (i32, i32, i32) {
    %c0_i32 = arith.constant 0 : i32
    %c0_i32_0 = arith.constant 0 : i32
    %c0_i32_1 = arith.constant 0 : i32
    return %c0_i32, %arg0, %c0_i32_0 : i32, i32, i32
  }
  func.func @transform_1(%arg0: i32) -> (i32, i32) {
    %c0_i32 = arith.constant 0 : i32
    %c0_i32_0 = arith.constant 0 : i32
    %c0_i32_1 = arith.constant 0 : i32
    return %c0_i32, %c0_i32_0 : i32, i32
  }
  func.func @transform_2(%arg0: i32) -> (i32, i32) {
    %c0_i32 = arith.constant 0 : i32
    %c0_i32_0 = arith.constant 0 : i32
    %c0_i32_1 = arith.constant 0 : i32
    return %c0_i32, %c0_i32_0 : i32, i32
  }
  func.func @transform_3(%arg0: i32) -> (i32, i32) {
    %c0_i32 = arith.constant 0 : i32
    %c0_i32_0 = arith.constant 0 : i32
    %c0_i32_1 = arith.constant 0 : i32
    return %c0_i32, %c0_i32_0 : i32, i32
  }
  func.func @transform_4(%arg0: i32) -> (i32, i32) {
    %c0_i32 = arith.constant 0 : i32
    %c0_i32_0 = arith.constant 0 : i32
    %c0_i32_1 = arith.constant 0 : i32
    return %c0_i32, %c0_i32_0 : i32, i32
  }
  func.func @transform_5(%arg0: i32) -> (i32, i32) {
    %c0_i32 = arith.constant 0 : i32
    %c0_i32_0 = arith.constant 0 : i32
    %c0_i32_1 = arith.constant 0 : i32
    return %c0_i32, %c0_i32_0 : i32, i32
  }
  func.func @transform_6(%arg0: i32) -> (i32, i32) {
    %c0_i32 = arith.constant 0 : i32
    %c0_i32_0 = arith.constant 0 : i32
    %c0_i32_1 = arith.constant 0 : i32
    return %c0_i32, %c0_i32_0 : i32, i32
  }
  func.func @transform_7(%arg0: i32) -> (i32, i32) {
    %c0_i32 = arith.constant 0 : i32
    %c0_i32_0 = arith.constant 0 : i32
    %c0_i32_1 = arith.constant 0 : i32
    return %c0_i32, %c0_i32_0 : i32, i32
  }
  func.func @transform_8(%arg0: i32) -> (i32, i32) {
    %c0_i32 = arith.constant 0 : i32
    %c0_i32_0 = arith.constant 0 : i32
    %c0_i32_1 = arith.constant 0 : i32
    return %c0_i32, %c0_i32_0 : i32, i32
  }
  func.func @transform_9(%arg0: i32) -> (i32, i32) {
    %c0_i32 = arith.constant 0 : i32
    %c0_i32_0 = arith.constant 0 : i32
    return %arg0, %c0_i32 : i32, i32
  }
}

module attributes {stable_mosaic.version = 11 : i64} {
  func.func @kernel(%arg0: i32, %arg1: memref<8x8x128xf32, #tpu.memory_space<vmem>>, %arg2: memref<128x128xbf16, #tpu.memory_space<vmem>>, %arg3: memref<128x128xbf16, #tpu.memory_space<vmem>>, %arg4: memref<1x128xf32, #tpu.memory_space<vmem>>, %arg5: memref<128x128xbf16, #tpu.memory_space<vmem>>, %arg6: memref<128x128xbf16, #tpu.memory_space<vmem>>, %arg7: memref<1x128xf32, #tpu.memory_space<vmem>>, %arg8: memref<128x128xbf16, #tpu.memory_space<vmem>>, %arg9: memref<1x128xf32, #tpu.memory_space<vmem>>, %arg10: memref<8x128xf32, #tpu.memory_space<vmem>>, %arg11: memref<8x8x128xf32, #tpu.memory_space<vmem>>, %arg12: memref<8x128xf32, #tpu.memory_space<vmem>>) attributes {dimension_semantics = [#tpu.dimension_semantics<parallel>], iteration_bounds = array<i64: 1>, scalar_prefetch = 0 : i64, scratch_operands = 2 : i64, tpu.core_type = #tpu.core_type<tc>, window_params = [{transform_indices = @transform_0, window_bounds = array<i64: 8, 8, 128>}, {pipeline_mode = #tpu.pipeline_mode<synchronous>, transform_indices = @transform_1, window_bounds = array<i64: 128, 128>}, {pipeline_mode = #tpu.pipeline_mode<synchronous>, transform_indices = @transform_2, window_bounds = array<i64: 128, 128>}, {pipeline_mode = #tpu.pipeline_mode<synchronous>, transform_indices = @transform_3, window_bounds = array<i64: 1, 128>}, {pipeline_mode = #tpu.pipeline_mode<synchronous>, transform_indices = @transform_4, window_bounds = array<i64: 128, 128>}, {pipeline_mode = #tpu.pipeline_mode<synchronous>, transform_indices = @transform_5, window_bounds = array<i64: 128, 128>}, {pipeline_mode = #tpu.pipeline_mode<synchronous>, transform_indices = @transform_6, window_bounds = array<i64: 1, 128>}, {pipeline_mode = #tpu.pipeline_mode<synchronous>, transform_indices = @transform_7, window_bounds = array<i64: 128, 128>}, {pipeline_mode = #tpu.pipeline_mode<synchronous>, transform_indices = @transform_8, window_bounds = array<i64: 1, 128>}, {transform_indices = @transform_9, window_bounds = array<i64: 8, 128>}]} {
    %cst = arith.constant 0.000000e+00 : f32
    %0 = vector.broadcast %cst : f32 to vector<8x128xf32>
    %c0 = arith.constant 0 : index
    %c0_0 = arith.constant 0 : index
    %1 = vector.load %arg12[%c0, %c0_0] : memref<8x128xf32, #tpu.memory_space<vmem>>, vector<8x128xf32>
    tpu.vector_store %arg12[%c0, %c0_0], %0 {strides = array<i32>} : memref<8x128xf32, #tpu.memory_space<vmem>>, vector<8x128xf32>,
    %c0_1 = arith.constant 0 : index
    %c0_2 = arith.constant 0 : index
    %2 = vector.load %arg3[%c0_1, %c0_2] : memref<128x128xbf16, #tpu.memory_space<vmem>>, vector<128x128xbf16>
    %c0_3 = arith.constant 0 : index
    %c0_4 = arith.constant 0 : index
    %c0_5 = arith.constant 0 : index
    %3 = vector.load %arg1[%c0_3, %c0_4, %c0_5] : memref<8x8x128xf32, #tpu.memory_space<vmem>>, vector<8x8x128xf32>
    %4 = vector.shape_cast %3 : vector<8x8x128xf32> to vector<64x128xf32>
    %5 = arith.truncf %4 : vector<64x128xf32> to vector<64x128xbf16>
    %c0_6 = arith.constant 0 : index
    %c0_7 = arith.constant 0 : index
    %6 = vector.load %arg2[%c0_6, %c0_7] : memref<128x128xbf16, #tpu.memory_space<vmem>>, vector<128x128xbf16>
    %cst_8 = arith.constant dense<0.000000e+00> : vector<64x128xf32>
    %7 = tpu.matmul %5, %6, %cst_8 {dimension_numbers = #tpu.dot_dimension_numbers<[1], [0], [0], [1], [0, 0, 1, 1], [], []>} : vector<64x128xbf16>, vector<128x128xbf16>, vector<64x128xf32> -> vector<64x128xf32>
    %c0_9 = arith.constant 0 : index
    %c0_10 = arith.constant 0 : index
    %8 = vector.load %arg4[%c0_9, %c0_10] : memref<1x128xf32, #tpu.memory_space<vmem>>, vector<1x128xf32>
    %9 = vector.broadcast %8 : vector<1x128xf32> to vector<64x128xf32>
    %10 = arith.addf %7, %9 : vector<64x128xf32>
    %11 = vector.shape_cast %10 : vector<64x128xf32> to vector<8x8x128xf32>
    %c0_11 = arith.constant 0 : index
    %c0_12 = arith.constant 0 : index
    %c0_13 = arith.constant 0 : index
    %12 = vector.load %arg11[%c0_11, %c0_12, %c0_13] : memref<8x8x128xf32, #tpu.memory_space<vmem>>, vector<8x8x128xf32>
    tpu.vector_store %arg11[%c0_11, %c0_12, %c0_13], %11 {strides = array<i32>} : memref<8x8x128xf32, #tpu.memory_space<vmem>>, vector<8x8x128xf32>,
    %c0_i32 = arith.constant 0 : i32
    %13 = arith.index_cast %c0_i32 : i32 to index
    %c0_14 = arith.constant 0 : index
    %c0_15 = arith.constant 0 : index
    %14 = vector.load %arg11[%13, %c0_14, %c0_15] : memref<8x8x128xf32, #tpu.memory_space<vmem>>, vector<1x8x128xf32>
    %15 = vector.shape_cast %14 : vector<1x8x128xf32> to vector<8x128xf32>
    %c0_16 = arith.constant 0 : index
    %c0_17 = arith.constant 0 : index
    %16 = vector.load %arg12[%c0_16, %c0_17] : memref<8x128xf32, #tpu.memory_space<vmem>>, vector<8x128xf32>
    %17 = arith.truncf %16 : vector<8x128xf32> to vector<8x128xbf16>
    %cst_18 = arith.constant dense<0.000000e+00> : vector<8x128xf32>
    %18 = tpu.matmul %17, %2, %cst_18 {dimension_numbers = #tpu.dot_dimension_numbers<[1], [0], [0], [1], [0, 0, 1, 1], [], []>} : vector<8x128xbf16>, vector<128x128xbf16>, vector<8x128xf32> -> vector<8x128xf32>
    %19 = arith.addf %15, %18 : vector<8x128xf32>
    %20 = math.tanh %19 : vector<8x128xf32>
    %c0_19 = arith.constant 0 : index
    %c0_20 = arith.constant 0 : index
    %21 = vector.load %arg12[%c0_19, %c0_20] : memref<8x128xf32, #tpu.memory_space<vmem>>, vector<8x128xf32>
    tpu.vector_store %arg12[%c0_19, %c0_20], %20 {strides = array<i32>} : memref<8x128xf32, #tpu.memory_space<vmem>>, vector<8x128xf32>,
    %22 = arith.index_cast %c0_i32 : i32 to index
    %c0_21 = arith.constant 0 : index
    %c0_22 = arith.constant 0 : index
    %23 = vector.load %arg11[%22, %c0_21, %c0_22] : memref<8x8x128xf32, #tpu.memory_space<vmem>>, vector<1x8x128xf32>
    %24 = vector.shape_cast %23 : vector<1x8x128xf32> to vector<8x128xf32>
    %25 = vector.shape_cast %20 : vector<8x128xf32> to vector<1x8x128xf32>
    tpu.vector_store %arg11[%22, %c0_21, %c0_22], %25 {strides = array<i32>} : memref<8x8x128xf32, #tpu.memory_space<vmem>>, vector<1x8x128xf32>,
    %c1_i32 = arith.constant 1 : i32
    %26 = arith.index_cast %c1_i32 : i32 to index
    %c0_23 = arith.constant 0 : index
    %c0_24 = arith.constant 0 : index
    %27 = vector.load %arg11[%26, %c0_23, %c0_24] : memref<8x8x128xf32, #tpu.memory_space<vmem>>, vector<1x8x128xf32>
    %28 = vector.shape_cast %27 : vector<1x8x128xf32> to vector<8x128xf32>
    %c0_25 = arith.constant 0 : index
    %c0_26 = arith.constant 0 : index
    %29 = vector.load %arg12[%c0_25, %c0_26] : memref<8x128xf32, #tpu.memory_space<vmem>>, vector<8x128xf32>
    %30 = arith.truncf %29 : vector<8x128xf32> to vector<8x128xbf16>
    %cst_27 = arith.constant dense<0.000000e+00> : vector<8x128xf32>
    %31 = tpu.matmul %30, %2, %cst_27 {dimension_numbers = #tpu.dot_dimension_numbers<[1], [0], [0], [1], [0, 0, 1, 1], [], []>} : vector<8x128xbf16>, vector<128x128xbf16>, vector<8x128xf32> -> vector<8x128xf32>
    %32 = arith.addf %28, %31 : vector<8x128xf32>
    %33 = math.tanh %32 : vector<8x128xf32>
    %c0_28 = arith.constant 0 : index
    %c0_29 = arith.constant 0 : index
    %34 = vector.load %arg12[%c0_28, %c0_29] : memref<8x128xf32, #tpu.memory_space<vmem>>, vector<8x128xf32>
    tpu.vector_store %arg12[%c0_28, %c0_29], %33 {strides = array<i32>} : memref<8x128xf32, #tpu.memory_space<vmem>>, vector<8x128xf32>,
    %35 = arith.index_cast %c1_i32 : i32 to index
    %c0_30 = arith.constant 0 : index
    %c0_31 = arith.constant 0 : index
    %36 = vector.load %arg11[%35, %c0_30, %c0_31] : memref<8x8x128xf32, #tpu.memory_space<vmem>>, vector<1x8x128xf32>
    %37 = vector.shape_cast %36 : vector<1x8x128xf32> to vector<8x128xf32>
    %38 = vector.shape_cast %33 : vector<8x128xf32> to vector<1x8x128xf32>
    tpu.vector_store %arg11[%35, %c0_30, %c0_31], %38 {strides = array<i32>} : memref<8x8x128xf32, #tpu.memory_space<vmem>>, vector<1x8x128xf32>,
    %c2_i32 = arith.constant 2 : i32
    %39 = arith.index_cast %c2_i32 : i32 to index
    %c0_32 = arith.constant 0 : index
    %c0_33 = arith.constant 0 : index
    %40 = vector.load %arg11[%39, %c0_32, %c0_33] : memref<8x8x128xf32, #tpu.memory_space<vmem>>, vector<1x8x128xf32>
    %41 = vector.shape_cast %40 : vector<1x8x128xf32> to vector<8x128xf32>
    %c0_34 = arith.constant 0 : index
    %c0_35 = arith.constant 0 : index
    %42 = vector.load %arg12[%c0_34, %c0_35] : memref<8x128xf32, #tpu.memory_space<vmem>>, vector<8x128xf32>
    %43 = arith.truncf %42 : vector<8x128xf32> to vector<8x128xbf16>
    %cst_36 = arith.constant dense<0.000000e+00> : vector<8x128xf32>
    %44 = tpu.matmul %43, %2, %cst_36 {dimension_numbers = #tpu.dot_dimension_numbers<[1], [0], [0], [1], [0, 0, 1, 1], [], []>} : vector<8x128xbf16>, vector<128x128xbf16>, vector<8x128xf32> -> vector<8x128xf32>
    %45 = arith.addf %41, %44 : vector<8x128xf32>
    %46 = math.tanh %45 : vector<8x128xf32>
    %c0_37 = arith.constant 0 : index
    %c0_38 = arith.constant 0 : index
    %47 = vector.load %arg12[%c0_37, %c0_38] : memref<8x128xf32, #tpu.memory_space<vmem>>, vector<8x128xf32>
    tpu.vector_store %arg12[%c0_37, %c0_38], %46 {strides = array<i32>} : memref<8x128xf32, #tpu.memory_space<vmem>>, vector<8x128xf32>,
    %48 = arith.index_cast %c2_i32 : i32 to index
    %c0_39 = arith.constant 0 : index
    %c0_40 = arith.constant 0 : index
    %49 = vector.load %arg11[%48, %c0_39, %c0_40] : memref<8x8x128xf32, #tpu.memory_space<vmem>>, vector<1x8x128xf32>
    %50 = vector.shape_cast %49 : vector<1x8x128xf32> to vector<8x128xf32>
    %51 = vector.shape_cast %46 : vector<8x128xf32> to vector<1x8x128xf32>
    tpu.vector_store %arg11[%48, %c0_39, %c0_40], %51 {strides = array<i32>} : memref<8x8x128xf32, #tpu.memory_space<vmem>>, vector<1x8x128xf32>,
    %c3_i32 = arith.constant 3 : i32
    %52 = arith.index_cast %c3_i32 : i32 to index
    %c0_41 = arith.constant 0 : index
    %c0_42 = arith.constant 0 : index
    %53 = vector.load %arg11[%52, %c0_41, %c0_42] : memref<8x8x128xf32, #tpu.memory_space<vmem>>, vector<1x8x128xf32>
    %54 = vector.shape_cast %53 : vector<1x8x128xf32> to vector<8x128xf32>
    %c0_43 = arith.constant 0 : index
    %c0_44 = arith.constant 0 : index
    %55 = vector.load %arg12[%c0_43, %c0_44] : memref<8x128xf32, #tpu.memory_space<vmem>>, vector<8x128xf32>
    %56 = arith.truncf %55 : vector<8x128xf32> to vector<8x128xbf16>
    %cst_45 = arith.constant dense<0.000000e+00> : vector<8x128xf32>
    %57 = tpu.matmul %56, %2, %cst_45 {dimension_numbers = #tpu.dot_dimension_numbers<[1], [0], [0], [1], [0, 0, 1, 1], [], []>} : vector<8x128xbf16>, vector<128x128xbf16>, vector<8x128xf32> -> vector<8x128xf32>
    %58 = arith.addf %54, %57 : vector<8x128xf32>
    %59 = math.tanh %58 : vector<8x128xf32>
    %c0_46 = arith.constant 0 : index
    %c0_47 = arith.constant 0 : index
    %60 = vector.load %arg12[%c0_46, %c0_47] : memref<8x128xf32, #tpu.memory_space<vmem>>, vector<8x128xf32>
    tpu.vector_store %arg12[%c0_46, %c0_47], %59 {strides = array<i32>} : memref<8x128xf32, #tpu.memory_space<vmem>>, vector<8x128xf32>,
    %61 = arith.index_cast %c3_i32 : i32 to index
    %c0_48 = arith.constant 0 : index
    %c0_49 = arith.constant 0 : index
    %62 = vector.load %arg11[%61, %c0_48, %c0_49] : memref<8x8x128xf32, #tpu.memory_space<vmem>>, vector<1x8x128xf32>
    %63 = vector.shape_cast %62 : vector<1x8x128xf32> to vector<8x128xf32>
    %64 = vector.shape_cast %59 : vector<8x128xf32> to vector<1x8x128xf32>
    tpu.vector_store %arg11[%61, %c0_48, %c0_49], %64 {strides = array<i32>} : memref<8x8x128xf32, #tpu.memory_space<vmem>>, vector<1x8x128xf32>,
    %c4_i32 = arith.constant 4 : i32
    %65 = arith.index_cast %c4_i32 : i32 to index
    %c0_50 = arith.constant 0 : index
    %c0_51 = arith.constant 0 : index
    %66 = vector.load %arg11[%65, %c0_50, %c0_51] : memref<8x8x128xf32, #tpu.memory_space<vmem>>, vector<1x8x128xf32>
    %67 = vector.shape_cast %66 : vector<1x8x128xf32> to vector<8x128xf32>
    %c0_52 = arith.constant 0 : index
    %c0_53 = arith.constant 0 : index
    %68 = vector.load %arg12[%c0_52, %c0_53] : memref<8x128xf32, #tpu.memory_space<vmem>>, vector<8x128xf32>
    %69 = arith.truncf %68 : vector<8x128xf32> to vector<8x128xbf16>
    %cst_54 = arith.constant dense<0.000000e+00> : vector<8x128xf32>
    %70 = tpu.matmul %69, %2, %cst_54 {dimension_numbers = #tpu.dot_dimension_numbers<[1], [0], [0], [1], [0, 0, 1, 1], [], []>} : vector<8x128xbf16>, vector<128x128xbf16>, vector<8x128xf32> -> vector<8x128xf32>
    %71 = arith.addf %67, %70 : vector<8x128xf32>
    %72 = math.tanh %71 : vector<8x128xf32>
    %c0_55 = arith.constant 0 : index
    %c0_56 = arith.constant 0 : index
    %73 = vector.load %arg12[%c0_55, %c0_56] : memref<8x128xf32, #tpu.memory_space<vmem>>, vector<8x128xf32>
    tpu.vector_store %arg12[%c0_55, %c0_56], %72 {strides = array<i32>} : memref<8x128xf32, #tpu.memory_space<vmem>>, vector<8x128xf32>,
    %74 = arith.index_cast %c4_i32 : i32 to index
    %c0_57 = arith.constant 0 : index
    %c0_58 = arith.constant 0 : index
    %75 = vector.load %arg11[%74, %c0_57, %c0_58] : memref<8x8x128xf32, #tpu.memory_space<vmem>>, vector<1x8x128xf32>
    %76 = vector.shape_cast %75 : vector<1x8x128xf32> to vector<8x128xf32>
    %77 = vector.shape_cast %72 : vector<8x128xf32> to vector<1x8x128xf32>
    tpu.vector_store %arg11[%74, %c0_57, %c0_58], %77 {strides = array<i32>} : memref<8x8x128xf32, #tpu.memory_space<vmem>>, vector<1x8x128xf32>,
    %c5_i32 = arith.constant 5 : i32
    %78 = arith.index_cast %c5_i32 : i32 to index
    %c0_59 = arith.constant 0 : index
    %c0_60 = arith.constant 0 : index
    %79 = vector.load %arg11[%78, %c0_59, %c0_60] : memref<8x8x128xf32, #tpu.memory_space<vmem>>, vector<1x8x128xf32>
    %80 = vector.shape_cast %79 : vector<1x8x128xf32> to vector<8x128xf32>
    %c0_61 = arith.constant 0 : index
    %c0_62 = arith.constant 0 : index
    %81 = vector.load %arg12[%c0_61, %c0_62] : memref<8x128xf32, #tpu.memory_space<vmem>>, vector<8x128xf32>
    %82 = arith.truncf %81 : vector<8x128xf32> to vector<8x128xbf16>
    %cst_63 = arith.constant dense<0.000000e+00> : vector<8x128xf32>
    %83 = tpu.matmul %82, %2, %cst_63 {dimension_numbers = #tpu.dot_dimension_numbers<[1], [0], [0], [1], [0, 0, 1, 1], [], []>} : vector<8x128xbf16>, vector<128x128xbf16>, vector<8x128xf32> -> vector<8x128xf32>
    %84 = arith.addf %80, %83 : vector<8x128xf32>
    %85 = math.tanh %84 : vector<8x128xf32>
    %c0_64 = arith.constant 0 : index
    %c0_65 = arith.constant 0 : index
    %86 = vector.load %arg12[%c0_64, %c0_65] : memref<8x128xf32, #tpu.memory_space<vmem>>, vector<8x128xf32>
    tpu.vector_store %arg12[%c0_64, %c0_65], %85 {strides = array<i32>} : memref<8x128xf32, #tpu.memory_space<vmem>>, vector<8x128xf32>,
    %87 = arith.index_cast %c5_i32 : i32 to index
    %c0_66 = arith.constant 0 : index
    %c0_67 = arith.constant 0 : index
    %88 = vector.load %arg11[%87, %c0_66, %c0_67] : memref<8x8x128xf32, #tpu.memory_space<vmem>>, vector<1x8x128xf32>
    %89 = vector.shape_cast %88 : vector<1x8x128xf32> to vector<8x128xf32>
    %90 = vector.shape_cast %85 : vector<8x128xf32> to vector<1x8x128xf32>
    tpu.vector_store %arg11[%87, %c0_66, %c0_67], %90 {strides = array<i32>} : memref<8x8x128xf32, #tpu.memory_space<vmem>>, vector<1x8x128xf32>,
    %c6_i32 = arith.constant 6 : i32
    %91 = arith.index_cast %c6_i32 : i32 to index
    %c0_68 = arith.constant 0 : index
    %c0_69 = arith.constant 0 : index
    %92 = vector.load %arg11[%91, %c0_68, %c0_69] : memref<8x8x128xf32, #tpu.memory_space<vmem>>, vector<1x8x128xf32>
    %93 = vector.shape_cast %92 : vector<1x8x128xf32> to vector<8x128xf32>
    %c0_70 = arith.constant 0 : index
    %c0_71 = arith.constant 0 : index
    %94 = vector.load %arg12[%c0_70, %c0_71] : memref<8x128xf32, #tpu.memory_space<vmem>>, vector<8x128xf32>
    %95 = arith.truncf %94 : vector<8x128xf32> to vector<8x128xbf16>
    %cst_72 = arith.constant dense<0.000000e+00> : vector<8x128xf32>
    %96 = tpu.matmul %95, %2, %cst_72 {dimension_numbers = #tpu.dot_dimension_numbers<[1], [0], [0], [1], [0, 0, 1, 1], [], []>} : vector<8x128xbf16>, vector<128x128xbf16>, vector<8x128xf32> -> vector<8x128xf32>
    %97 = arith.addf %93, %96 : vector<8x128xf32>
    %98 = math.tanh %97 : vector<8x128xf32>
    %c0_73 = arith.constant 0 : index
    %c0_74 = arith.constant 0 : index
    %99 = vector.load %arg12[%c0_73, %c0_74] : memref<8x128xf32, #tpu.memory_space<vmem>>, vector<8x128xf32>
    tpu.vector_store %arg12[%c0_73, %c0_74], %98 {strides = array<i32>} : memref<8x128xf32, #tpu.memory_space<vmem>>, vector<8x128xf32>,
    %100 = arith.index_cast %c6_i32 : i32 to index
    %c0_75 = arith.constant 0 : index
    %c0_76 = arith.constant 0 : index
    %101 = vector.load %arg11[%100, %c0_75, %c0_76] : memref<8x8x128xf32, #tpu.memory_space<vmem>>, vector<1x8x128xf32>
    %102 = vector.shape_cast %101 : vector<1x8x128xf32> to vector<8x128xf32>
    %103 = vector.shape_cast %98 : vector<8x128xf32> to vector<1x8x128xf32>
    tpu.vector_store %arg11[%100, %c0_75, %c0_76], %103 {strides = array<i32>} : memref<8x8x128xf32, #tpu.memory_space<vmem>>, vector<1x8x128xf32>,
    %c7_i32 = arith.constant 7 : i32
    %104 = arith.index_cast %c7_i32 : i32 to index
    %c0_77 = arith.constant 0 : index
    %c0_78 = arith.constant 0 : index
    %105 = vector.load %arg11[%104, %c0_77, %c0_78] : memref<8x8x128xf32, #tpu.memory_space<vmem>>, vector<1x8x128xf32>
    %106 = vector.shape_cast %105 : vector<1x8x128xf32> to vector<8x128xf32>
    %c0_79 = arith.constant 0 : index
    %c0_80 = arith.constant 0 : index
    %107 = vector.load %arg12[%c0_79, %c0_80] : memref<8x128xf32, #tpu.memory_space<vmem>>, vector<8x128xf32>
    %108 = arith.truncf %107 : vector<8x128xf32> to vector<8x128xbf16>
    %cst_81 = arith.constant dense<0.000000e+00> : vector<8x128xf32>
    %109 = tpu.matmul %108, %2, %cst_81 {dimension_numbers = #tpu.dot_dimension_numbers<[1], [0], [0], [1], [0, 0, 1, 1], [], []>} : vector<8x128xbf16>, vector<128x128xbf16>, vector<8x128xf32> -> vector<8x128xf32>
    %110 = arith.addf %106, %109 : vector<8x128xf32>
    %111 = math.tanh %110 : vector<8x128xf32>
    %c0_82 = arith.constant 0 : index
    %c0_83 = arith.constant 0 : index
    %112 = vector.load %arg12[%c0_82, %c0_83] : memref<8x128xf32, #tpu.memory_space<vmem>>, vector<8x128xf32>
    tpu.vector_store %arg12[%c0_82, %c0_83], %111 {strides = array<i32>} : memref<8x128xf32, #tpu.memory_space<vmem>>, vector<8x128xf32>,
    %113 = arith.index_cast %c7_i32 : i32 to index
    %c0_84 = arith.constant 0 : index
    %c0_85 = arith.constant 0 : index
    %114 = vector.load %arg11[%113, %c0_84, %c0_85] : memref<8x8x128xf32, #tpu.memory_space<vmem>>, vector<1x8x128xf32>
    %115 = vector.shape_cast %114 : vector<1x8x128xf32> to vector<8x128xf32>
    %116 = vector.shape_cast %111 : vector<8x128xf32> to vector<1x8x128xf32>
    tpu.vector_store %arg11[%113, %c0_84, %c0_85], %116 {strides = array<i32>} : memref<8x8x128xf32, #tpu.memory_space<vmem>>, vector<1x8x128xf32>,
    %c8_i32 = arith.constant 8 : i32
    %cst_86 = arith.constant 0.000000e+00 : f32
    %117 = vector.broadcast %cst_86 : f32 to vector<8x128xf32>
    %c0_87 = arith.constant 0 : index
    %c0_88 = arith.constant 0 : index
    %118 = vector.load %arg12[%c0_87, %c0_88] : memref<8x128xf32, #tpu.memory_space<vmem>>, vector<8x128xf32>
    tpu.vector_store %arg12[%c0_87, %c0_88], %117 {strides = array<i32>} : memref<8x128xf32, #tpu.memory_space<vmem>>, vector<8x128xf32>,
    %c0_89 = arith.constant 0 : index
    %c0_90 = arith.constant 0 : index
    %119 = vector.load %arg6[%c0_89, %c0_90] : memref<128x128xbf16, #tpu.memory_space<vmem>>, vector<128x128xbf16>
    %c0_91 = arith.constant 0 : index
    %c0_92 = arith.constant 0 : index
    %c0_93 = arith.constant 0 : index
    %120 = vector.load %arg11[%c0_91, %c0_92, %c0_93] : memref<8x8x128xf32, #tpu.memory_space<vmem>>, vector<8x8x128xf32>
    %121 = vector.shape_cast %120 : vector<8x8x128xf32> to vector<64x128xf32>
    %122 = arith.truncf %121 : vector<64x128xf32> to vector<64x128xbf16>
    %c0_94 = arith.constant 0 : index
    %c0_95 = arith.constant 0 : index
    %123 = vector.load %arg5[%c0_94, %c0_95] : memref<128x128xbf16, #tpu.memory_space<vmem>>, vector<128x128xbf16>
    %cst_96 = arith.constant dense<0.000000e+00> : vector<64x128xf32>
    %124 = tpu.matmul %122, %123, %cst_96 {dimension_numbers = #tpu.dot_dimension_numbers<[1], [0], [0], [1], [0, 0, 1, 1], [], []>} : vector<64x128xbf16>, vector<128x128xbf16>, vector<64x128xf32> -> vector<64x128xf32>
    %c0_97 = arith.constant 0 : index
    %c0_98 = arith.constant 0 : index
    %125 = vector.load %arg7[%c0_97, %c0_98] : memref<1x128xf32, #tpu.memory_space<vmem>>, vector<1x128xf32>
    %126 = vector.broadcast %125 : vector<1x128xf32> to vector<64x128xf32>
    %127 = arith.addf %124, %126 : vector<64x128xf32>
    %128 = vector.shape_cast %127 : vector<64x128xf32> to vector<8x8x128xf32>
    %c0_99 = arith.constant 0 : index
    %c0_100 = arith.constant 0 : index
    %c0_101 = arith.constant 0 : index
    %129 = vector.load %arg11[%c0_99, %c0_100, %c0_101] : memref<8x8x128xf32, #tpu.memory_space<vmem>>, vector<8x8x128xf32>
    tpu.vector_store %arg11[%c0_99, %c0_100, %c0_101], %128 {strides = array<i32>} : memref<8x8x128xf32, #tpu.memory_space<vmem>>, vector<8x8x128xf32>,
    %c0_i32_102 = arith.constant 0 : i32
    %130 = arith.index_cast %c0_i32_102 : i32 to index
    %c0_103 = arith.constant 0 : index
    %c0_104 = arith.constant 0 : index
    %131 = vector.load %arg11[%130, %c0_103, %c0_104] : memref<8x8x128xf32, #tpu.memory_space<vmem>>, vector<1x8x128xf32>
    %132 = vector.shape_cast %131 : vector<1x8x128xf32> to vector<8x128xf32>
    %c0_105 = arith.constant 0 : index
    %c0_106 = arith.constant 0 : index
    %133 = vector.load %arg12[%c0_105, %c0_106] : memref<8x128xf32, #tpu.memory_space<vmem>>, vector<8x128xf32>
    %134 = arith.truncf %133 : vector<8x128xf32> to vector<8x128xbf16>
    %cst_107 = arith.constant dense<0.000000e+00> : vector<8x128xf32>
    %135 = tpu.matmul %134, %119, %cst_107 {dimension_numbers = #tpu.dot_dimension_numbers<[1], [0], [0], [1], [0, 0, 1, 1], [], []>} : vector<8x128xbf16>, vector<128x128xbf16>, vector<8x128xf32> -> vector<8x128xf32>
    %136 = arith.addf %132, %135 : vector<8x128xf32>
    %137 = math.tanh %136 : vector<8x128xf32>
    %c0_108 = arith.constant 0 : index
    %c0_109 = arith.constant 0 : index
    %138 = vector.load %arg12[%c0_108, %c0_109] : memref<8x128xf32, #tpu.memory_space<vmem>>, vector<8x128xf32>
    tpu.vector_store %arg12[%c0_108, %c0_109], %137 {strides = array<i32>} : memref<8x128xf32, #tpu.memory_space<vmem>>, vector<8x128xf32>,
    %c1_i32_110 = arith.constant 1 : i32
    %139 = arith.index_cast %c1_i32_110 : i32 to index
    %c0_111 = arith.constant 0 : index
    %c0_112 = arith.constant 0 : index
    %140 = vector.load %arg11[%139, %c0_111, %c0_112] : memref<8x8x128xf32, #tpu.memory_space<vmem>>, vector<1x8x128xf32>
    %141 = vector.shape_cast %140 : vector<1x8x128xf32> to vector<8x128xf32>
    %c0_113 = arith.constant 0 : index
    %c0_114 = arith.constant 0 : index
    %142 = vector.load %arg12[%c0_113, %c0_114] : memref<8x128xf32, #tpu.memory_space<vmem>>, vector<8x128xf32>
    %143 = arith.truncf %142 : vector<8x128xf32> to vector<8x128xbf16>
    %cst_115 = arith.constant dense<0.000000e+00> : vector<8x128xf32>
    %144 = tpu.matmul %143, %119, %cst_115 {dimension_numbers = #tpu.dot_dimension_numbers<[1], [0], [0], [1], [0, 0, 1, 1], [], []>} : vector<8x128xbf16>, vector<128x128xbf16>, vector<8x128xf32> -> vector<8x128xf32>
    %145 = arith.addf %141, %144 : vector<8x128xf32>
    %146 = math.tanh %145 : vector<8x128xf32>
    %c0_116 = arith.constant 0 : index
    %c0_117 = arith.constant 0 : index
    %147 = vector.load %arg12[%c0_116, %c0_117] : memref<8x128xf32, #tpu.memory_space<vmem>>, vector<8x128xf32>
    tpu.vector_store %arg12[%c0_116, %c0_117], %146 {strides = array<i32>} : memref<8x128xf32, #tpu.memory_space<vmem>>, vector<8x128xf32>,
    %c2_i32_118 = arith.constant 2 : i32
    %148 = arith.index_cast %c2_i32_118 : i32 to index
    %c0_119 = arith.constant 0 : index
    %c0_120 = arith.constant 0 : index
    %149 = vector.load %arg11[%148, %c0_119, %c0_120] : memref<8x8x128xf32, #tpu.memory_space<vmem>>, vector<1x8x128xf32>
    %150 = vector.shape_cast %149 : vector<1x8x128xf32> to vector<8x128xf32>
    %c0_121 = arith.constant 0 : index
    %c0_122 = arith.constant 0 : index
    %151 = vector.load %arg12[%c0_121, %c0_122] : memref<8x128xf32, #tpu.memory_space<vmem>>, vector<8x128xf32>
    %152 = arith.truncf %151 : vector<8x128xf32> to vector<8x128xbf16>
    %cst_123 = arith.constant dense<0.000000e+00> : vector<8x128xf32>
    %153 = tpu.matmul %152, %119, %cst_123 {dimension_numbers = #tpu.dot_dimension_numbers<[1], [0], [0], [1], [0, 0, 1, 1], [], []>} : vector<8x128xbf16>, vector<128x128xbf16>, vector<8x128xf32> -> vector<8x128xf32>
    %154 = arith.addf %150, %153 : vector<8x128xf32>
    %155 = math.tanh %154 : vector<8x128xf32>
    %c0_124 = arith.constant 0 : index
    %c0_125 = arith.constant 0 : index
    %156 = vector.load %arg12[%c0_124, %c0_125] : memref<8x128xf32, #tpu.memory_space<vmem>>, vector<8x128xf32>
    tpu.vector_store %arg12[%c0_124, %c0_125], %155 {strides = array<i32>} : memref<8x128xf32, #tpu.memory_space<vmem>>, vector<8x128xf32>,
    %c3_i32_126 = arith.constant 3 : i32
    %157 = arith.index_cast %c3_i32_126 : i32 to index
    %c0_127 = arith.constant 0 : index
    %c0_128 = arith.constant 0 : index
    %158 = vector.load %arg11[%157, %c0_127, %c0_128] : memref<8x8x128xf32, #tpu.memory_space<vmem>>, vector<1x8x128xf32>
    %159 = vector.shape_cast %158 : vector<1x8x128xf32> to vector<8x128xf32>
    %c0_129 = arith.constant 0 : index
    %c0_130 = arith.constant 0 : index
    %160 = vector.load %arg12[%c0_129, %c0_130] : memref<8x128xf32, #tpu.memory_space<vmem>>, vector<8x128xf32>
    %161 = arith.truncf %160 : vector<8x128xf32> to vector<8x128xbf16>
    %cst_131 = arith.constant dense<0.000000e+00> : vector<8x128xf32>
    %162 = tpu.matmul %161, %119, %cst_131 {dimension_numbers = #tpu.dot_dimension_numbers<[1], [0], [0], [1], [0, 0, 1, 1], [], []>} : vector<8x128xbf16>, vector<128x128xbf16>, vector<8x128xf32> -> vector<8x128xf32>
    %163 = arith.addf %159, %162 : vector<8x128xf32>
    %164 = math.tanh %163 : vector<8x128xf32>
    %c0_132 = arith.constant 0 : index
    %c0_133 = arith.constant 0 : index
    %165 = vector.load %arg12[%c0_132, %c0_133] : memref<8x128xf32, #tpu.memory_space<vmem>>, vector<8x128xf32>
    tpu.vector_store %arg12[%c0_132, %c0_133], %164 {strides = array<i32>} : memref<8x128xf32, #tpu.memory_space<vmem>>, vector<8x128xf32>,
    %c4_i32_134 = arith.constant 4 : i32
    %166 = arith.index_cast %c4_i32_134 : i32 to index
    %c0_135 = arith.constant 0 : index
    %c0_136 = arith.constant 0 : index
    %167 = vector.load %arg11[%166, %c0_135, %c0_136] : memref<8x8x128xf32, #tpu.memory_space<vmem>>, vector<1x8x128xf32>
    %168 = vector.shape_cast %167 : vector<1x8x128xf32> to vector<8x128xf32>
    %c0_137 = arith.constant 0 : index
    %c0_138 = arith.constant 0 : index
    %169 = vector.load %arg12[%c0_137, %c0_138] : memref<8x128xf32, #tpu.memory_space<vmem>>, vector<8x128xf32>
    %170 = arith.truncf %169 : vector<8x128xf32> to vector<8x128xbf16>
    %cst_139 = arith.constant dense<0.000000e+00> : vector<8x128xf32>
    %171 = tpu.matmul %170, %119, %cst_139 {dimension_numbers = #tpu.dot_dimension_numbers<[1], [0], [0], [1], [0, 0, 1, 1], [], []>} : vector<8x128xbf16>, vector<128x128xbf16>, vector<8x128xf32> -> vector<8x128xf32>
    %172 = arith.addf %168, %171 : vector<8x128xf32>
    %173 = math.tanh %172 : vector<8x128xf32>
    %c0_140 = arith.constant 0 : index
    %c0_141 = arith.constant 0 : index
    %174 = vector.load %arg12[%c0_140, %c0_141] : memref<8x128xf32, #tpu.memory_space<vmem>>, vector<8x128xf32>
    tpu.vector_store %arg12[%c0_140, %c0_141], %173 {strides = array<i32>} : memref<8x128xf32, #tpu.memory_space<vmem>>, vector<8x128xf32>,
    %c5_i32_142 = arith.constant 5 : i32
    %175 = arith.index_cast %c5_i32_142 : i32 to index
    %c0_143 = arith.constant 0 : index
    %c0_144 = arith.constant 0 : index
    %176 = vector.load %arg11[%175, %c0_143, %c0_144] : memref<8x8x128xf32, #tpu.memory_space<vmem>>, vector<1x8x128xf32>
    %177 = vector.shape_cast %176 : vector<1x8x128xf32> to vector<8x128xf32>
    %c0_145 = arith.constant 0 : index
    %c0_146 = arith.constant 0 : index
    %178 = vector.load %arg12[%c0_145, %c0_146] : memref<8x128xf32, #tpu.memory_space<vmem>>, vector<8x128xf32>
    %179 = arith.truncf %178 : vector<8x128xf32> to vector<8x128xbf16>
    %cst_147 = arith.constant dense<0.000000e+00> : vector<8x128xf32>
    %180 = tpu.matmul %179, %119, %cst_147 {dimension_numbers = #tpu.dot_dimension_numbers<[1], [0], [0], [1], [0, 0, 1, 1], [], []>} : vector<8x128xbf16>, vector<128x128xbf16>, vector<8x128xf32> -> vector<8x128xf32>
    %181 = arith.addf %177, %180 : vector<8x128xf32>
    %182 = math.tanh %181 : vector<8x128xf32>
    %c0_148 = arith.constant 0 : index
    %c0_149 = arith.constant 0 : index
    %183 = vector.load %arg12[%c0_148, %c0_149] : memref<8x128xf32, #tpu.memory_space<vmem>>, vector<8x128xf32>
    tpu.vector_store %arg12[%c0_148, %c0_149], %182 {strides = array<i32>} : memref<8x128xf32, #tpu.memory_space<vmem>>, vector<8x128xf32>,
    %c6_i32_150 = arith.constant 6 : i32
    %184 = arith.index_cast %c6_i32_150 : i32 to index
    %c0_151 = arith.constant 0 : index
    %c0_152 = arith.constant 0 : index
    %185 = vector.load %arg11[%184, %c0_151, %c0_152] : memref<8x8x128xf32, #tpu.memory_space<vmem>>, vector<1x8x128xf32>
    %186 = vector.shape_cast %185 : vector<1x8x128xf32> to vector<8x128xf32>
    %c0_153 = arith.constant 0 : index
    %c0_154 = arith.constant 0 : index
    %187 = vector.load %arg12[%c0_153, %c0_154] : memref<8x128xf32, #tpu.memory_space<vmem>>, vector<8x128xf32>
    %188 = arith.truncf %187 : vector<8x128xf32> to vector<8x128xbf16>
    %cst_155 = arith.constant dense<0.000000e+00> : vector<8x128xf32>
    %189 = tpu.matmul %188, %119, %cst_155 {dimension_numbers = #tpu.dot_dimension_numbers<[1], [0], [0], [1], [0, 0, 1, 1], [], []>} : vector<8x128xbf16>, vector<128x128xbf16>, vector<8x128xf32> -> vector<8x128xf32>
    %190 = arith.addf %186, %189 : vector<8x128xf32>
    %191 = math.tanh %190 : vector<8x128xf32>
    %c0_156 = arith.constant 0 : index
    %c0_157 = arith.constant 0 : index
    %192 = vector.load %arg12[%c0_156, %c0_157] : memref<8x128xf32, #tpu.memory_space<vmem>>, vector<8x128xf32>
    tpu.vector_store %arg12[%c0_156, %c0_157], %191 {strides = array<i32>} : memref<8x128xf32, #tpu.memory_space<vmem>>, vector<8x128xf32>,
    %c7_i32_158 = arith.constant 7 : i32
    %193 = arith.index_cast %c7_i32_158 : i32 to index
    %c0_159 = arith.constant 0 : index
    %c0_160 = arith.constant 0 : index
    %194 = vector.load %arg11[%193, %c0_159, %c0_160] : memref<8x8x128xf32, #tpu.memory_space<vmem>>, vector<1x8x128xf32>
    %195 = vector.shape_cast %194 : vector<1x8x128xf32> to vector<8x128xf32>
    %c0_161 = arith.constant 0 : index
    %c0_162 = arith.constant 0 : index
    %196 = vector.load %arg12[%c0_161, %c0_162] : memref<8x128xf32, #tpu.memory_space<vmem>>, vector<8x128xf32>
    %197 = arith.truncf %196 : vector<8x128xf32> to vector<8x128xbf16>
    %cst_163 = arith.constant dense<0.000000e+00> : vector<8x128xf32>
    %198 = tpu.matmul %197, %119, %cst_163 {dimension_numbers = #tpu.dot_dimension_numbers<[1], [0], [0], [1], [0, 0, 1, 1], [], []>} : vector<8x128xbf16>, vector<128x128xbf16>, vector<8x128xf32> -> vector<8x128xf32>
    %199 = arith.addf %195, %198 : vector<8x128xf32>
    %200 = math.tanh %199 : vector<8x128xf32>
    %c0_164 = arith.constant 0 : index
    %c0_165 = arith.constant 0 : index
    %201 = vector.load %arg12[%c0_164, %c0_165] : memref<8x128xf32, #tpu.memory_space<vmem>>, vector<8x128xf32>
    tpu.vector_store %arg12[%c0_164, %c0_165], %200 {strides = array<i32>} : memref<8x128xf32, #tpu.memory_space<vmem>>, vector<8x128xf32>,
    %c8_i32_166 = arith.constant 8 : i32
    %c0_167 = arith.constant 0 : index
    %c0_168 = arith.constant 0 : index
    %202 = vector.load %arg12[%c0_167, %c0_168] : memref<8x128xf32, #tpu.memory_space<vmem>>, vector<8x128xf32>
    %203 = arith.truncf %202 : vector<8x128xf32> to vector<8x128xbf16>
    %c0_169 = arith.constant 0 : index
    %c0_170 = arith.constant 0 : index
    %204 = vector.load %arg8[%c0_169, %c0_170] : memref<128x128xbf16, #tpu.memory_space<vmem>>, vector<128x128xbf16>
    %cst_171 = arith.constant dense<0.000000e+00> : vector<8x128xf32>
    %205 = tpu.matmul %203, %204, %cst_171 {dimension_numbers = #tpu.dot_dimension_numbers<[1], [0], [0], [1], [0, 0, 1, 1], [], []>} : vector<8x128xbf16>, vector<128x128xbf16>, vector<8x128xf32> -> vector<8x128xf32>
    %c0_172 = arith.constant 0 : index
    %c0_173 = arith.constant 0 : index
    %206 = vector.load %arg9[%c0_172, %c0_173] : memref<1x128xf32, #tpu.memory_space<vmem>>, vector<1x128xf32>
    %207 = vector.broadcast %206 : vector<1x128xf32> to vector<8x128xf32>
    %208 = arith.addf %205, %207 : vector<8x128xf32>
    %c0_174 = arith.constant 0 : index
    %c0_175 = arith.constant 0 : index
    %209 = vector.load %arg10[%c0_174, %c0_175] : memref<8x128xf32, #tpu.memory_space<vmem>>, vector<8x128xf32>
    tpu.vector_store %arg10[%c0_174, %c0_175], %208 {strides = array<i32>} : memref<8x128xf32, #tpu.memory_space<vmem>>, vector<8x128xf32>,
    return
  }
  func.func @transform_0(%arg0: i32) -> (i32, i32, i32) {
    %c0_i32 = arith.constant 0 : i32
    %c0_i32_0 = arith.constant 0 : i32
    %c0_i32_1 = arith.constant 0 : i32
    return %c0_i32, %arg0, %c0_i32_0 : i32, i32, i32
  }
  func.func @transform_1(%arg0: i32) -> (i32, i32) {
    %c0_i32 = arith.constant 0 : i32
    %c0_i32_0 = arith.constant 0 : i32
    %c0_i32_1 = arith.constant 0 : i32
    return %c0_i32, %c0_i32_0 : i32, i32
  }
  func.func @transform_2(%arg0: i32) -> (i32, i32) {
    %c0_i32 = arith.constant 0 : i32
    %c0_i32_0 = arith.constant 0 : i32
    %c0_i32_1 = arith.constant 0 : i32
    return %c0_i32, %c0_i32_0 : i32, i32
  }
  func.func @transform_3(%arg0: i32) -> (i32, i32) {
    %c0_i32 = arith.constant 0 : i32
    %c0_i32_0 = arith.constant 0 : i32
    %c0_i32_1 = arith.constant 0 : i32
    return %c0_i32, %c0_i32_0 : i32, i32
  }
  func.func @transform_4(%arg0: i32) -> (i32, i32) {
    %c0_i32 = arith.constant 0 : i32
    %c0_i32_0 = arith.constant 0 : i32
    %c0_i32_1 = arith.constant 0 : i32
    return %c0_i32, %c0_i32_0 : i32, i32
  }
  func.func @transform_5(%arg0: i32) -> (i32, i32) {
    %c0_i32 = arith.constant 0 : i32
    %c0_i32_0 = arith.constant 0 : i32
    %c0_i32_1 = arith.constant 0 : i32
    return %c0_i32, %c0_i32_0 : i32, i32
  }
  func.func @transform_6(%arg0: i32) -> (i32, i32) {
    %c0_i32 = arith.constant 0 : i32
    %c0_i32_0 = arith.constant 0 : i32
    %c0_i32_1 = arith.constant 0 : i32
    return %c0_i32, %c0_i32_0 : i32, i32
  }
  func.func @transform_7(%arg0: i32) -> (i32, i32) {
    %c0_i32 = arith.constant 0 : i32
    %c0_i32_0 = arith.constant 0 : i32
    %c0_i32_1 = arith.constant 0 : i32
    return %c0_i32, %c0_i32_0 : i32, i32
  }
  func.func @transform_8(%arg0: i32) -> (i32, i32) {
    %c0_i32 = arith.constant 0 : i32
    %c0_i32_0 = arith.constant 0 : i32
    %c0_i32_1 = arith.constant 0 : i32
    return %c0_i32, %c0_i32_0 : i32, i32
  }
  func.func @transform_9(%arg0: i32) -> (i32, i32) {
    %c0_i32 = arith.constant 0 : i32
    %c0_i32_0 = arith.constant 0 : i32
    return %arg0, %c0_i32 : i32, i32
  }
}

</mosaic_0001>

<llo_original>
// kernel: tpu_custom_call.1
$region0: #{tpu_custom_call.1}
  #allocation0 [shape = 'u32[]', space=smem, size = 0x4, offset = 0x4, fixed_abs, tag = 'smem constant byte address 0x4 - core index']
  #allocation1 [shape = 'u32[144,128]{1,0:T(1,128)}', space=vmem, size = 0x12000, scoped, tag = 'internal scratch']
  #allocation2 [shape = 'f32[8,8,128]{2,1,0:T(8,128)}', space=vmem, size = 0x8000, scoped, tag = 'scratch operand']
  #allocation3 [shape = 'f32[8,128]{1,0:T(8,128)}', space=vmem, size = 0x1000, scoped, tag = 'scratch operand']
  %s0 = inlined_call_operand.hbm [shape: f32[8,8,128], index: 0, kind: input, shape index: {}]
  %s1 = inlined_call_operand.hbm [shape: bf16[128,128], index: 1, kind: input, shape index: {}]
  %s2 = inlined_call_operand.hbm [shape: bf16[128,128], index: 2, kind: input, shape index: {}]
  %s3 = inlined_call_operand.vmem [shape: f32[1,128], index: 3, kind: input, shape index: {}]
  %s4 = inlined_call_operand.hbm [shape: bf16[128,128], index: 4, kind: input, shape index: {}]
  %s5 = inlined_call_operand.hbm [shape: bf16[128,128], index: 5, kind: input, shape index: {}]
  %s6 = inlined_call_operand.vmem [shape: f32[1,128], index: 6, kind: input, shape index: {}]
  %s7 = inlined_call_operand.hbm [shape: bf16[128,128], index: 7, kind: input, shape index: {}]
  %s8 = inlined_call_operand.vmem [shape: f32[1,128], index: 8, kind: input, shape index: {}]
  %s9 = inlined_call_operand.hbm [shape: f32[8,128], index: 9, kind: output, shape index: {}]
  %s10 = sld [smem:[#allocation0]]
  $region70: #{tpu_custom_call.1} parent=0
    _
  %s12 = ssub.s32 1, %s10
  %s13 = scalar_select 0, %s12, %s10
  $region1: #{tpu_custom_call.1} parent=0
    #allocation4 [shape = 'u8[32768]{0}', space=vmem, size = 0x8000, scoped, tag = 'input window, operand 0, single buffered']
    #allocation5 [shape = 's32[1]{0}', space=sflag, size = 0x4, scoped, tag = 'scoped memory for tpu_custom_call.1']
    #allocation6 [shape = 's32[1]{0}', space=sflag, size = 0x4, scoped, tag = 'scoped memory for tpu_custom_call.1']
    #allocation7 [shape = 'u8[32768]{0}', space=vmem, size = 0x8000, scoped, tag = 'input window, operand 1, single buffered']
    #allocation8 [shape = 's32[1]{0}', space=sflag, size = 0x4, scoped, tag = 'scoped memory for tpu_custom_call.1']
    #allocation9 [shape = 'u8[32768]{0}', space=vmem, size = 0x8000, scoped, tag = 'input window, operand 2, single buffered']
    #allocation10 [shape = 'u8[32768]{0}', space=vmem, size = 0x8000, scoped, tag = 'input window, operand 4, single buffered']
    #allocation11 [shape = 's32[1]{0}', space=sflag, size = 0x4, scoped, tag = 'scoped memory for tpu_custom_call.1']
    #allocation12 [shape = 'u8[32768]{0}', space=vmem, size = 0x8000, scoped, tag = 'input window, operand 5, single buffered']
    #allocation13 [shape = 'u8[32768]{0}', space=vmem, size = 0x8000, scoped, tag = 'input window, operand 7, single buffered']
    #allocation14 [shape = 's32[1]{0}', space=sflag, size = 0x4, scoped, tag = 'scoped memory for tpu_custom_call.1']
    #allocation15 [shape = 'u8[4096]{0}', space=vmem, size = 0x1000, scoped, tag = 'output window, operand 0, single buffered']
    %14 = vsyncpa [#allocation5], 0
    %15 = vsyncpa [#allocation8], 0
    %16 = vsyncpa [#allocation11], 0
    %17 = vsyncpa [#allocation14], 0
    %18 = vsyncpa [#allocation6], 0
    // Predicated region
    $region2: #{tpu_custom_call.1} parent=1 // pred_check
      _
    $region3: #{tpu_custom_call.1} parent=1 // pred_check_branch
      %20 = sbr.rel (0) target = $region5
    $region4: #{tpu_custom_call.1} parent=1 // pred_region
      %s22 = ssub.s32 1024, 1024
      %23 = vsyncadd [#allocation5], %s22
      %s24 = sshll.u32 [#allocation4], 4
      %s25 = int_to_ptr.vmem [resolvable:$true] %s24
      %30 = dma.hbm_to_vmem [thread:$0]  %s0, 1024, %s25, [#allocation5], 128, 128, 8
    $region5: #{tpu_custom_call.1} parent=1 // pred_fallthru
      _
    // Predicated region
    $region6: #{tpu_custom_call.1} parent=1 // pred_check
      _
    $region7: #{tpu_custom_call.1} parent=1 // pred_check_branch
      %32 = sbr.rel (0) target = $region9
    $region8: #{tpu_custom_call.1} parent=1 // pred_region
      %s34 = ssub.s32 1024, 1024
      %35 = vsyncadd [#allocation8], %s34
      %s36 = sshll.u32 [#allocation7], 4
      %s37 = int_to_ptr.vmem [resolvable:$true] %s36
      %42 = dma.hbm_to_vmem [thread:$0]  %s1, 1024, %s37, [#allocation8], 64, 64, 4
    $region9: #{tpu_custom_call.1} parent=1 // pred_fallthru
      _
    // Predicated region
    $region10: #{tpu_custom_call.1} parent=1 // pred_check
      _
    $region11: #{tpu_custom_call.1} parent=1 // pred_check_branch
      %44 = sbr.rel (0) target = $region13
    $region12: #{tpu_custom_call.1} parent=1 // pred_region
      %s46 = ssub.s32 1024, 1024
      %47 = vsyncadd [#allocation8], %s46
      %s48 = sshll.u32 [#allocation9], 4
      %s49 = int_to_ptr.vmem [resolvable:$true] %s48
      %54 = dma.hbm_to_vmem [thread:$0]  %s2, 1024, %s49, [#allocation8], 64, 64, 4
    $region13: #{tpu_custom_call.1} parent=1 // pred_fallthru
      _
    // Predicated region
    $region14: #{tpu_custom_call.1} parent=1 // pred_check
      _
    $region15: #{tpu_custom_call.1} parent=1 // pred_check_branch
      %56 = sbr.rel (0) target = $region17
    $region16: #{tpu_custom_call.1} parent=1 // pred_region
      _
    $region17: #{tpu_custom_call.1} parent=1 // pred_fallthru
      _
    // Predicated region
    $region18: #{tpu_custom_call.1} parent=1 // pred_check
      _
    $region19: #{tpu_custom_call.1} parent=1 // pred_check_branch
      %58 = sbr.rel (0) target = $region21
    $region20: #{tpu_custom_call.1} parent=1 // pred_region
      %s60 = ssub.s32 1024, 1024
      %61 = vsyncadd [#allocation11], %s60
      %s62 = sshll.u32 [#allocation10], 4
      %s63 = int_to_ptr.vmem [resolvable:$true] %s62
      %68 = dma.hbm_to_vmem [thread:$0]  %s4, 1024, %s63, [#allocation11], 64, 64, 4
    $region21: #{tpu_custom_call.1} parent=1 // pred_fallthru
      _
    // Predicated region
    $region22: #{tpu_custom_call.1} parent=1 // pred_check
      _
    $region23: #{tpu_custom_call.1} parent=1 // pred_check_branch
      %70 = sbr.rel (0) target = $region25
    $region24: #{tpu_custom_call.1} parent=1 // pred_region
      %s72 = ssub.s32 1024, 1024
      %73 = vsyncadd [#allocation11], %s72
      %s74 = sshll.u32 [#allocation12], 4
      %s75 = int_to_ptr.vmem [resolvable:$true] %s74
      %80 = dma.hbm_to_vmem [thread:$0]  %s5, 1024, %s75, [#allocation11], 64, 64, 4
    $region25: #{tpu_custom_call.1} parent=1 // pred_fallthru
      _
    // Predicated region
    $region26: #{tpu_custom_call.1} parent=1 // pred_check
      _
    $region27: #{tpu_custom_call.1} parent=1 // pred_check_branch
      %82 = sbr.rel (0) target = $region29
    $region28: #{tpu_custom_call.1} parent=1 // pred_region
      _
    $region29: #{tpu_custom_call.1} parent=1 // pred_fallthru
      _
    // Predicated region
    $region30: #{tpu_custom_call.1} parent=1 // pred_check
      _
    $region31: #{tpu_custom_call.1} parent=1 // pred_check_branch
      %84 = sbr.rel (0) target = $region33
    $region32: #{tpu_custom_call.1} parent=1 // pred_region
      %s86 = ssub.s32 1024, 1024
      %87 = vsyncadd [#allocation14], %s86
      %s88 = sshll.u32 [#allocation13], 4
      %s89 = int_to_ptr.vmem [resolvable:$true] %s88
      %94 = dma.hbm_to_vmem [thread:$0]  %s7, 1024, %s89, [#allocation14], 64, 64, 4
    $region33: #{tpu_custom_call.1} parent=1 // pred_fallthru
      _
    // Predicated region
    $region34: #{tpu_custom_call.1} parent=1 // pred_check
      _
    $region35: #{tpu_custom_call.1} parent=1 // pred_check_branch
      %96 = sbr.rel (0) target = $region37
    $region36: #{tpu_custom_call.1} parent=1 // pred_region
      _
    $region37: #{tpu_custom_call.1} parent=1 // pred_fallthru
      _
    // Predicated region
    $region38: #{tpu_custom_call.1} parent=1 // pred_check
      _
    $region39: #{tpu_custom_call.1} parent=1 // pred_check_branch
      %98 = sbr.rel (0) target = $region41
    $region40: #{tpu_custom_call.1} parent=1 // pred_region
      %99 = dma.done [#allocation5], 1024
    $region41: #{tpu_custom_call.1} parent=1 // pred_fallthru
      _
    // Predicated region
    $region42: #{tpu_custom_call.1} parent=1 // pred_check
      _
    $region43: #{tpu_custom_call.1} parent=1 // pred_check_branch
      %101 = sbr.rel (0) target = $region45
    $region44: #{tpu_custom_call.1} parent=1 // pred_region
      %102 = dma.done [#allocation8], 1024
    $region45: #{tpu_custom_call.1} parent=1 // pred_fallthru
      _
    // Predicated region
    $region46: #{tpu_custom_call.1} parent=1 // pred_check
      _
    $region47: #{tpu_custom_call.1} parent=1 // pred_check_branch
      %104 = sbr.rel (0) target = $region49
    $region48: #{tpu_custom_call.1} parent=1 // pred_region
      %105 = dma.done [#allocation8], 1024
    $region49: #{tpu_custom_call.1} parent=1 // pred_fallthru
      _
    // Predicated region
    $region50: #{tpu_custom_call.1} parent=1 // pred_check
      _
    $region51: #{tpu_custom_call.1} parent=1 // pred_check_branch
      %107 = sbr.rel (0) target = $region53
    $region52: #{tpu_custom_call.1} parent=1 // pred_region
      %108 = dma.done [#allocation11], 1024
    $region53: #{tpu_custom_call.1} parent=1 // pred_fallthru
      _
    // Predicated region
    $region54: #{tpu_custom_call.1} parent=1 // pred_check
      _
    $region55: #{tpu_custom_call.1} parent=1 // pred_check_branch
      %110 = sbr.rel (0) target = $region57
    $region56: #{tpu_custom_call.1} parent=1 // pred_region
      %111 = dma.done [#allocation11], 1024
    $region57: #{tpu_custom_call.1} parent=1 // pred_fallthru
      _
    // Predicated region
    $region58: #{tpu_custom_call.1} parent=1 // pred_check
      _
    $region59: #{tpu_custom_call.1} parent=1 // pred_check_branch
      %113 = sbr.rel (0) target = $region61
    $region60: #{tpu_custom_call.1} parent=1 // pred_region
      %114 = dma.done [#allocation14], 1024
    $region61: #{tpu_custom_call.1} parent=1 // pred_fallthru
      _
    %116 = vst [vmem:[#allocation3] sm:$0xff] 0.0
    %v117 = vld [vmem:[#allocation9] sm:$0xf]
    %v118 = vld [vmem:[#allocation9 + $0x4] sm:$0xf]
    %v119 = vld [vmem:[#allocation9 + $0x8] sm:$0xf]
    %v120 = vld [vmem:[#allocation9 + $0xc] sm:$0xf]
    %v121 = vld [vmem:[#allocation9 + $0x10] sm:$0xf]
    %v122 = vld [vmem:[#allocation9 + $0x14] sm:$0xf]
    %v123 = vld [vmem:[#allocation9 + $0x18] sm:$0xf]
    %v124 = vld [vmem:[#allocation9 + $0x1c] sm:$0xf]
    %v125 = vld [vmem:[#allocation9 + $0x20] sm:$0xf]
    %v126 = vld [vmem:[#allocation9 + $0x24] sm:$0xf]
    %v127 = vld [vmem:[#allocation9 + $0x28] sm:$0xf]
    %v128 = vld [vmem:[#allocation9 + $0x2c] sm:$0xf]
    %v129 = vld [vmem:[#allocation9 + $0x30] sm:$0xf]
    %v130 = vld [vmem:[#allocation9 + $0x34] sm:$0xf]
    %v131 = vld [vmem:[#allocation9 + $0x38] sm:$0xf]
    %v132 = vld [vmem:[#allocation9 + $0x3c] sm:$0xf]
    %v133 = vld [vmem:[#allocation4] sm:$0xff]
    %v134 = vld [vmem:[#allocation4 + $0x8] sm:$0xff]
    %v135 = vld [vmem:[#allocation4 + $0x10] sm:$0xff]
    %v136 = vld [vmem:[#allocation4 + $0x18] sm:$0xff]
    %v137 = vld [vmem:[#allocation4 + $0x20] sm:$0xff]
    %v138 = vld [vmem:[#allocation4 + $0x28] sm:$0xff]
    %v139 = vld [vmem:[#allocation4 + $0x30] sm:$0xff]
    %v140 = vld [vmem:[#allocation4 + $0x38] sm:$0xff]
    %v141 = vpack.c.bf16 %v134, %v133
    %v142 = vpack.c.bf16 %v136, %v135
    %v143 = vpack.c.bf16 %v138, %v137
    %v144 = vpack.c.bf16 %v140, %v139
    %v145 = vld [vmem:[#allocation7] sm:$0xf]
    %v146 = vld [vmem:[#allocation7 + $0x4] sm:$0xf]
    %v147 = vld [vmem:[#allocation7 + $0x8] sm:$0xf]
    %v148 = vld [vmem:[#allocation7 + $0xc] sm:$0xf]
    %v149 = vld [vmem:[#allocation7 + $0x10] sm:$0xf]
    %v150 = vld [vmem:[#allocation7 + $0x14] sm:$0xf]
    %v151 = vld [vmem:[#allocation7 + $0x18] sm:$0xf]
    %v152 = vld [vmem:[#allocation7 + $0x1c] sm:$0xf]
    %v153 = vld [vmem:[#allocation7 + $0x20] sm:$0xf]
    %v154 = vld [vmem:[#allocation7 + $0x24] sm:$0xf]
    %v155 = vld [vmem:[#allocation7 + $0x28] sm:$0xf]
    %v156 = vld [vmem:[#allocation7 + $0x2c] sm:$0xf]
    %v157 = vld [vmem:[#allocation7 + $0x30] sm:$0xf]
    %v158 = vld [vmem:[#allocation7 + $0x34] sm:$0xf]
    %v159 = vld [vmem:[#allocation7 + $0x38] sm:$0xf]
    %v160 = vld [vmem:[#allocation7 + $0x3c] sm:$0xf]
    %v161 = vld [vmem:[%s3] sm:$0x1]
    %v163 = vlaneseq
    %v164 = vshrl.u32 %v163, 7
    %v165 = vsub.s32 0, %v164
    %v166 = vrot.slane %v161, %v165
    %v184 = vunpack.c.l.b16 %v145
    %v185 = vunpack.c.l.b16 %v146
    %v186 = vunpack.c.l.b16 %v147
    %v187 = vunpack.c.l.b16 %v148
    %v188 = vunpack.c.l.b16 %v149
    %v189 = vunpack.c.l.b16 %v150
    %v190 = vunpack.c.l.b16 %v151
    %v191 = vunpack.c.l.b16 %v152
    %v192 = vunpack.c.l.b16 %v153
    %v193 = vunpack.c.l.b16 %v154
    %v194 = vunpack.c.l.b16 %v155
    %v195 = vunpack.c.l.b16 %v156
    %v196 = vunpack.c.l.b16 %v157
    %v197 = vunpack.c.l.b16 %v158
    %v198 = vunpack.c.l.b16 %v159
    %v199 = vunpack.c.l.b16 %v160
    %v200 = vpack.c.b16 %v185, %v184
    %v201 = vpack.c.b16 %v187, %v186
    %v202 = vpack.c.b16 %v189, %v188
    %v203 = vpack.c.b16 %v191, %v190
    %v204 = vpack.c.b16 %v193, %v192
    %v205 = vpack.c.b16 %v195, %v194
    %v206 = vpack.c.b16 %v197, %v196
    %v207 = vpack.c.b16 %v199, %v198
    %216 = vmatprep.subr.bf16.mxu0 0
    %217 = vmatpush1.bf16.msra.mxu0 %v207
    %218 = vmatprep.subr.bf16.mxu0 0
    %219 = vmatpush1.bf16.msra.mxu0 %v206
    %220 = vmatprep.subr.bf16.mxu0 0
    %221 = vmatpush1.bf16.msra.mxu0 %v205
    %222 = vmatprep.subr.bf16.mxu0 0
    %223 = vmatpush1.bf16.msra.mxu0 %v204
    %224 = vmatprep.subr.bf16.mxu0 0
    %225 = vmatpush1.bf16.msra.mxu0 %v203
    %226 = vmatprep.subr.bf16.mxu0 0
    %227 = vmatpush1.bf16.msra.mxu0 %v202
    %228 = vmatprep.subr.bf16.mxu0 0
    %229 = vmatpush1.bf16.msra.mxu0 %v201
    %230 = vmatprep.subr.bf16.mxu0 0
    %231 = vmatpush1.bf16.msra.mxu0 %v200
    %232 = vmatprep.subr.bf16.mxu0 0
    %233 = vmatpush2.bf16.msra.mxu0 0
    %234 = vmatprep.subr.bf16.mxu0 0
    %235 = vmatpush2.bf16.msra.mxu0 0
    %236 = vmatprep.subr.bf16.mxu0 0
    %237 = vmatpush2.bf16.msra.mxu0 0
    %238 = vmatprep.subr.bf16.mxu0 0
    %239 = vmatpush2.bf16.msra.mxu0 0
    %240 = vmatprep.subr.bf16.mxu0 0
    %241 = vmatpush2.bf16.msra.mxu0 0
    %242 = vmatprep.subr.bf16.mxu0 0
    %243 = vmatpush2.bf16.msra.mxu0 0
    %244 = vmatprep.subr.bf16.mxu0 0
    %245 = vmatpush2.bf16.msra.mxu0 0
    %246 = vmatprep.subr.bf16.mxu0 0
    %247 = vmatpush2.bf16.msra.mxu0 0
    %248 = vmatprep.mubr.bf16.mxu0 0
    %249 = vmatmul.mubr.bf16.gmra.mxu0 %v141
    %v250 = vpop.f32.mrf.mxu0
    %v251 = vadd.f32 %v166, %v250
    %v252 = vpop.f32.mrf.mxu0
    %v253 = vpop.f32.mrf.mxu0
    %v254 = vadd.f32 %v166, %v253
    %v255 = vpop.f32.mrf.mxu0
    %256 = vmatprep.mubr.bf16.mxu0 0
    %257 = vmatmul.mubr.bf16.gmra.mxu0 %v142
    %v258 = vpop.f32.mrf.mxu0
    %v259 = vadd.f32 %v166, %v258
    %v260 = vpop.f32.mrf.mxu0
    %v261 = vpop.f32.mrf.mxu0
    %v262 = vadd.f32 %v166, %v261
    %v263 = vpop.f32.mrf.mxu0
    %264 = vmatprep.mubr.bf16.mxu0 0
    %265 = vmatmul.mubr.bf16.gmra.mxu0 %v143
    %v266 = vpop.f32.mrf.mxu0
    %v267 = vadd.f32 %v166, %v266
    %v268 = vpop.f32.mrf.mxu0
    %v269 = vpop.f32.mrf.mxu0
    %v270 = vadd.f32 %v166, %v269
    %v271 = vpop.f32.mrf.mxu0
    %272 = vmatprep.mubr.bf16.mxu0 0
    %273 = vmatmul.mubr.bf16.gmra.mxu0 %v144
    %v274 = vpop.f32.mrf.mxu0
    %v275 = vadd.f32 %v166, %v274
    %v276 = vpop.f32.mrf.mxu0
    %v277 = vpop.f32.mrf.mxu0
    %v278 = vadd.f32 %v166, %v277
    %v279 = vpop.f32.mrf.mxu0
    %280 = vdwg.mxu0
    %281 = vst [vmem:[#allocation2] sm:$0xff] %v251
    %282 = vst [vmem:[#allocation2 + $0x8] sm:$0xff] %v254
    %283 = vst [vmem:[#allocation2 + $0x10] sm:$0xff] %v259
    %284 = vst [vmem:[#allocation2 + $0x18] sm:$0xff] %v262
    %285 = vst [vmem:[#allocation2 + $0x20] sm:$0xff] %v267
    %286 = vst [vmem:[#allocation2 + $0x28] sm:$0xff] %v270
    %287 = vst [vmem:[#allocation2 + $0x30] sm:$0xff] %v275
    %288 = vst [vmem:[#allocation2 + $0x38] sm:$0xff] %v278
    %v289 = vld [vmem:[#allocation2] sm:$0xff]
    %v290 = vld [vmem:[#allocation3] sm:$0xff]
    %v291 = vpack.c.bf16 %v290, %v290
    %v308 = vunpack.c.l.b16 %v117
    %v309 = vunpack.c.l.b16 %v118
    %v310 = vunpack.c.l.b16 %v119
    %v311 = vunpack.c.l.b16 %v120
    %v312 = vunpack.c.l.b16 %v121
    %v313 = vunpack.c.l.b16 %v122
    %v314 = vunpack.c.l.b16 %v123
    %v315 = vunpack.c.l.b16 %v124
    %v316 = vunpack.c.l.b16 %v125
    %v317 = vunpack.c.l.b16 %v126
    %v318 = vunpack.c.l.b16 %v127
    %v319 = vunpack.c.l.b16 %v128
    %v320 = vunpack.c.l.b16 %v129
    %v321 = vunpack.c.l.b16 %v130
    %v322 = vunpack.c.l.b16 %v131
    %v323 = vunpack.c.l.b16 %v132
    %v324 = vpack.c.b16 %v309, %v308
    %v325 = vpack.c.b16 %v311, %v310
    %v326 = vpack.c.b16 %v313, %v312
    %v327 = vpack.c.b16 %v315, %v314
    %v328 = vpack.c.b16 %v317, %v316
    %v329 = vpack.c.b16 %v319, %v318
    %v330 = vpack.c.b16 %v321, %v320
    %v331 = vpack.c.b16 %v323, %v322
    %340 = vmatprep.subr.bf16.mxu0 0
    %341 = vmatpush1.bf16.msra.mxu0 %v331
    %342 = vmatprep.subr.bf16.mxu0 0
    %343 = vmatpush1.bf16.msra.mxu0 %v330
    %344 = vmatprep.subr.bf16.mxu0 0
    %345 = vmatpush1.bf16.msra.mxu0 %v329
    %346 = vmatprep.subr.bf16.mxu0 0
    %347 = vmatpush1.bf16.msra.mxu0 %v328
    %348 = vmatprep.subr.bf16.mxu0 0
    %349 = vmatpush1.bf16.msra.mxu0 %v327
    %350 = vmatprep.subr.bf16.mxu0 0
    %351 = vmatpush1.bf16.msra.mxu0 %v326
    %352 = vmatprep.subr.bf16.mxu0 0
    %353 = vmatpush1.bf16.msra.mxu0 %v325
    %354 = vmatprep.subr.bf16.mxu0 0
    %355 = vmatpush1.bf16.msra.mxu0 %v324
    %356 = vmatprep.subr.bf16.mxu0 0
    %357 = vmatpush2.bf16.msra.mxu0 0
    %358 = vmatprep.subr.bf16.mxu0 0
    %359 = vmatpush2.bf16.msra.mxu0 0
    %360 = vmatprep.subr.bf16.mxu0 0
    %361 = vmatpush2.bf16.msra.mxu0 0
    %362 = vmatprep.subr.bf16.mxu0 0
    %363 = vmatpush2.bf16.msra.mxu0 0
    %364 = vmatprep.subr.bf16.mxu0 0
    %365 = vmatpush2.bf16.msra.mxu0 0
    %366 = vmatprep.subr.bf16.mxu0 0
    %367 = vmatpush2.bf16.msra.mxu0 0
    %368 = vmatprep.subr.bf16.mxu0 0
    %369 = vmatpush2.bf16.msra.mxu0 0
    %370 = vmatprep.subr.bf16.mxu0 0
    %371 = vmatpush2.bf16.msra.mxu0 0
    %372 = vmatprep.mubr.bf16.mxu0 0
    %373 = vmatmul.mubr.bf16.gmra.mxu0 %v291
    %v374 = vpop.f32.mrf.mxu0
    %v375 = vadd.f32 0.0, %v374
    %v376 = vpop.f32.mrf.mxu0
    %v377 = vpop.f32.mrf.mxu0
    %v378 = vpop.f32.mrf.mxu0
    %379 = vdwg.mxu0
    %v380 = vadd.f32 %v289, %v375
    %v381 = vtanh.pop %v380
    %382 = vst [vmem:[#allocation3] sm:$0xff] %v381
    %383 = vst [vmem:[#allocation2] sm:$0xff] %v381
    %s384 = scalar_lea.vmem [#allocation2], 8
    %v385 = vld [vmem:[%s384] sm:$0xff]
    %v386 = vld [vmem:[#allocation3] sm:$0xff]
    %v387 = vpack.c.bf16 %v386, %v386
    %388 = vmatprep.subr.bf16.mxu0 0
    %389 = vmatpush1.bf16.msra.mxu0 %v331
    %390 = vmatprep.subr.bf16.mxu0 0
    %391 = vmatpush1.bf16.msra.mxu0 %v330
    %392 = vmatprep.subr.bf16.mxu0 0
    %393 = vmatpush1.bf16.msra.mxu0 %v329
    %394 = vmatprep.subr.bf16.mxu0 0
    %395 = vmatpush1.bf16.msra.mxu0 %v328
    %396 = vmatprep.subr.bf16.mxu0 0
    %397 = vmatpush1.bf16.msra.mxu0 %v327
    %398 = vmatprep.subr.bf16.mxu0 0
    %399 = vmatpush1.bf16.msra.mxu0 %v326
    %400 = vmatprep.subr.bf16.mxu0 0
    %401 = vmatpush1.bf16.msra.mxu0 %v325
    %402 = vmatprep.subr.bf16.mxu0 0
    %403 = vmatpush1.bf16.msra.mxu0 %v324
    %404 = vmatprep.subr.bf16.mxu0 0
    %405 = vmatpush2.bf16.msra.mxu0 0
    %406 = vmatprep.subr.bf16.mxu0 0
    %407 = vmatpush2.bf16.msra.mxu0 0
    %408 = vmatprep.subr.bf16.mxu0 0
    %409 = vmatpush2.bf16.msra.mxu0 0
    %410 = vmatprep.subr.bf16.mxu0 0
    %411 = vmatpush2.bf16.msra.mxu0 0
    %412 = vmatprep.subr.bf16.mxu0 0
    %413 = vmatpush2.bf16.msra.mxu0 0
    %414 = vmatprep.subr.bf16.mxu0 0
    %415 = vmatpush2.bf16.msra.mxu0 0
    %416 = vmatprep.subr.bf16.mxu0 0
    %417 = vmatpush2.bf16.msra.mxu0 0
    %418 = vmatprep.subr.bf16.mxu0 0
    %419 = vmatpush2.bf16.msra.mxu0 0
    %420 = vmatprep.mubr.bf16.mxu0 0
    %421 = vmatmul.mubr.bf16.gmra.mxu0 %v387
    %v422 = vpop.f32.mrf.mxu0
    %v423 = vadd.f32 0.0, %v422
    %v424 = vpop.f32.mrf.mxu0
    %v425 = vpop.f32.mrf.mxu0
    %v426 = vpop.f32.mrf.mxu0
    %427 = vdwg.mxu0
    %v428 = vadd.f32 %v385, %v423
    %v429 = vtanh.pop %v428
    %430 = vst [vmem:[#allocation3] sm:$0xff] %v429
    %431 = vst [vmem:[%s384] sm:$0xff] %v429
    %s432 = scalar_lea.vmem [#allocation2], 16
    %v433 = vld [vmem:[%s432] sm:$0xff]
    %v434 = vld [vmem:[#allocation3] sm:$0xff]
    %v435 = vpack.c.bf16 %v434, %v434
    %436 = vmatprep.subr.bf16.mxu0 0
    %437 = vmatpush1.bf16.msra.mxu0 %v331
    %438 = vmatprep.subr.bf16.mxu0 0
    %439 = vmatpush1.bf16.msra.mxu0 %v330
    %440 = vmatprep.subr.bf16.mxu0 0
    %441 = vmatpush1.bf16.msra.mxu0 %v329
    %442 = vmatprep.subr.bf16.mxu0 0
    %443 = vmatpush1.bf16.msra.mxu0 %v328
    %444 = vmatprep.subr.bf16.mxu0 0
    %445 = vmatpush1.bf16.msra.mxu0 %v327
    %446 = vmatprep.subr.bf16.mxu0 0
    %447 = vmatpush1.bf16.msra.mxu0 %v326
    %448 = vmatprep.subr.bf16.mxu0 0
    %449 = vmatpush1.bf16.msra.mxu0 %v325
    %450 = vmatprep.subr.bf16.mxu0 0
    %451 = vmatpush1.bf16.msra.mxu0 %v324
    %452 = vmatprep.subr.bf16.mxu0 0
    %453 = vmatpush2.bf16.msra.mxu0 0
    %454 = vmatprep.subr.bf16.mxu0 0
    %455 = vmatpush2.bf16.msra.mxu0 0
    %456 = vmatprep.subr.bf16.mxu0 0
    %457 = vmatpush2.bf16.msra.mxu0 0
    %458 = vmatprep.subr.bf16.mxu0 0
    %459 = vmatpush2.bf16.msra.mxu0 0
    %460 = vmatprep.subr.bf16.mxu0 0
    %461 = vmatpush2.bf16.msra.mxu0 0
    %462 = vmatprep.subr.bf16.mxu0 0
    %463 = vmatpush2.bf16.msra.mxu0 0
    %464 = vmatprep.subr.bf16.mxu0 0
    %465 = vmatpush2.bf16.msra.mxu0 0
    %466 = vmatprep.subr.bf16.mxu0 0
    %467 = vmatpush2.bf16.msra.mxu0 0
    %468 = vmatprep.mubr.bf16.mxu0 0
    %469 = vmatmul.mubr.bf16.gmra.mxu0 %v435
    %v470 = vpop.f32.mrf.mxu0
    %v471 = vadd.f32 0.0, %v470
    %v472 = vpop.f32.mrf.mxu0
    %v473 = vpop.f32.mrf.mxu0
    %v474 = vpop.f32.mrf.mxu0
    %475 = vdwg.mxu0
    %v476 = vadd.f32 %v433, %v471
    %v477 = vtanh.pop %v476
    %478 = vst [vmem:[#allocation3] sm:$0xff] %v477
    %479 = vst [vmem:[%s432] sm:$0xff] %v477
    %s480 = scalar_lea.vmem [#allocation2], 24
    %v481 = vld [vmem:[%s480] sm:$0xff]
    %v482 = vld [vmem:[#allocation3] sm:$0xff]
    %v483 = vpack.c.bf16 %v482, %v482
    %484 = vmatprep.subr.bf16.mxu0 0
    %485 = vmatpush1.bf16.msra.mxu0 %v331
    %486 = vmatprep.subr.bf16.mxu0 0
    %487 = vmatpush1.bf16.msra.mxu0 %v330
    %488 = vmatprep.subr.bf16.mxu0 0
    %489 = vmatpush1.bf16.msra.mxu0 %v329
    %490 = vmatprep.subr.bf16.mxu0 0
    %491 = vmatpush1.bf16.msra.mxu0 %v328
    %492 = vmatprep.subr.bf16.mxu0 0
    %493 = vmatpush1.bf16.msra.mxu0 %v327
    %494 = vmatprep.subr.bf16.mxu0 0
    %495 = vmatpush1.bf16.msra.mxu0 %v326
    %496 = vmatprep.subr.bf16.mxu0 0
    %497 = vmatpush1.bf16.msra.mxu0 %v325
    %498 = vmatprep.subr.bf16.mxu0 0
    %499 = vmatpush1.bf16.msra.mxu0 %v324
    %500 = vmatprep.subr.bf16.mxu0 0
    %501 = vmatpush2.bf16.msra.mxu0 0
    %502 = vmatprep.subr.bf16.mxu0 0
    %503 = vmatpush2.bf16.msra.mxu0 0
    %504 = vmatprep.subr.bf16.mxu0 0
    %505 = vmatpush2.bf16.msra.mxu0 0
    %506 = vmatprep.subr.bf16.mxu0 0
    %507 = vmatpush2.bf16.msra.mxu0 0
    %508 = vmatprep.subr.bf16.mxu0 0
    %509 = vmatpush2.bf16.msra.mxu0 0
    %510 = vmatprep.subr.bf16.mxu0 0
    %511 = vmatpush2.bf16.msra.mxu0 0
    %512 = vmatprep.subr.bf16.mxu0 0
    %513 = vmatpush2.bf16.msra.mxu0 0
    %514 = vmatprep.subr.bf16.mxu0 0
    %515 = vmatpush2.bf16.msra.mxu0 0
    %516 = vmatprep.mubr.bf16.mxu0 0
    %517 = vmatmul.mubr.bf16.gmra.mxu0 %v483
    %v518 = vpop.f32.mrf.mxu0
    %v519 = vadd.f32 0.0, %v518
    %v520 = vpop.f32.mrf.mxu0
    %v521 = vpop.f32.mrf.mxu0
    %v522 = vpop.f32.mrf.mxu0
    %523 = vdwg.mxu0
    %v524 = vadd.f32 %v481, %v519
    %v525 = vtanh.pop %v524
    %526 = vst [vmem:[#allocation3] sm:$0xff] %v525
    %527 = vst [vmem:[%s480] sm:$0xff] %v525
    %s528 = scalar_lea.vmem [#allocation2], 32
    %v529 = vld [vmem:[%s528] sm:$0xff]
    %v530 = vld [vmem:[#allocation3] sm:$0xff]
    %v531 = vpack.c.bf16 %v530, %v530
    %532 = vmatprep.subr.bf16.mxu0 0
    %533 = vmatpush1.bf16.msra.mxu0 %v331
    %534 = vmatprep.subr.bf16.mxu0 0
    %535 = vmatpush1.bf16.msra.mxu0 %v330
    %536 = vmatprep.subr.bf16.mxu0 0
    %537 = vmatpush1.bf16.msra.mxu0 %v329
    %538 = vmatprep.subr.bf16.mxu0 0
    %539 = vmatpush1.bf16.msra.mxu0 %v328
    %540 = vmatprep.subr.bf16.mxu0 0
    %541 = vmatpush1.bf16.msra.mxu0 %v327
    %542 = vmatprep.subr.bf16.mxu0 0
    %543 = vmatpush1.bf16.msra.mxu0 %v326
    %544 = vmatprep.subr.bf16.mxu0 0
    %545 = vmatpush1.bf16.msra.mxu0 %v325
    %546 = vmatprep.subr.bf16.mxu0 0
    %547 = vmatpush1.bf16.msra.mxu0 %v324
    %548 = vmatprep.subr.bf16.mxu0 0
    %549 = vmatpush2.bf16.msra.mxu0 0
    %550 = vmatprep.subr.bf16.mxu0 0
    %551 = vmatpush2.bf16.msra.mxu0 0
    %552 = vmatprep.subr.bf16.mxu0 0
    %553 = vmatpush2.bf16.msra.mxu0 0
    %554 = vmatprep.subr.bf16.mxu0 0
    %555 = vmatpush2.bf16.msra.mxu0 0
    %556 = vmatprep.subr.bf16.mxu0 0
    %557 = vmatpush2.bf16.msra.mxu0 0
    %558 = vmatprep.subr.bf16.mxu0 0
    %559 = vmatpush2.bf16.msra.mxu0 0
    %560 = vmatprep.subr.bf16.mxu0 0
    %561 = vmatpush2.bf16.msra.mxu0 0
    %562 = vmatprep.subr.bf16.mxu0 0
    %563 = vmatpush2.bf16.msra.mxu0 0
    %564 = vmatprep.mubr.bf16.mxu0 0
    %565 = vmatmul.mubr.bf16.gmra.mxu0 %v531
    %v566 = vpop.f32.mrf.mxu0
    %v567 = vadd.f32 0.0, %v566
    %v568 = vpop.f32.mrf.mxu0
    %v569 = vpop.f32.mrf.mxu0
    %v570 = vpop.f32.mrf.mxu0
    %571 = vdwg.mxu0
    %v572 = vadd.f32 %v529, %v567
    %v573 = vtanh.pop %v572
    %574 = vst [vmem:[#allocation3] sm:$0xff] %v573
    %575 = vst [vmem:[%s528] sm:$0xff] %v573
    %s576 = scalar_lea.vmem [#allocation2], 40
    %v577 = vld [vmem:[%s576] sm:$0xff]
    %v578 = vld [vmem:[#allocation3] sm:$0xff]
    %v579 = vpack.c.bf16 %v578, %v578
    %580 = vmatprep.subr.bf16.mxu0 0
    %581 = vmatpush1.bf16.msra.mxu0 %v331
    %582 = vmatprep.subr.bf16.mxu0 0
    %583 = vmatpush1.bf16.msra.mxu0 %v330
    %584 = vmatprep.subr.bf16.mxu0 0
    %585 = vmatpush1.bf16.msra.mxu0 %v329
    %586 = vmatprep.subr.bf16.mxu0 0
    %587 = vmatpush1.bf16.msra.mxu0 %v328
    %588 = vmatprep.subr.bf16.mxu0 0
    %589 = vmatpush1.bf16.msra.mxu0 %v327
    %590 = vmatprep.subr.bf16.mxu0 0
    %591 = vmatpush1.bf16.msra.mxu0 %v326
    %592 = vmatprep.subr.bf16.mxu0 0
    %593 = vmatpush1.bf16.msra.mxu0 %v325
    %594 = vmatprep.subr.bf16.mxu0 0
    %595 = vmatpush1.bf16.msra.mxu0 %v324
    %596 = vmatprep.subr.bf16.mxu0 0
    %597 = vmatpush2.bf16.msra.mxu0 0
    %598 = vmatprep.subr.bf16.mxu0 0
    %599 = vmatpush2.bf16.msra.mxu0 0
    %600 = vmatprep.subr.bf16.mxu0 0
    %601 = vmatpush2.bf16.msra.mxu0 0
    %602 = vmatprep.subr.bf16.mxu0 0
    %603 = vmatpush2.bf16.msra.mxu0 0
    %604 = vmatprep.subr.bf16.mxu0 0
    %605 = vmatpush2.bf16.msra.mxu0 0
    %606 = vmatprep.subr.bf16.mxu0 0
    %607 = vmatpush2.bf16.msra.mxu0 0
    %608 = vmatprep.subr.bf16.mxu0 0
    %609 = vmatpush2.bf16.msra.mxu0 0
    %610 = vmatprep.subr.bf16.mxu0 0
    %611 = vmatpush2.bf16.msra.mxu0 0
    %612 = vmatprep.mubr.bf16.mxu0 0
    %613 = vmatmul.mubr.bf16.gmra.mxu0 %v579
    %v614 = vpop.f32.mrf.mxu0
    %v615 = vadd.f32 0.0, %v614
    %v616 = vpop.f32.mrf.mxu0
    %v617 = vpop.f32.mrf.mxu0
    %v618 = vpop.f32.mrf.mxu0
    %619 = vdwg.mxu0
    %v620 = vadd.f32 %v577, %v615
    %v621 = vtanh.pop %v620
    %622 = vst [vmem:[#allocation3] sm:$0xff] %v621
    %623 = vst [vmem:[%s576] sm:$0xff] %v621
    %s624 = scalar_lea.vmem [#allocation2], 48
    %v625 = vld [vmem:[%s624] sm:$0xff]
    %v626 = vld [vmem:[#allocation3] sm:$0xff]
    %v627 = vpack.c.bf16 %v626, %v626
    %628 = vmatprep.subr.bf16.mxu0 0
    %629 = vmatpush1.bf16.msra.mxu0 %v331
    %630 = vmatprep.subr.bf16.mxu0 0
    %631 = vmatpush1.bf16.msra.mxu0 %v330
    %632 = vmatprep.subr.bf16.mxu0 0
    %633 = vmatpush1.bf16.msra.mxu0 %v329
    %634 = vmatprep.subr.bf16.mxu0 0
    %635 = vmatpush1.bf16.msra.mxu0 %v328
    %636 = vmatprep.subr.bf16.mxu0 0
    %637 = vmatpush1.bf16.msra.mxu0 %v327
    %638 = vmatprep.subr.bf16.mxu0 0
    %639 = vmatpush1.bf16.msra.mxu0 %v326
    %640 = vmatprep.subr.bf16.mxu0 0
    %641 = vmatpush1.bf16.msra.mxu0 %v325
    %642 = vmatprep.subr.bf16.mxu0 0
    %643 = vmatpush1.bf16.msra.mxu0 %v324
    %644 = vmatprep.subr.bf16.mxu0 0
    %645 = vmatpush2.bf16.msra.mxu0 0
    %646 = vmatprep.subr.bf16.mxu0 0
    %647 = vmatpush2.bf16.msra.mxu0 0
    %648 = vmatprep.subr.bf16.mxu0 0
    %649 = vmatpush2.bf16.msra.mxu0 0
    %650 = vmatprep.subr.bf16.mxu0 0
    %651 = vmatpush2.bf16.msra.mxu0 0
    %652 = vmatprep.subr.bf16.mxu0 0
    %653 = vmatpush2.bf16.msra.mxu0 0
    %654 = vmatprep.subr.bf16.mxu0 0
    %655 = vmatpush2.bf16.msra.mxu0 0
    %656 = vmatprep.subr.bf16.mxu0 0
    %657 = vmatpush2.bf16.msra.mxu0 0
    %658 = vmatprep.subr.bf16.mxu0 0
    %659 = vmatpush2.bf16.msra.mxu0 0
    %660 = vmatprep.mubr.bf16.mxu0 0
    %661 = vmatmul.mubr.bf16.gmra.mxu0 %v627
    %v662 = vpop.f32.mrf.mxu0
    %v663 = vadd.f32 0.0, %v662
    %v664 = vpop.f32.mrf.mxu0
    %v665 = vpop.f32.mrf.mxu0
    %v666 = vpop.f32.mrf.mxu0
    %667 = vdwg.mxu0
    %v668 = vadd.f32 %v625, %v663
    %v669 = vtanh.pop %v668
    %670 = vst [vmem:[#allocation3] sm:$0xff] %v669
    %671 = vst [vmem:[%s624] sm:$0xff] %v669
    %s672 = scalar_lea.vmem [#allocation2], 56
    %v673 = vld [vmem:[%s672] sm:$0xff]
    %v674 = vld [vmem:[#allocation3] sm:$0xff]
    %v675 = vpack.c.bf16 %v674, %v674
    %676 = vmatprep.subr.bf16.mxu0 0
    %677 = vmatpush1.bf16.msra.mxu0 %v331
    %678 = vmatprep.subr.bf16.mxu0 0
    %679 = vmatpush1.bf16.msra.mxu0 %v330
    %680 = vmatprep.subr.bf16.mxu0 0
    %681 = vmatpush1.bf16.msra.mxu0 %v329
    %682 = vmatprep.subr.bf16.mxu0 0
    %683 = vmatpush1.bf16.msra.mxu0 %v328
    %684 = vmatprep.subr.bf16.mxu0 0
    %685 = vmatpush1.bf16.msra.mxu0 %v327
    %686 = vmatprep.subr.bf16.mxu0 0
    %687 = vmatpush1.bf16.msra.mxu0 %v326
    %688 = vmatprep.subr.bf16.mxu0 0
    %689 = vmatpush1.bf16.msra.mxu0 %v325
    %690 = vmatprep.subr.bf16.mxu0 0
    %691 = vmatpush1.bf16.msra.mxu0 %v324
    %692 = vmatprep.subr.bf16.mxu0 0
    %693 = vmatpush2.bf16.msra.mxu0 0
    %694 = vmatprep.subr.bf16.mxu0 0
    %695 = vmatpush2.bf16.msra.mxu0 0
    %696 = vmatprep.subr.bf16.mxu0 0
    %697 = vmatpush2.bf16.msra.mxu0 0
    %698 = vmatprep.subr.bf16.mxu0 0
    %699 = vmatpush2.bf16.msra.mxu0 0
    %700 = vmatprep.subr.bf16.mxu0 0
    %701 = vmatpush2.bf16.msra.mxu0 0
    %702 = vmatprep.subr.bf16.mxu0 0
    %703 = vmatpush2.bf16.msra.mxu0 0
    %704 = vmatprep.subr.bf16.mxu0 0
    %705 = vmatpush2.bf16.msra.mxu0 0
    %706 = vmatprep.subr.bf16.mxu0 0
    %707 = vmatpush2.bf16.msra.mxu0 0
    %708 = vmatprep.mubr.bf16.mxu0 0
    %709 = vmatmul.mubr.bf16.gmra.mxu0 %v675
    %v710 = vpop.f32.mrf.mxu0
    %v711 = vadd.f32 0.0, %v710
    %v712 = vpop.f32.mrf.mxu0
    %v713 = vpop.f32.mrf.mxu0
    %v714 = vpop.f32.mrf.mxu0
    %715 = vdwg.mxu0
    %v716 = vadd.f32 %v673, %v711
    %v717 = vtanh.pop %v716
    %718 = vst [vmem:[#allocation3] sm:$0xff] %v717
    %719 = vst [vmem:[%s672] sm:$0xff] %v717
    %720 = vst [vmem:[#allocation3] sm:$0xff] 0.0
    %v721 = vld [vmem:[#allocation12] sm:$0xf]
    %v722 = vld [vmem:[#allocation12 + $0x4] sm:$0xf]
    %v723 = vld [vmem:[#allocation12 + $0x8] sm:$0xf]
    %v724 = vld [vmem:[#allocation12 + $0xc] sm:$0xf]
    %v725 = vld [vmem:[#allocation12 + $0x10] sm:$0xf]
    %v726 = vld [vmem:[#allocation12 + $0x14] sm:$0xf]
    %v727 = vld [vmem:[#allocation12 + $0x18] sm:$0xf]
    %v728 = vld [vmem:[#allocation12 + $0x1c] sm:$0xf]
    %v729 = vld [vmem:[#allocation12 + $0x20] sm:$0xf]
    %v730 = vld [vmem:[#allocation12 + $0x24] sm:$0xf]
    %v731 = vld [vmem:[#allocation12 + $0x28] sm:$0xf]
    %v732 = vld [vmem:[#allocation12 + $0x2c] sm:$0xf]
    %v733 = vld [vmem:[#allocation12 + $0x30] sm:$0xf]
    %v734 = vld [vmem:[#allocation12 + $0x34] sm:$0xf]
    %v735 = vld [vmem:[#allocation12 + $0x38] sm:$0xf]
    %v736 = vld [vmem:[#allocation12 + $0x3c] sm:$0xf]
    %v737 = vld [vmem:[#allocation2] sm:$0xff]
    %v738 = vld [vmem:[#allocation2 + $0x8] sm:$0xff]
    %v739 = vld [vmem:[#allocation2 + $0x10] sm:$0xff]
    %v740 = vld [vmem:[#allocation2 + $0x18] sm:$0xff]
    %v741 = vld [vmem:[#allocation2 + $0x20] sm:$0xff]
    %v742 = vld [vmem:[#allocation2 + $0x28] sm:$0xff]
    %v743 = vld [vmem:[#allocation2 + $0x30] sm:$0xff]
    %v744 = vld [vmem:[#allocation2 + $0x38] sm:$0xff]
    %v745 = vpack.c.bf16 %v738, %v737
    %v746 = vpack.c.bf16 %v740, %v739
    %v747 = vpack.c.bf16 %v742, %v741
    %v748 = vpack.c.bf16 %v744, %v743
    %v749 = vld [vmem:[#allocation10] sm:$0xf]
    %v750 = vld [vmem:[#allocation10 + $0x4] sm:$0xf]
    %v751 = vld [vmem:[#allocation10 + $0x8] sm:$0xf]
    %v752 = vld [vmem:[#allocation10 + $0xc] sm:$0xf]
    %v753 = vld [vmem:[#allocation10 + $0x10] sm:$0xf]
    %v754 = vld [vmem:[#allocation10 + $0x14] sm:$0xf]
    %v755 = vld [vmem:[#allocation10 + $0x18] sm:$0xf]
    %v756 = vld [vmem:[#allocation10 + $0x1c] sm:$0xf]
    %v757 = vld [vmem:[#allocation10 + $0x20] sm:$0xf]
    %v758 = vld [vmem:[#allocation10 + $0x24] sm:$0xf]
    %v759 = vld [vmem:[#allocation10 + $0x28] sm:$0xf]
    %v760 = vld [vmem:[#allocation10 + $0x2c] sm:$0xf]
    %v761 = vld [vmem:[#allocation10 + $0x30] sm:$0xf]
    %v762 = vld [vmem:[#allocation10 + $0x34] sm:$0xf]
    %v763 = vld [vmem:[#allocation10 + $0x38] sm:$0xf]
    %v764 = vld [vmem:[#allocation10 + $0x3c] sm:$0xf]
    %v765 = vld [vmem:[%s6] sm:$0x1]
    %v767 = vlaneseq
    %v768 = vshrl.u32 %v767, 7
    %v769 = vsub.s32 0, %v768
    %v770 = vrot.slane %v765, %v769
    %v788 = vunpack.c.l.b16 %v749
    %v789 = vunpack.c.l.b16 %v750
    %v790 = vunpack.c.l.b16 %v751
    %v791 = vunpack.c.l.b16 %v752
    %v792 = vunpack.c.l.b16 %v753
    %v793 = vunpack.c.l.b16 %v754
    %v794 = vunpack.c.l.b16 %v755
    %v795 = vunpack.c.l.b16 %v756
    %v796 = vunpack.c.l.b16 %v757
    %v797 = vunpack.c.l.b16 %v758
    %v798 = vunpack.c.l.b16 %v759
    %v799 = vunpack.c.l.b16 %v760
    %v800 = vunpack.c.l.b16 %v761
    %v801 = vunpack.c.l.b16 %v762
    %v802 = vunpack.c.l.b16 %v763
    %v803 = vunpack.c.l.b16 %v764
    %v804 = vpack.c.b16 %v789, %v788
    %v805 = vpack.c.b16 %v791, %v790
    %v806 = vpack.c.b16 %v793, %v792
    %v807 = vpack.c.b16 %v795, %v794
    %v808 = vpack.c.b16 %v797, %v796
    %v809 = vpack.c.b16 %v799, %v798
    %v810 = vpack.c.b16 %v801, %v800
    %v811 = vpack.c.b16 %v803, %v802
    %820 = vmatprep.subr.bf16.mxu0 0
    %821 = vmatpush1.bf16.msra.mxu0 %v811
    %822 = vmatprep.subr.bf16.mxu0 0
    %823 = vmatpush1.bf16.msra.mxu0 %v810
    %824 = vmatprep.subr.bf16.mxu0 0
    %825 = vmatpush1.bf16.msra.mxu0 %v809
    %826 = vmatprep.subr.bf16.mxu0 0
    %827 = vmatpush1.bf16.msra.mxu0 %v808
    %828 = vmatprep.subr.bf16.mxu0 0
    %829 = vmatpush1.bf16.msra.mxu0 %v807
    %830 = vmatprep.subr.bf16.mxu0 0
    %831 = vmatpush1.bf16.msra.mxu0 %v806
    %832 = vmatprep.subr.bf16.mxu0 0
    %833 = vmatpush1.bf16.msra.mxu0 %v805
    %834 = vmatprep.subr.bf16.mxu0 0
    %835 = vmatpush1.bf16.msra.mxu0 %v804
    %836 = vmatprep.subr.bf16.mxu0 0
    %837 = vmatpush2.bf16.msra.mxu0 0
    %838 = vmatprep.subr.bf16.mxu0 0
    %839 = vmatpush2.bf16.msra.mxu0 0
    %840 = vmatprep.subr.bf16.mxu0 0
    %841 = vmatpush2.bf16.msra.mxu0 0
    %842 = vmatprep.subr.bf16.mxu0 0
    %843 = vmatpush2.bf16.msra.mxu0 0
    %844 = vmatprep.subr.bf16.mxu0 0
    %845 = vmatpush2.bf16.msra.mxu0 0
    %846 = vmatprep.subr.bf16.mxu0 0
    %847 = vmatpush2.bf16.msra.mxu0 0
    %848 = vmatprep.subr.bf16.mxu0 0
    %849 = vmatpush2.bf16.msra.mxu0 0
    %850 = vmatprep.subr.bf16.mxu0 0
    %851 = vmatpush2.bf16.msra.mxu0 0
    %852 = vmatprep.mubr.bf16.mxu0 0
    %853 = vmatmul.mubr.bf16.gmra.mxu0 %v745
    %v854 = vpop.f32.mrf.mxu0
    %v855 = vadd.f32 %v770, %v854
    %v856 = vpop.f32.mrf.mxu0
    %v857 = vpop.f32.mrf.mxu0
    %v858 = vadd.f32 %v770, %v857
    %v859 = vpop.f32.mrf.mxu0
    %860 = vmatprep.mubr.bf16.mxu0 0
    %861 = vmatmul.mubr.bf16.gmra.mxu0 %v746
    %v862 = vpop.f32.mrf.mxu0
    %v863 = vadd.f32 %v770, %v862
    %v864 = vpop.f32.mrf.mxu0
    %v865 = vpop.f32.mrf.mxu0
    %v866 = vadd.f32 %v770, %v865
    %v867 = vpop.f32.mrf.mxu0
    %868 = vmatprep.mubr.bf16.mxu0 0
    %869 = vmatmul.mubr.bf16.gmra.mxu0 %v747
    %v870 = vpop.f32.mrf.mxu0
    %v871 = vadd.f32 %v770, %v870
    %v872 = vpop.f32.mrf.mxu0
    %v873 = vpop.f32.mrf.mxu0
    %v874 = vadd.f32 %v770, %v873
    %v875 = vpop.f32.mrf.mxu0
    %876 = vmatprep.mubr.bf16.mxu0 0
    %877 = vmatmul.mubr.bf16.gmra.mxu0 %v748
    %v878 = vpop.f32.mrf.mxu0
    %v879 = vadd.f32 %v770, %v878
    %v880 = vpop.f32.mrf.mxu0
    %v881 = vpop.f32.mrf.mxu0
    %v882 = vadd.f32 %v770, %v881
    %v883 = vpop.f32.mrf.mxu0
    %884 = vdwg.mxu0
    %885 = vst [vmem:[#allocation2] sm:$0xff] %v855
    %886 = vst [vmem:[#allocation2 + $0x8] sm:$0xff] %v858
    %887 = vst [vmem:[#allocation2 + $0x10] sm:$0xff] %v863
    %888 = vst [vmem:[#allocation2 + $0x18] sm:$0xff] %v866
    %889 = vst [vmem:[#allocation2 + $0x20] sm:$0xff] %v871
    %890 = vst [vmem:[#allocation2 + $0x28] sm:$0xff] %v874
    %891 = vst [vmem:[#allocation2 + $0x30] sm:$0xff] %v879
    %892 = vst [vmem:[#allocation2 + $0x38] sm:$0xff] %v882
    %v893 = vld [vmem:[#allocation2] sm:$0xff]
    %v894 = vld [vmem:[#allocation3] sm:$0xff]
    %v895 = vpack.c.bf16 %v894, %v894
    %v912 = vunpack.c.l.b16 %v721
    %v913 = vunpack.c.l.b16 %v722
    %v914 = vunpack.c.l.b16 %v723
    %v915 = vunpack.c.l.b16 %v724
    %v916 = vunpack.c.l.b16 %v725
    %v917 = vunpack.c.l.b16 %v726
    %v918 = vunpack.c.l.b16 %v727
    %v919 = vunpack.c.l.b16 %v728
    %v920 = vunpack.c.l.b16 %v729
    %v921 = vunpack.c.l.b16 %v730
    %v922 = vunpack.c.l.b16 %v731
    %v923 = vunpack.c.l.b16 %v732
    %v924 = vunpack.c.l.b16 %v733
    %v925 = vunpack.c.l.b16 %v734
    %v926 = vunpack.c.l.b16 %v735
    %v927 = vunpack.c.l.b16 %v736
    %v928 = vpack.c.b16 %v913, %v912
    %v929 = vpack.c.b16 %v915, %v914
    %v930 = vpack.c.b16 %v917, %v916
    %v931 = vpack.c.b16 %v919, %v918
    %v932 = vpack.c.b16 %v921, %v920
    %v933 = vpack.c.b16 %v923, %v922
    %v934 = vpack.c.b16 %v925, %v924
    %v935 = vpack.c.b16 %v927, %v926
    %944 = vmatprep.subr.bf16.mxu0 0
    %945 = vmatpush1.bf16.msra.mxu0 %v935
    %946 = vmatprep.subr.bf16.mxu0 0
    %947 = vmatpush1.bf16.msra.mxu0 %v934
    %948 = vmatprep.subr.bf16.mxu0 0
    %949 = vmatpush1.bf16.msra.mxu0 %v933
    %950 = vmatprep.subr.bf16.mxu0 0
    %951 = vmatpush1.bf16.msra.mxu0 %v932
    %952 = vmatprep.subr.bf16.mxu0 0
    %953 = vmatpush1.bf16.msra.mxu0 %v931
    %954 = vmatprep.subr.bf16.mxu0 0
    %955 = vmatpush1.bf16.msra.mxu0 %v930
    %956 = vmatprep.subr.bf16.mxu0 0
    %957 = vmatpush1.bf16.msra.mxu0 %v929
    %958 = vmatprep.subr.bf16.mxu0 0
    %959 = vmatpush1.bf16.msra.mxu0 %v928
    %960 = vmatprep.subr.bf16.mxu0 0
    %961 = vmatpush2.bf16.msra.mxu0 0
    %962 = vmatprep.subr.bf16.mxu0 0
    %963 = vmatpush2.bf16.msra.mxu0 0
    %964 = vmatprep.subr.bf16.mxu0 0
    %965 = vmatpush2.bf16.msra.mxu0 0
    %966 = vmatprep.subr.bf16.mxu0 0
    %967 = vmatpush2.bf16.msra.mxu0 0
    %968 = vmatprep.subr.bf16.mxu0 0
    %969 = vmatpush2.bf16.msra.mxu0 0
    %970 = vmatprep.subr.bf16.mxu0 0
    %971 = vmatpush2.bf16.msra.mxu0 0
    %972 = vmatprep.subr.bf16.mxu0 0
    %973 = vmatpush2.bf16.msra.mxu0 0
    %974 = vmatprep.subr.bf16.mxu0 0
    %975 = vmatpush2.bf16.msra.mxu0 0
    %976 = vmatprep.mubr.bf16.mxu0 0
    %977 = vmatmul.mubr.bf16.gmra.mxu0 %v895
    %v978 = vpop.f32.mrf.mxu0
    %v979 = vadd.f32 0.0, %v978
    %v980 = vpop.f32.mrf.mxu0
    %v981 = vpop.f32.mrf.mxu0
    %v982 = vpop.f32.mrf.mxu0
    %983 = vdwg.mxu0
    %v984 = vadd.f32 %v893, %v979
    %v985 = vtanh.pop %v984
    %986 = vst [vmem:[#allocation3] sm:$0xff] %v985
    %v987 = vld [vmem:[%s384] sm:$0xff]
    %v988 = vld [vmem:[#allocation3] sm:$0xff]
    %v989 = vpack.c.bf16 %v988, %v988
    %990 = vmatprep.subr.bf16.mxu0 0
    %991 = vmatpush1.bf16.msra.mxu0 %v935
    %992 = vmatprep.subr.bf16.mxu0 0
    %993 = vmatpush1.bf16.msra.mxu0 %v934
    %994 = vmatprep.subr.bf16.mxu0 0
    %995 = vmatpush1.bf16.msra.mxu0 %v933
    %996 = vmatprep.subr.bf16.mxu0 0
    %997 = vmatpush1.bf16.msra.mxu0 %v932
    %998 = vmatprep.subr.bf16.mxu0 0
    %999 = vmatpush1.bf16.msra.mxu0 %v931
    %1000 = vmatprep.subr.bf16.mxu0 0
    %1001 = vmatpush1.bf16.msra.mxu0 %v930
    %1002 = vmatprep.subr.bf16.mxu0 0
    %1003 = vmatpush1.bf16.msra.mxu0 %v929
    %1004 = vmatprep.subr.bf16.mxu0 0
    %1005 = vmatpush1.bf16.msra.mxu0 %v928
    %1006 = vmatprep.subr.bf16.mxu0 0
    %1007 = vmatpush2.bf16.msra.mxu0 0
    %1008 = vmatprep.subr.bf16.mxu0 0
    %1009 = vmatpush2.bf16.msra.mxu0 0
    %1010 = vmatprep.subr.bf16.mxu0 0
    %1011 = vmatpush2.bf16.msra.mxu0 0
    %1012 = vmatprep.subr.bf16.mxu0 0
    %1013 = vmatpush2.bf16.msra.mxu0 0
    %1014 = vmatprep.subr.bf16.mxu0 0
    %1015 = vmatpush2.bf16.msra.mxu0 0
    %1016 = vmatprep.subr.bf16.mxu0 0
    %1017 = vmatpush2.bf16.msra.mxu0 0
    %1018 = vmatprep.subr.bf16.mxu0 0
    %1019 = vmatpush2.bf16.msra.mxu0 0
    %1020 = vmatprep.subr.bf16.mxu0 0
    %1021 = vmatpush2.bf16.msra.mxu0 0
    %1022 = vmatprep.mubr.bf16.mxu0 0
    %1023 = vmatmul.mubr.bf16.gmra.mxu0 %v989
    %v1024 = vpop.f32.mrf.mxu0
    %v1025 = vadd.f32 0.0, %v1024
    %v1026 = vpop.f32.mrf.mxu0
    %v1027 = vpop.f32.mrf.mxu0
    %v1028 = vpop.f32.mrf.mxu0
    %1029 = vdwg.mxu0
    %v1030 = vadd.f32 %v987, %v1025
    %v1031 = vtanh.pop %v1030
    %1032 = vst [vmem:[#allocation3] sm:$0xff] %v1031
    %v1033 = vld [vmem:[%s432] sm:$0xff]
    %v1034 = vld [vmem:[#allocation3] sm:$0xff]
    %v1035 = vpack.c.bf16 %v1034, %v1034
    %1036 = vmatprep.subr.bf16.mxu0 0
    %1037 = vmatpush1.bf16.msra.mxu0 %v935
    %1038 = vmatprep.subr.bf16.mxu0 0
    %1039 = vmatpush1.bf16.msra.mxu0 %v934
    %1040 = vmatprep.subr.bf16.mxu0 0
    %1041 = vmatpush1.bf16.msra.mxu0 %v933
    %1042 = vmatprep.subr.bf16.mxu0 0
    %1043 = vmatpush1.bf16.msra.mxu0 %v932
    %1044 = vmatprep.subr.bf16.mxu0 0
    %1045 = vmatpush1.bf16.msra.mxu0 %v931
    %1046 = vmatprep.subr.bf16.mxu0 0
    %1047 = vmatpush1.bf16.msra.mxu0 %v930
    %1048 = vmatprep.subr.bf16.mxu0 0
    %1049 = vmatpush1.bf16.msra.mxu0 %v929
    %1050 = vmatprep.subr.bf16.mxu0 0
    %1051 = vmatpush1.bf16.msra.mxu0 %v928
    %1052 = vmatprep.subr.bf16.mxu0 0
    %1053 = vmatpush2.bf16.msra.mxu0 0
    %1054 = vmatprep.subr.bf16.mxu0 0
    %1055 = vmatpush2.bf16.msra.mxu0 0
    %1056 = vmatprep.subr.bf16.mxu0 0
    %1057 = vmatpush2.bf16.msra.mxu0 0
    %1058 = vmatprep.subr.bf16.mxu0 0
    %1059 = vmatpush2.bf16.msra.mxu0 0
    %1060 = vmatprep.subr.bf16.mxu0 0
    %1061 = vmatpush2.bf16.msra.mxu0 0
    %1062 = vmatprep.subr.bf16.mxu0 0
    %1063 = vmatpush2.bf16.msra.mxu0 0
    %1064 = vmatprep.subr.bf16.mxu0 0
    %1065 = vmatpush2.bf16.msra.mxu0 0
    %1066 = vmatprep.subr.bf16.mxu0 0
    %1067 = vmatpush2.bf16.msra.mxu0 0
    %1068 = vmatprep.mubr.bf16.mxu0 0
    %1069 = vmatmul.mubr.bf16.gmra.mxu0 %v1035
    %v1070 = vpop.f32.mrf.mxu0
    %v1071 = vadd.f32 0.0, %v1070
    %v1072 = vpop.f32.mrf.mxu0
    %v1073 = vpop.f32.mrf.mxu0
    %v1074 = vpop.f32.mrf.mxu0
    %1075 = vdwg.mxu0
    %v1076 = vadd.f32 %v1033, %v1071
    %v1077 = vtanh.pop %v1076
    %1078 = vst [vmem:[#allocation3] sm:$0xff] %v1077
    %v1079 = vld [vmem:[%s480] sm:$0xff]
    %v1080 = vld [vmem:[#allocation3] sm:$0xff]
    %v1081 = vpack.c.bf16 %v1080, %v1080
    %1082 = vmatprep.subr.bf16.mxu0 0
    %1083 = vmatpush1.bf16.msra.mxu0 %v935
    %1084 = vmatprep.subr.bf16.mxu0 0
    %1085 = vmatpush1.bf16.msra.mxu0 %v934
    %1086 = vmatprep.subr.bf16.mxu0 0
    %1087 = vmatpush1.bf16.msra.mxu0 %v933
    %1088 = vmatprep.subr.bf16.mxu0 0
    %1089 = vmatpush1.bf16.msra.mxu0 %v932
    %1090 = vmatprep.subr.bf16.mxu0 0
    %1091 = vmatpush1.bf16.msra.mxu0 %v931
    %1092 = vmatprep.subr.bf16.mxu0 0
    %1093 = vmatpush1.bf16.msra.mxu0 %v930
    %1094 = vmatprep.subr.bf16.mxu0 0
    %1095 = vmatpush1.bf16.msra.mxu0 %v929
    %1096 = vmatprep.subr.bf16.mxu0 0
    %1097 = vmatpush1.bf16.msra.mxu0 %v928
    %1098 = vmatprep.subr.bf16.mxu0 0
    %1099 = vmatpush2.bf16.msra.mxu0 0
    %1100 = vmatprep.subr.bf16.mxu0 0
    %1101 = vmatpush2.bf16.msra.mxu0 0
    %1102 = vmatprep.subr.bf16.mxu0 0
    %1103 = vmatpush2.bf16.msra.mxu0 0
    %1104 = vmatprep.subr.bf16.mxu0 0
    %1105 = vmatpush2.bf16.msra.mxu0 0
    %1106 = vmatprep.subr.bf16.mxu0 0
    %1107 = vmatpush2.bf16.msra.mxu0 0
    %1108 = vmatprep.subr.bf16.mxu0 0
    %1109 = vmatpush2.bf16.msra.mxu0 0
    %1110 = vmatprep.subr.bf16.mxu0 0
    %1111 = vmatpush2.bf16.msra.mxu0 0
    %1112 = vmatprep.subr.bf16.mxu0 0
    %1113 = vmatpush2.bf16.msra.mxu0 0
    %1114 = vmatprep.mubr.bf16.mxu0 0
    %1115 = vmatmul.mubr.bf16.gmra.mxu0 %v1081
    %v1116 = vpop.f32.mrf.mxu0
    %v1117 = vadd.f32 0.0, %v1116
    %v1118 = vpop.f32.mrf.mxu0
    %v1119 = vpop.f32.mrf.mxu0
    %v1120 = vpop.f32.mrf.mxu0
    %1121 = vdwg.mxu0
    %v1122 = vadd.f32 %v1079, %v1117
    %v1123 = vtanh.pop %v1122
    %1124 = vst [vmem:[#allocation3] sm:$0xff] %v1123
    %v1125 = vld [vmem:[%s528] sm:$0xff]
    %v1126 = vld [vmem:[#allocation3] sm:$0xff]
    %v1127 = vpack.c.bf16 %v1126, %v1126
    %1128 = vmatprep.subr.bf16.mxu0 0
    %1129 = vmatpush1.bf16.msra.mxu0 %v935
    %1130 = vmatprep.subr.bf16.mxu0 0
    %1131 = vmatpush1.bf16.msra.mxu0 %v934
    %1132 = vmatprep.subr.bf16.mxu0 0
    %1133 = vmatpush1.bf16.msra.mxu0 %v933
    %1134 = vmatprep.subr.bf16.mxu0 0
    %1135 = vmatpush1.bf16.msra.mxu0 %v932
    %1136 = vmatprep.subr.bf16.mxu0 0
    %1137 = vmatpush1.bf16.msra.mxu0 %v931
    %1138 = vmatprep.subr.bf16.mxu0 0
    %1139 = vmatpush1.bf16.msra.mxu0 %v930
    %1140 = vmatprep.subr.bf16.mxu0 0
    %1141 = vmatpush1.bf16.msra.mxu0 %v929
    %1142 = vmatprep.subr.bf16.mxu0 0
    %1143 = vmatpush1.bf16.msra.mxu0 %v928
    %1144 = vmatprep.subr.bf16.mxu0 0
    %1145 = vmatpush2.bf16.msra.mxu0 0
    %1146 = vmatprep.subr.bf16.mxu0 0
    %1147 = vmatpush2.bf16.msra.mxu0 0
    %1148 = vmatprep.subr.bf16.mxu0 0
    %1149 = vmatpush2.bf16.msra.mxu0 0
    %1150 = vmatprep.subr.bf16.mxu0 0
    %1151 = vmatpush2.bf16.msra.mxu0 0
    %1152 = vmatprep.subr.bf16.mxu0 0
    %1153 = vmatpush2.bf16.msra.mxu0 0
    %1154 = vmatprep.subr.bf16.mxu0 0
    %1155 = vmatpush2.bf16.msra.mxu0 0
    %1156 = vmatprep.subr.bf16.mxu0 0
    %1157 = vmatpush2.bf16.msra.mxu0 0
    %1158 = vmatprep.subr.bf16.mxu0 0
    %1159 = vmatpush2.bf16.msra.mxu0 0
    %1160 = vmatprep.mubr.bf16.mxu0 0
    %1161 = vmatmul.mubr.bf16.gmra.mxu0 %v1127
    %v1162 = vpop.f32.mrf.mxu0
    %v1163 = vadd.f32 0.0, %v1162
    %v1164 = vpop.f32.mrf.mxu0
    %v1165 = vpop.f32.mrf.mxu0
    %v1166 = vpop.f32.mrf.mxu0
    %1167 = vdwg.mxu0
    %v1168 = vadd.f32 %v1125, %v1163
    %v1169 = vtanh.pop %v1168
    %1170 = vst [vmem:[#allocation3] sm:$0xff] %v1169
    %v1171 = vld [vmem:[%s576] sm:$0xff]
    %v1172 = vld [vmem:[#allocation3] sm:$0xff]
    %v1173 = vpack.c.bf16 %v1172, %v1172
    %1174 = vmatprep.subr.bf16.mxu0 0
    %1175 = vmatpush1.bf16.msra.mxu0 %v935
    %1176 = vmatprep.subr.bf16.mxu0 0
    %1177 = vmatpush1.bf16.msra.mxu0 %v934
    %1178 = vmatprep.subr.bf16.mxu0 0
    %1179 = vmatpush1.bf16.msra.mxu0 %v933
    %1180 = vmatprep.subr.bf16.mxu0 0
    %1181 = vmatpush1.bf16.msra.mxu0 %v932
    %1182 = vmatprep.subr.bf16.mxu0 0
    %1183 = vmatpush1.bf16.msra.mxu0 %v931
    %1184 = vmatprep.subr.bf16.mxu0 0
    %1185 = vmatpush1.bf16.msra.mxu0 %v930
    %1186 = vmatprep.subr.bf16.mxu0 0
    %1187 = vmatpush1.bf16.msra.mxu0 %v929
    %1188 = vmatprep.subr.bf16.mxu0 0
    %1189 = vmatpush1.bf16.msra.mxu0 %v928
    %1190 = vmatprep.subr.bf16.mxu0 0
    %1191 = vmatpush2.bf16.msra.mxu0 0
    %1192 = vmatprep.subr.bf16.mxu0 0
    %1193 = vmatpush2.bf16.msra.mxu0 0
    %1194 = vmatprep.subr.bf16.mxu0 0
    %1195 = vmatpush2.bf16.msra.mxu0 0
    %1196 = vmatprep.subr.bf16.mxu0 0
    %1197 = vmatpush2.bf16.msra.mxu0 0
    %1198 = vmatprep.subr.bf16.mxu0 0
    %1199 = vmatpush2.bf16.msra.mxu0 0
    %1200 = vmatprep.subr.bf16.mxu0 0
    %1201 = vmatpush2.bf16.msra.mxu0 0
    %1202 = vmatprep.subr.bf16.mxu0 0
    %1203 = vmatpush2.bf16.msra.mxu0 0
    %1204 = vmatprep.subr.bf16.mxu0 0
    %1205 = vmatpush2.bf16.msra.mxu0 0
    %1206 = vmatprep.mubr.bf16.mxu0 0
    %1207 = vmatmul.mubr.bf16.gmra.mxu0 %v1173
    %v1208 = vpop.f32.mrf.mxu0
    %v1209 = vadd.f32 0.0, %v1208
    %v1210 = vpop.f32.mrf.mxu0
    %v1211 = vpop.f32.mrf.mxu0
    %v1212 = vpop.f32.mrf.mxu0
    %1213 = vdwg.mxu0
    %v1214 = vadd.f32 %v1171, %v1209
    %v1215 = vtanh.pop %v1214
    %1216 = vst [vmem:[#allocation3] sm:$0xff] %v1215
    %v1217 = vld [vmem:[%s624] sm:$0xff]
    %v1218 = vld [vmem:[#allocation3] sm:$0xff]
    %v1219 = vpack.c.bf16 %v1218, %v1218
    %1220 = vmatprep.subr.bf16.mxu0 0
    %1221 = vmatpush1.bf16.msra.mxu0 %v935
    %1222 = vmatprep.subr.bf16.mxu0 0
    %1223 = vmatpush1.bf16.msra.mxu0 %v934
    %1224 = vmatprep.subr.bf16.mxu0 0
    %1225 = vmatpush1.bf16.msra.mxu0 %v933
    %1226 = vmatprep.subr.bf16.mxu0 0
    %1227 = vmatpush1.bf16.msra.mxu0 %v932
    %1228 = vmatprep.subr.bf16.mxu0 0
    %1229 = vmatpush1.bf16.msra.mxu0 %v931
    %1230 = vmatprep.subr.bf16.mxu0 0
    %1231 = vmatpush1.bf16.msra.mxu0 %v930
    %1232 = vmatprep.subr.bf16.mxu0 0
    %1233 = vmatpush1.bf16.msra.mxu0 %v929
    %1234 = vmatprep.subr.bf16.mxu0 0
    %1235 = vmatpush1.bf16.msra.mxu0 %v928
    %1236 = vmatprep.subr.bf16.mxu0 0
    %1237 = vmatpush2.bf16.msra.mxu0 0
    %1238 = vmatprep.subr.bf16.mxu0 0
    %1239 = vmatpush2.bf16.msra.mxu0 0
    %1240 = vmatprep.subr.bf16.mxu0 0
    %1241 = vmatpush2.bf16.msra.mxu0 0
    %1242 = vmatprep.subr.bf16.mxu0 0
    %1243 = vmatpush2.bf16.msra.mxu0 0
    %1244 = vmatprep.subr.bf16.mxu0 0
    %1245 = vmatpush2.bf16.msra.mxu0 0
    %1246 = vmatprep.subr.bf16.mxu0 0
    %1247 = vmatpush2.bf16.msra.mxu0 0
    %1248 = vmatprep.subr.bf16.mxu0 0
    %1249 = vmatpush2.bf16.msra.mxu0 0
    %1250 = vmatprep.subr.bf16.mxu0 0
    %1251 = vmatpush2.bf16.msra.mxu0 0
    %1252 = vmatprep.mubr.bf16.mxu0 0
    %1253 = vmatmul.mubr.bf16.gmra.mxu0 %v1219
    %v1254 = vpop.f32.mrf.mxu0
    %v1255 = vadd.f32 0.0, %v1254
    %v1256 = vpop.f32.mrf.mxu0
    %v1257 = vpop.f32.mrf.mxu0
    %v1258 = vpop.f32.mrf.mxu0
    %1259 = vdwg.mxu0
    %v1260 = vadd.f32 %v1217, %v1255
    %v1261 = vtanh.pop %v1260
    %1262 = vst [vmem:[#allocation3] sm:$0xff] %v1261
    %v1263 = vld [vmem:[%s672] sm:$0xff]
    %v1264 = vld [vmem:[#allocation3] sm:$0xff]
    %v1265 = vpack.c.bf16 %v1264, %v1264
    %1266 = vmatprep.subr.bf16.mxu0 0
    %1267 = vmatpush1.bf16.msra.mxu0 %v935
    %1268 = vmatprep.subr.bf16.mxu0 0
    %1269 = vmatpush1.bf16.msra.mxu0 %v934
    %1270 = vmatprep.subr.bf16.mxu0 0
    %1271 = vmatpush1.bf16.msra.mxu0 %v933
    %1272 = vmatprep.subr.bf16.mxu0 0
    %1273 = vmatpush1.bf16.msra.mxu0 %v932
    %1274 = vmatprep.subr.bf16.mxu0 0
    %1275 = vmatpush1.bf16.msra.mxu0 %v931
    %1276 = vmatprep.subr.bf16.mxu0 0
    %1277 = vmatpush1.bf16.msra.mxu0 %v930
    %1278 = vmatprep.subr.bf16.mxu0 0
    %1279 = vmatpush1.bf16.msra.mxu0 %v929
    %1280 = vmatprep.subr.bf16.mxu0 0
    %1281 = vmatpush1.bf16.msra.mxu0 %v928
    %1282 = vmatprep.subr.bf16.mxu0 0
    %1283 = vmatpush2.bf16.msra.mxu0 0
    %1284 = vmatprep.subr.bf16.mxu0 0
    %1285 = vmatpush2.bf16.msra.mxu0 0
    %1286 = vmatprep.subr.bf16.mxu0 0
    %1287 = vmatpush2.bf16.msra.mxu0 0
    %1288 = vmatprep.subr.bf16.mxu0 0
    %1289 = vmatpush2.bf16.msra.mxu0 0
    %1290 = vmatprep.subr.bf16.mxu0 0
    %1291 = vmatpush2.bf16.msra.mxu0 0
    %1292 = vmatprep.subr.bf16.mxu0 0
    %1293 = vmatpush2.bf16.msra.mxu0 0
    %1294 = vmatprep.subr.bf16.mxu0 0
    %1295 = vmatpush2.bf16.msra.mxu0 0
    %1296 = vmatprep.subr.bf16.mxu0 0
    %1297 = vmatpush2.bf16.msra.mxu0 0
    %1298 = vmatprep.mubr.bf16.mxu0 0
    %1299 = vmatmul.mubr.bf16.gmra.mxu0 %v1265
    %v1300 = vpop.f32.mrf.mxu0
    %v1301 = vadd.f32 0.0, %v1300
    %v1302 = vpop.f32.mrf.mxu0
    %v1303 = vpop.f32.mrf.mxu0
    %v1304 = vpop.f32.mrf.mxu0
    %1305 = vdwg.mxu0
    %v1306 = vadd.f32 %v1263, %v1301
    %v1307 = vtanh.pop %v1306
    %1308 = vst [vmem:[#allocation3] sm:$0xff] %v1307
    %v1309 = vld [vmem:[#allocation3] sm:$0xff]
    %v1310 = vpack.c.bf16 %v1309, %v1309
    %v1311 = vld [vmem:[#allocation13] sm:$0xf]
    %v1312 = vld [vmem:[#allocation13 + $0x4] sm:$0xf]
    %v1313 = vld [vmem:[#allocation13 + $0x8] sm:$0xf]
    %v1314 = vld [vmem:[#allocation13 + $0xc] sm:$0xf]
    %v1315 = vld [vmem:[#allocation13 + $0x10] sm:$0xf]
    %v1316 = vld [vmem:[#allocation13 + $0x14] sm:$0xf]
    %v1317 = vld [vmem:[#allocation13 + $0x18] sm:$0xf]
    %v1318 = vld [vmem:[#allocation13 + $0x1c] sm:$0xf]
    %v1319 = vld [vmem:[#allocation13 + $0x20] sm:$0xf]
    %v1320 = vld [vmem:[#allocation13 + $0x24] sm:$0xf]
    %v1321 = vld [vmem:[#allocation13 + $0x28] sm:$0xf]
    %v1322 = vld [vmem:[#allocation13 + $0x2c] sm:$0xf]
    %v1323 = vld [vmem:[#allocation13 + $0x30] sm:$0xf]
    %v1324 = vld [vmem:[#allocation13 + $0x34] sm:$0xf]
    %v1325 = vld [vmem:[#allocation13 + $0x38] sm:$0xf]
    %v1326 = vld [vmem:[#allocation13 + $0x3c] sm:$0xf]
    %v1327 = vld [vmem:[%s8] sm:$0x1]
    %v1329 = vlaneseq
    %v1330 = vshrl.u32 %v1329, 7
    %v1331 = vsub.s32 0, %v1330
    %v1332 = vrot.slane %v1327, %v1331
    %v1350 = vunpack.c.l.b16 %v1311
    %v1351 = vunpack.c.l.b16 %v1312
    %v1352 = vunpack.c.l.b16 %v1313
    %v1353 = vunpack.c.l.b16 %v1314
    %v1354 = vunpack.c.l.b16 %v1315
    %v1355 = vunpack.c.l.b16 %v1316
    %v1356 = vunpack.c.l.b16 %v1317
    %v1357 = vunpack.c.l.b16 %v1318
    %v1358 = vunpack.c.l.b16 %v1319
    %v1359 = vunpack.c.l.b16 %v1320
    %v1360 = vunpack.c.l.b16 %v1321
    %v1361 = vunpack.c.l.b16 %v1322
    %v1362 = vunpack.c.l.b16 %v1323
    %v1363 = vunpack.c.l.b16 %v1324
    %v1364 = vunpack.c.l.b16 %v1325
    %v1365 = vunpack.c.l.b16 %v1326
    %v1366 = vpack.c.b16 %v1351, %v1350
    %v1367 = vpack.c.b16 %v1353, %v1352
    %v1368 = vpack.c.b16 %v1355, %v1354
    %v1369 = vpack.c.b16 %v1357, %v1356
    %v1370 = vpack.c.b16 %v1359, %v1358
    %v1371 = vpack.c.b16 %v1361, %v1360
    %v1372 = vpack.c.b16 %v1363, %v1362
    %v1373 = vpack.c.b16 %v1365, %v1364
    %1382 = vmatprep.subr.bf16.mxu0 0
    %1383 = vmatpush1.bf16.msra.mxu0 %v1373
    %1384 = vmatprep.subr.bf16.mxu0 0
    %1385 = vmatpush1.bf16.msra.mxu0 %v1372
    %1386 = vmatprep.subr.bf16.mxu0 0
    %1387 = vmatpush1.bf16.msra.mxu0 %v1371
    %1388 = vmatprep.subr.bf16.mxu0 0
    %1389 = vmatpush1.bf16.msra.mxu0 %v1370
    %1390 = vmatprep.subr.bf16.mxu0 0
    %1391 = vmatpush1.bf16.msra.mxu0 %v1369
    %1392 = vmatprep.subr.bf16.mxu0 0
    %1393 = vmatpush1.bf16.msra.mxu0 %v1368
    %1394 = vmatprep.subr.bf16.mxu0 0
    %1395 = vmatpush1.bf16.msra.mxu0 %v1367
    %1396 = vmatprep.subr.bf16.mxu0 0
    %1397 = vmatpush1.bf16.msra.mxu0 %v1366
    %1398 = vmatprep.subr.bf16.mxu0 0
    %1399 = vmatpush2.bf16.msra.mxu0 0
    %1400 = vmatprep.subr.bf16.mxu0 0
    %1401 = vmatpush2.bf16.msra.mxu0 0
    %1402 = vmatprep.subr.bf16.mxu0 0
    %1403 = vmatpush2.bf16.msra.mxu0 0
    %1404 = vmatprep.subr.bf16.mxu0 0
    %1405 = vmatpush2.bf16.msra.mxu0 0
    %1406 = vmatprep.subr.bf16.mxu0 0
    %1407 = vmatpush2.bf16.msra.mxu0 0
    %1408 = vmatprep.subr.bf16.mxu0 0
    %1409 = vmatpush2.bf16.msra.mxu0 0
    %1410 = vmatprep.subr.bf16.mxu0 0
    %1411 = vmatpush2.bf16.msra.mxu0 0
    %1412 = vmatprep.subr.bf16.mxu0 0
    %1413 = vmatpush2.bf16.msra.mxu0 0
    %1414 = vmatprep.mubr.bf16.mxu0 0
    %1415 = vmatmul.mubr.bf16.gmra.mxu0 %v1310
    %v1416 = vpop.f32.mrf.mxu0
    %v1417 = vadd.f32 %v1332, %v1416
    %v1418 = vpop.f32.mrf.mxu0
    %v1419 = vpop.f32.mrf.mxu0
    %v1420 = vpop.f32.mrf.mxu0
    %1421 = vdwg.mxu0
    %1422 = vst [vmem:[#allocation15] sm:$0xff] %v1417
    // Predicated region
    $region62: #{tpu_custom_call.1} parent=1 // pred_check
      _
    $region63: #{tpu_custom_call.1} parent=1 // pred_check_branch
      %1424 = sbr.rel (0) target = $region65
    $region64: #{tpu_custom_call.1} parent=1 // pred_region
      %s1426 = ssub.s32 128, 128
      %1427 = vsyncadd [#allocation6], %s1426
      %s1429 = sshll.u32 [#allocation15], 4
      %s1430 = int_to_ptr.vmem [resolvable:$true] %s1429
      %1432 = dma.vmem_to_hbm [thread:$0]  %s1430, 128, %s9, [#allocation6]
    $region65: #{tpu_custom_call.1} parent=1 // pred_fallthru
      _
    // Predicated region
    $region66: #{tpu_custom_call.1} parent=1 // pred_check
      _
    $region67: #{tpu_custom_call.1} parent=1 // pred_check_branch
      %1434 = sbr.rel (0) target = $region69
    $region68: #{tpu_custom_call.1} parent=1 // pred_region
      %1435 = dma.done [#allocation6], 128
    $region69: #{tpu_custom_call.1} parent=1 // pred_fallthru
      _
    %1436 = vsyncpa [#allocation5], 1
    %1437 = vsyncpa [#allocation8], 1
    %1438 = vsyncpa [#allocation11], 1
    %1439 = vsyncpa [#allocation14], 1
    %1440 = vsyncpa [#allocation6], 1

// kernel: tpu_custom_call.1
$region0: #{tpu_custom_call.1}
  #allocation0 [shape = 'u32[]', space=smem, size = 0x4, offset = 0x4, fixed_abs, tag = 'smem constant byte address 0x4 - core index']
  #allocation1 [shape = 'u32[144,128]{1,0:T(1,128)}', space=vmem, size = 0x12000, scoped, tag = 'internal scratch']
  #allocation2 [shape = 'f32[8,8,128]{2,1,0:T(8,128)}', space=vmem, size = 0x8000, scoped, tag = 'scratch operand']
  #allocation3 [shape = 'f32[8,128]{1,0:T(8,128)}', space=vmem, size = 0x1000, scoped, tag = 'scratch operand']
  %s0 = inlined_call_operand.hbm [shape: f32[8,8,128], index: 0, kind: input, shape index: {}]
  %s1 = inlined_call_operand.hbm [shape: bf16[128,128], index: 1, kind: input, shape index: {}]
  %s2 = inlined_call_operand.hbm [shape: bf16[128,128], index: 2, kind: input, shape index: {}]
  %s3 = inlined_call_operand.vmem [shape: f32[1,128], index: 3, kind: input, shape index: {}]
  %s4 = inlined_call_operand.hbm [shape: bf16[128,128], index: 4, kind: input, shape index: {}]
  %s5 = inlined_call_operand.hbm [shape: bf16[128,128], index: 5, kind: input, shape index: {}]
  %s6 = inlined_call_operand.vmem [shape: f32[1,128], index: 6, kind: input, shape index: {}]
  %s7 = inlined_call_operand.hbm [shape: bf16[128,128], index: 7, kind: input, shape index: {}]
  %s8 = inlined_call_operand.vmem [shape: f32[1,128], index: 8, kind: input, shape index: {}]
  %s9 = inlined_call_operand.hbm [shape: f32[8,128], index: 9, kind: output, shape index: {}]
  %s10 = sld [smem:[#allocation0]]
  $region70: #{tpu_custom_call.1} parent=0
    _
  %s12 = ssub.s32 1, %s10
  %s13 = scalar_select 0, %s12, %s10
  $region1: #{tpu_custom_call.1} parent=0
    #allocation4 [shape = 'u8[32768]{0}', space=vmem, size = 0x8000, scoped, tag = 'input window, operand 0, single buffered']
    #allocation5 [shape = 's32[1]{0}', space=sflag, size = 0x4, scoped, tag = 'scoped memory for tpu_custom_call.1']
    #allocation6 [shape = 's32[1]{0}', space=sflag, size = 0x4, scoped, tag = 'scoped memory for tpu_custom_call.1']
    #allocation7 [shape = 'u8[32768]{0}', space=vmem, size = 0x8000, scoped, tag = 'input window, operand 1, single buffered']
    #allocation8 [shape = 's32[1]{0}', space=sflag, size = 0x4, scoped, tag = 'scoped memory for tpu_custom_call.1']
    #allocation9 [shape = 'u8[32768]{0}', space=vmem, size = 0x8000, scoped, tag = 'input window, operand 2, single buffered']
    #allocation10 [shape = 'u8[32768]{0}', space=vmem, size = 0x8000, scoped, tag = 'input window, operand 4, single buffered']
    #allocation11 [shape = 's32[1]{0}', space=sflag, size = 0x4, scoped, tag = 'scoped memory for tpu_custom_call.1']
    #allocation12 [shape = 'u8[32768]{0}', space=vmem, size = 0x8000, scoped, tag = 'input window, operand 5, single buffered']
    #allocation13 [shape = 'u8[32768]{0}', space=vmem, size = 0x8000, scoped, tag = 'input window, operand 7, single buffered']
    #allocation14 [shape = 's32[1]{0}', space=sflag, size = 0x4, scoped, tag = 'scoped memory for tpu_custom_call.1']
    #allocation15 [shape = 'u8[4096]{0}', space=vmem, size = 0x1000, scoped, tag = 'output window, operand 0, single buffered']
    %14 = vsyncpa [#allocation5], 0
    %15 = vsyncpa [#allocation8], 0
    %16 = vsyncpa [#allocation11], 0
    %17 = vsyncpa [#allocation14], 0
    %18 = vsyncpa [#allocation6], 0
    // Predicated region
    $region2: #{tpu_custom_call.1} parent=1 // pred_check
      _
    $region3: #{tpu_custom_call.1} parent=1 // pred_check_branch
      %20 = sbr.rel (0) target = $region5
    $region4: #{tpu_custom_call.1} parent=1 // pred_region
      %s22 = ssub.s32 1024, 1024
      %23 = vsyncadd [#allocation5], %s22
      %s24 = sshll.u32 [#allocation4], 4
      %s25 = int_to_ptr.vmem [resolvable:$true] %s24
      %30 = dma.hbm_to_vmem [thread:$0]  %s0, 1024, %s25, [#allocation5], 128, 128, 8
    $region5: #{tpu_custom_call.1} parent=1 // pred_fallthru
      _
    // Predicated region
    $region6: #{tpu_custom_call.1} parent=1 // pred_check
      _
    $region7: #{tpu_custom_call.1} parent=1 // pred_check_branch
      %32 = sbr.rel (0) target = $region9
    $region8: #{tpu_custom_call.1} parent=1 // pred_region
      %s34 = ssub.s32 1024, 1024
      %35 = vsyncadd [#allocation8], %s34
      %s36 = sshll.u32 [#allocation7], 4
      %s37 = int_to_ptr.vmem [resolvable:$true] %s36
      %42 = dma.hbm_to_vmem [thread:$0]  %s1, 1024, %s37, [#allocation8], 64, 64, 4
    $region9: #{tpu_custom_call.1} parent=1 // pred_fallthru
      _
    // Predicated region
    $region10: #{tpu_custom_call.1} parent=1 // pred_check
      _
    $region11: #{tpu_custom_call.1} parent=1 // pred_check_branch
      %44 = sbr.rel (0) target = $region13
    $region12: #{tpu_custom_call.1} parent=1 // pred_region
      %s46 = ssub.s32 1024, 1024
      %47 = vsyncadd [#allocation8], %s46
      %s48 = sshll.u32 [#allocation9], 4
      %s49 = int_to_ptr.vmem [resolvable:$true] %s48
      %54 = dma.hbm_to_vmem [thread:$0]  %s2, 1024, %s49, [#allocation8], 64, 64, 4
    $region13: #{tpu_custom_call.1} parent=1 // pred_fallthru
      _
    // Predicated region
    $region14: #{tpu_custom_call.1} parent=1 // pred_check
      _
    $region15: #{tpu_custom_call.1} parent=1 // pred_check_branch
      %56 = sbr.rel (0) target = $region17
    $region16: #{tpu_custom_call.1} parent=1 // pred_region
      _
    $region17: #{tpu_custom_call.1} parent=1 // pred_fallthru
      _
    // Predicated region
    $region18: #{tpu_custom_call.1} parent=1 // pred_check
      _
    $region19: #{tpu_custom_call.1} parent=1 // pred_check_branch
      %58 = sbr.rel (0) target = $region21
    $region20: #{tpu_custom_call.1} parent=1 // pred_region
      %s60 = ssub.s32 1024, 1024
      %61 = vsyncadd [#allocation11], %s60
      %s62 = sshll.u32 [#allocation10], 4
      %s63 = int_to_ptr.vmem [resolvable:$true] %s62
      %68 = dma.hbm_to_vmem [thread:$0]  %s4, 1024, %s63, [#allocation11], 64, 64, 4
    $region21: #{tpu_custom_call.1} parent=1 // pred_fallthru
      _
    // Predicated region
    $region22: #{tpu_custom_call.1} parent=1 // pred_check
      _
    $region23: #{tpu_custom_call.1} parent=1 // pred_check_branch
      %70 = sbr.rel (0) target = $region25
    $region24: #{tpu_custom_call.1} parent=1 // pred_region
      %s72 = ssub.s32 1024, 1024
      %73 = vsyncadd [#allocation11], %s72
      %s74 = sshll.u32 [#allocation12], 4
      %s75 = int_to_ptr.vmem [resolvable:$true] %s74
      %80 = dma.hbm_to_vmem [thread:$0]  %s5, 1024, %s75, [#allocation11], 64, 64, 4
    $region25: #{tpu_custom_call.1} parent=1 // pred_fallthru
      _
    // Predicated region
    $region26: #{tpu_custom_call.1} parent=1 // pred_check
      _
    $region27: #{tpu_custom_call.1} parent=1 // pred_check_branch
      %82 = sbr.rel (0) target = $region29
    $region28: #{tpu_custom_call.1} parent=1 // pred_region
      _
    $region29: #{tpu_custom_call.1} parent=1 // pred_fallthru
      _
    // Predicated region
    $region30: #{tpu_custom_call.1} parent=1 // pred_check
      _
    $region31: #{tpu_custom_call.1} parent=1 // pred_check_branch
      %84 = sbr.rel (0) target = $region33
    $region32: #{tpu_custom_call.1} parent=1 // pred_region
      %s86 = ssub.s32 1024, 1024
      %87 = vsyncadd [#allocation14], %s86
      %s88 = sshll.u32 [#allocation13], 4
      %s89 = int_to_ptr.vmem [resolvable:$true] %s88
      %94 = dma.hbm_to_vmem [thread:$0]  %s7, 1024, %s89, [#allocation14], 64, 64, 4
    $region33: #{tpu_custom_call.1} parent=1 // pred_fallthru
      _
    // Predicated region
    $region34: #{tpu_custom_call.1} parent=1 // pred_check
      _
    $region35: #{tpu_custom_call.1} parent=1 // pred_check_branch
      %96 = sbr.rel (0) target = $region37
    $region36: #{tpu_custom_call.1} parent=1 // pred_region
      _
    $region37: #{tpu_custom_call.1} parent=1 // pred_fallthru
      _
    // Predicated region
    $region38: #{tpu_custom_call.1} parent=1 // pred_check
      _
    $region39: #{tpu_custom_call.1} parent=1 // pred_check_branch
      %98 = sbr.rel (0) target = $region41
    $region40: #{tpu_custom_call.1} parent=1 // pred_region
      %99 = dma.done [#allocation5], 1024
    $region41: #{tpu_custom_call.1} parent=1 // pred_fallthru
      _
    // Predicated region
    $region42: #{tpu_custom_call.1} parent=1 // pred_check
      _
    $region43: #{tpu_custom_call.1} parent=1 // pred_check_branch
      %101 = sbr.rel (0) target = $region45
    $region44: #{tpu_custom_call.1} parent=1 // pred_region
      %102 = dma.done [#allocation8], 1024
    $region45: #{tpu_custom_call.1} parent=1 // pred_fallthru
      _
    // Predicated region
    $region46: #{tpu_custom_call.1} parent=1 // pred_check
      _
    $region47: #{tpu_custom_call.1} parent=1 // pred_check_branch
      %104 = sbr.rel (0) target = $region49
    $region48: #{tpu_custom_call.1} parent=1 // pred_region
      %105 = dma.done [#allocation8], 1024
    $region49: #{tpu_custom_call.1} parent=1 // pred_fallthru
      _
    // Predicated region
    $region50: #{tpu_custom_call.1} parent=1 // pred_check
      _
    $region51: #{tpu_custom_call.1} parent=1 // pred_check_branch
      %107 = sbr.rel (0) target = $region53
    $region52: #{tpu_custom_call.1} parent=1 // pred_region
      %108 = dma.done [#allocation11], 1024
    $region53: #{tpu_custom_call.1} parent=1 // pred_fallthru
      _
    // Predicated region
    $region54: #{tpu_custom_call.1} parent=1 // pred_check
      _
    $region55: #{tpu_custom_call.1} parent=1 // pred_check_branch
      %110 = sbr.rel (0) target = $region57
    $region56: #{tpu_custom_call.1} parent=1 // pred_region
      %111 = dma.done [#allocation11], 1024
    $region57: #{tpu_custom_call.1} parent=1 // pred_fallthru
      _
    // Predicated region
    $region58: #{tpu_custom_call.1} parent=1 // pred_check
      _
    $region59: #{tpu_custom_call.1} parent=1 // pred_check_branch
      %113 = sbr.rel (0) target = $region61
    $region60: #{tpu_custom_call.1} parent=1 // pred_region
      %114 = dma.done [#allocation14], 1024
    $region61: #{tpu_custom_call.1} parent=1 // pred_fallthru
      _
    %116 = vst [vmem:[#allocation3] sm:$0xff] 0.0
    %v117 = vld [vmem:[#allocation9] sm:$0xf]
    %v118 = vld [vmem:[#allocation9 + $0x4] sm:$0xf]
    %v119 = vld [vmem:[#allocation9 + $0x8] sm:$0xf]
    %v120 = vld [vmem:[#allocation9 + $0xc] sm:$0xf]
    %v121 = vld [vmem:[#allocation9 + $0x10] sm:$0xf]
    %v122 = vld [vmem:[#allocation9 + $0x14] sm:$0xf]
    %v123 = vld [vmem:[#allocation9 + $0x18] sm:$0xf]
    %v124 = vld [vmem:[#allocation9 + $0x1c] sm:$0xf]
    %v125 = vld [vmem:[#allocation9 + $0x20] sm:$0xf]
    %v126 = vld [vmem:[#allocation9 + $0x24] sm:$0xf]
    %v127 = vld [vmem:[#allocation9 + $0x28] sm:$0xf]
    %v128 = vld [vmem:[#allocation9 + $0x2c] sm:$0xf]
    %v129 = vld [vmem:[#allocation9 + $0x30] sm:$0xf]
    %v130 = vld [vmem:[#allocation9 + $0x34] sm:$0xf]
    %v131 = vld [vmem:[#allocation9 + $0x38] sm:$0xf]
    %v132 = vld [vmem:[#allocation9 + $0x3c] sm:$0xf]
    %v133 = vld [vmem:[#allocation4] sm:$0xff]
    %v134 = vld [vmem:[#allocation4 + $0x8] sm:$0xff]
    %v135 = vld [vmem:[#allocation4 + $0x10] sm:$0xff]
    %v136 = vld [vmem:[#allocation4 + $0x18] sm:$0xff]
    %v137 = vld [vmem:[#allocation4 + $0x20] sm:$0xff]
    %v138 = vld [vmem:[#allocation4 + $0x28] sm:$0xff]
    %v139 = vld [vmem:[#allocation4 + $0x30] sm:$0xff]
    %v140 = vld [vmem:[#allocation4 + $0x38] sm:$0xff]
    %v141 = vpack.c.bf16 %v134, %v133
    %v142 = vpack.c.bf16 %v136, %v135
    %v143 = vpack.c.bf16 %v138, %v137
    %v144 = vpack.c.bf16 %v140, %v139
    %v145 = vld [vmem:[#allocation7] sm:$0xf]
    %v146 = vld [vmem:[#allocation7 + $0x4] sm:$0xf]
    %v147 = vld [vmem:[#allocation7 + $0x8] sm:$0xf]
    %v148 = vld [vmem:[#allocation7 + $0xc] sm:$0xf]
    %v149 = vld [vmem:[#allocation7 + $0x10] sm:$0xf]
    %v150 = vld [vmem:[#allocation7 + $0x14] sm:$0xf]
    %v151 = vld [vmem:[#allocation7 + $0x18] sm:$0xf]
    %v152 = vld [vmem:[#allocation7 + $0x1c] sm:$0xf]
    %v153 = vld [vmem:[#allocation7 + $0x20] sm:$0xf]
    %v154 = vld [vmem:[#allocation7 + $0x24] sm:$0xf]
    %v155 = vld [vmem:[#allocation7 + $0x28] sm:$0xf]
    %v156 = vld [vmem:[#allocation7 + $0x2c] sm:$0xf]
    %v157 = vld [vmem:[#allocation7 + $0x30] sm:$0xf]
    %v158 = vld [vmem:[#allocation7 + $0x34] sm:$0xf]
    %v159 = vld [vmem:[#allocation7 + $0x38] sm:$0xf]
    %v160 = vld [vmem:[#allocation7 + $0x3c] sm:$0xf]
    %v161 = vld [vmem:[%s3] sm:$0x1]
    %v163 = vlaneseq
    %v164 = vshrl.u32 %v163, 7
    %v165 = vsub.s32 0, %v164
    %v166 = vrot.slane %v161, %v165
    %v184 = vunpack.c.l.b16 %v145
    %v185 = vunpack.c.l.b16 %v146
    %v186 = vunpack.c.l.b16 %v147
    %v187 = vunpack.c.l.b16 %v148
    %v188 = vunpack.c.l.b16 %v149
    %v189 = vunpack.c.l.b16 %v150
    %v190 = vunpack.c.l.b16 %v151
    %v191 = vunpack.c.l.b16 %v152
    %v192 = vunpack.c.l.b16 %v153
    %v193 = vunpack.c.l.b16 %v154
    %v194 = vunpack.c.l.b16 %v155
    %v195 = vunpack.c.l.b16 %v156
    %v196 = vunpack.c.l.b16 %v157
    %v197 = vunpack.c.l.b16 %v158
    %v198 = vunpack.c.l.b16 %v159
    %v199 = vunpack.c.l.b16 %v160
    %v200 = vpack.c.b16 %v185, %v184
    %v201 = vpack.c.b16 %v187, %v186
    %v202 = vpack.c.b16 %v189, %v188
    %v203 = vpack.c.b16 %v191, %v190
    %v204 = vpack.c.b16 %v193, %v192
    %v205 = vpack.c.b16 %v195, %v194
    %v206 = vpack.c.b16 %v197, %v196
    %v207 = vpack.c.b16 %v199, %v198
    %216 = vmatprep.subr.bf16.mxu0 0
    %217 = vmatpush1.bf16.msra.mxu0 %v207
    %218 = vmatprep.subr.bf16.mxu0 0
    %219 = vmatpush1.bf16.msra.mxu0 %v206
    %220 = vmatprep.subr.bf16.mxu0 0
    %221 = vmatpush1.bf16.msra.mxu0 %v205
    %222 = vmatprep.subr.bf16.mxu0 0
    %223 = vmatpush1.bf16.msra.mxu0 %v204
    %224 = vmatprep.subr.bf16.mxu0 0
    %225 = vmatpush1.bf16.msra.mxu0 %v203
    %226 = vmatprep.subr.bf16.mxu0 0
    %227 = vmatpush1.bf16.msra.mxu0 %v202
    %228 = vmatprep.subr.bf16.mxu0 0
    %229 = vmatpush1.bf16.msra.mxu0 %v201
    %230 = vmatprep.subr.bf16.mxu0 0
    %231 = vmatpush1.bf16.msra.mxu0 %v200
    %232 = vmatprep.subr.bf16.mxu0 0
    %233 = vmatpush2.bf16.msra.mxu0 0
    %234 = vmatprep.subr.bf16.mxu0 0
    %235 = vmatpush2.bf16.msra.mxu0 0
    %236 = vmatprep.subr.bf16.mxu0 0
    %237 = vmatpush2.bf16.msra.mxu0 0
    %238 = vmatprep.subr.bf16.mxu0 0
    %239 = vmatpush2.bf16.msra.mxu0 0
    %240 = vmatprep.subr.bf16.mxu0 0
    %241 = vmatpush2.bf16.msra.mxu0 0
    %242 = vmatprep.subr.bf16.mxu0 0
    %243 = vmatpush2.bf16.msra.mxu0 0
    %244 = vmatprep.subr.bf16.mxu0 0
    %245 = vmatpush2.bf16.msra.mxu0 0
    %246 = vmatprep.subr.bf16.mxu0 0
    %247 = vmatpush2.bf16.msra.mxu0 0
    %248 = vmatprep.mubr.bf16.mxu0 0
    %249 = vmatmul.mubr.bf16.gmra.mxu0 %v141
    %v250 = vpop.f32.mrf.mxu0
    %v251 = vadd.f32 %v166, %v250
    %v252 = vpop.f32.mrf.mxu0
    %v253 = vpop.f32.mrf.mxu0
    %v254 = vadd.f32 %v166, %v253
    %v255 = vpop.f32.mrf.mxu0
    %256 = vmatprep.mubr.bf16.mxu0 0
    %257 = vmatmul.mubr.bf16.gmra.mxu0 %v142
    %v258 = vpop.f32.mrf.mxu0
    %v259 = vadd.f32 %v166, %v258
    %v260 = vpop.f32.mrf.mxu0
    %v261 = vpop.f32.mrf.mxu0
    %v262 = vadd.f32 %v166, %v261
    %v263 = vpop.f32.mrf.mxu0
    %264 = vmatprep.mubr.bf16.mxu0 0
    %265 = vmatmul.mubr.bf16.gmra.mxu0 %v143
    %v266 = vpop.f32.mrf.mxu0
    %v267 = vadd.f32 %v166, %v266
    %v268 = vpop.f32.mrf.mxu0
    %v269 = vpop.f32.mrf.mxu0
    %v270 = vadd.f32 %v166, %v269
    %v271 = vpop.f32.mrf.mxu0
    %272 = vmatprep.mubr.bf16.mxu0 0
    %273 = vmatmul.mubr.bf16.gmra.mxu0 %v144
    %v274 = vpop.f32.mrf.mxu0
    %v275 = vadd.f32 %v166, %v274
    %v276 = vpop.f32.mrf.mxu0
    %v277 = vpop.f32.mrf.mxu0
    %v278 = vadd.f32 %v166, %v277
    %v279 = vpop.f32.mrf.mxu0
    %280 = vdwg.mxu0
    %281 = vst [vmem:[#allocation2] sm:$0xff] %v251
    %282 = vst [vmem:[#allocation2 + $0x8] sm:$0xff] %v254
    %283 = vst [vmem:[#allocation2 + $0x10] sm:$0xff] %v259
    %284 = vst [vmem:[#allocation2 + $0x18] sm:$0xff] %v262
    %285 = vst [vmem:[#allocation2 + $0x20] sm:$0xff] %v267
    %286 = vst [vmem:[#allocation2 + $0x28] sm:$0xff] %v270
    %287 = vst [vmem:[#allocation2 + $0x30] sm:$0xff] %v275
    %288 = vst [vmem:[#allocation2 + $0x38] sm:$0xff] %v278
    %v289 = vld [vmem:[#allocation2] sm:$0xff]
    %v290 = vld [vmem:[#allocation3] sm:$0xff]
    %v291 = vpack.c.bf16 %v290, %v290
    %v308 = vunpack.c.l.b16 %v117
    %v309 = vunpack.c.l.b16 %v118
    %v310 = vunpack.c.l.b16 %v119
    %v311 = vunpack.c.l.b16 %v120
    %v312 = vunpack.c.l.b16 %v121
    %v313 = vunpack.c.l.b16 %v122
    %v314 = vunpack.c.l.b16 %v123
    %v315 = vunpack.c.l.b16 %v124
    %v316 = vunpack.c.l.b16 %v125
    %v317 = vunpack.c.l.b16 %v126
    %v318 = vunpack.c.l.b16 %v127
    %v319 = vunpack.c.l.b16 %v128
    %v320 = vunpack.c.l.b16 %v129
    %v321 = vunpack.c.l.b16 %v130
    %v322 = vunpack.c.l.b16 %v131
    %v323 = vunpack.c.l.b16 %v132
    %v324 = vpack.c.b16 %v309, %v308
    %v325 = vpack.c.b16 %v311, %v310
    %v326 = vpack.c.b16 %v313, %v312
    %v327 = vpack.c.b16 %v315, %v314
    %v328 = vpack.c.b16 %v317, %v316
    %v329 = vpack.c.b16 %v319, %v318
    %v330 = vpack.c.b16 %v321, %v320
    %v331 = vpack.c.b16 %v323, %v322
    %340 = vmatprep.subr.bf16.mxu0 0
    %341 = vmatpush1.bf16.msra.mxu0 %v331
    %342 = vmatprep.subr.bf16.mxu0 0
    %343 = vmatpush1.bf16.msra.mxu0 %v330
    %344 = vmatprep.subr.bf16.mxu0 0
    %345 = vmatpush1.bf16.msra.mxu0 %v329
    %346 = vmatprep.subr.bf16.mxu0 0
    %347 = vmatpush1.bf16.msra.mxu0 %v328
    %348 = vmatprep.subr.bf16.mxu0 0
    %349 = vmatpush1.bf16.msra.mxu0 %v327
    %350 = vmatprep.subr.bf16.mxu0 0
    %351 = vmatpush1.bf16.msra.mxu0 %v326
    %352 = vmatprep.subr.bf16.mxu0 0
    %353 = vmatpush1.bf16.msra.mxu0 %v325
    %354 = vmatprep.subr.bf16.mxu0 0
    %355 = vmatpush1.bf16.msra.mxu0 %v324
    %356 = vmatprep.subr.bf16.mxu0 0
    %357 = vmatpush2.bf16.msra.mxu0 0
    %358 = vmatprep.subr.bf16.mxu0 0
    %359 = vmatpush2.bf16.msra.mxu0 0
    %360 = vmatprep.subr.bf16.mxu0 0
    %361 = vmatpush2.bf16.msra.mxu0 0
    %362 = vmatprep.subr.bf16.mxu0 0
    %363 = vmatpush2.bf16.msra.mxu0 0
    %364 = vmatprep.subr.bf16.mxu0 0
    %365 = vmatpush2.bf16.msra.mxu0 0
    %366 = vmatprep.subr.bf16.mxu0 0
    %367 = vmatpush2.bf16.msra.mxu0 0
    %368 = vmatprep.subr.bf16.mxu0 0
    %369 = vmatpush2.bf16.msra.mxu0 0
    %370 = vmatprep.subr.bf16.mxu0 0
    %371 = vmatpush2.bf16.msra.mxu0 0
    %372 = vmatprep.mubr.bf16.mxu0 0
    %373 = vmatmul.mubr.bf16.gmra.mxu0 %v291
    %v374 = vpop.f32.mrf.mxu0
    %v375 = vadd.f32 0.0, %v374
    %v376 = vpop.f32.mrf.mxu0
    %v377 = vpop.f32.mrf.mxu0
    %v378 = vpop.f32.mrf.mxu0
    %379 = vdwg.mxu0
    %v380 = vadd.f32 %v289, %v375
    %v381 = vtanh.pop %v380
    %382 = vst [vmem:[#allocation3] sm:$0xff] %v381
    %383 = vst [vmem:[#allocation2] sm:$0xff] %v381
    %s384 = scalar_lea.vmem [#allocation2], 8
    %v385 = vld [vmem:[%s384] sm:$0xff]
    %v386 = vld [vmem:[#allocation3] sm:$0xff]
    %v387 = vpack.c.bf16 %v386, %v386
    %388 = vmatprep.subr.bf16.mxu0 0
    %389 = vmatpush1.bf16.msra.mxu0 %v331
    %390 = vmatprep.subr.bf16.mxu0 0
    %391 = vmatpush1.bf16.msra.mxu0 %v330
    %392 = vmatprep.subr.bf16.mxu0 0
    %393 = vmatpush1.bf16.msra.mxu0 %v329
    %394 = vmatprep.subr.bf16.mxu0 0
    %395 = vmatpush1.bf16.msra.mxu0 %v328
    %396 = vmatprep.subr.bf16.mxu0 0
    %397 = vmatpush1.bf16.msra.mxu0 %v327
    %398 = vmatprep.subr.bf16.mxu0 0
    %399 = vmatpush1.bf16.msra.mxu0 %v326
    %400 = vmatprep.subr.bf16.mxu0 0
    %401 = vmatpush1.bf16.msra.mxu0 %v325
    %402 = vmatprep.subr.bf16.mxu0 0
    %403 = vmatpush1.bf16.msra.mxu0 %v324
    %404 = vmatprep.subr.bf16.mxu0 0
    %405 = vmatpush2.bf16.msra.mxu0 0
    %406 = vmatprep.subr.bf16.mxu0 0
    %407 = vmatpush2.bf16.msra.mxu0 0
    %408 = vmatprep.subr.bf16.mxu0 0
    %409 = vmatpush2.bf16.msra.mxu0 0
    %410 = vmatprep.subr.bf16.mxu0 0
    %411 = vmatpush2.bf16.msra.mxu0 0
    %412 = vmatprep.subr.bf16.mxu0 0
    %413 = vmatpush2.bf16.msra.mxu0 0
    %414 = vmatprep.subr.bf16.mxu0 0
    %415 = vmatpush2.bf16.msra.mxu0 0
    %416 = vmatprep.subr.bf16.mxu0 0
    %417 = vmatpush2.bf16.msra.mxu0 0
    %418 = vmatprep.subr.bf16.mxu0 0
    %419 = vmatpush2.bf16.msra.mxu0 0
    %420 = vmatprep.mubr.bf16.mxu0 0
    %421 = vmatmul.mubr.bf16.gmra.mxu0 %v387
    %v422 = vpop.f32.mrf.mxu0
    %v423 = vadd.f32 0.0, %v422
    %v424 = vpop.f32.mrf.mxu0
    %v425 = vpop.f32.mrf.mxu0
    %v426 = vpop.f32.mrf.mxu0
    %427 = vdwg.mxu0
    %v428 = vadd.f32 %v385, %v423
    %v429 = vtanh.pop %v428
    %430 = vst [vmem:[#allocation3] sm:$0xff] %v429
    %431 = vst [vmem:[%s384] sm:$0xff] %v429
    %s432 = scalar_lea.vmem [#allocation2], 16
    %v433 = vld [vmem:[%s432] sm:$0xff]
    %v434 = vld [vmem:[#allocation3] sm:$0xff]
    %v435 = vpack.c.bf16 %v434, %v434
    %436 = vmatprep.subr.bf16.mxu0 0
    %437 = vmatpush1.bf16.msra.mxu0 %v331
    %438 = vmatprep.subr.bf16.mxu0 0
    %439 = vmatpush1.bf16.msra.mxu0 %v330
    %440 = vmatprep.subr.bf16.mxu0 0
    %441 = vmatpush1.bf16.msra.mxu0 %v329
    %442 = vmatprep.subr.bf16.mxu0 0
    %443 = vmatpush1.bf16.msra.mxu0 %v328
    %444 = vmatprep.subr.bf16.mxu0 0
    %445 = vmatpush1.bf16.msra.mxu0 %v327
    %446 = vmatprep.subr.bf16.mxu0 0
    %447 = vmatpush1.bf16.msra.mxu0 %v326
    %448 = vmatprep.subr.bf16.mxu0 0
    %449 = vmatpush1.bf16.msra.mxu0 %v325
    %450 = vmatprep.subr.bf16.mxu0 0
    %451 = vmatpush1.bf16.msra.mxu0 %v324
    %452 = vmatprep.subr.bf16.mxu0 0
    %453 = vmatpush2.bf16.msra.mxu0 0
    %454 = vmatprep.subr.bf16.mxu0 0
    %455 = vmatpush2.bf16.msra.mxu0 0
    %456 = vmatprep.subr.bf16.mxu0 0
    %457 = vmatpush2.bf16.msra.mxu0 0
    %458 = vmatprep.subr.bf16.mxu0 0
    %459 = vmatpush2.bf16.msra.mxu0 0
    %460 = vmatprep.subr.bf16.mxu0 0
    %461 = vmatpush2.bf16.msra.mxu0 0
    %462 = vmatprep.subr.bf16.mxu0 0
    %463 = vmatpush2.bf16.msra.mxu0 0
    %464 = vmatprep.subr.bf16.mxu0 0
    %465 = vmatpush2.bf16.msra.mxu0 0
    %466 = vmatprep.subr.bf16.mxu0 0
    %467 = vmatpush2.bf16.msra.mxu0 0
    %468 = vmatprep.mubr.bf16.mxu0 0
    %469 = vmatmul.mubr.bf16.gmra.mxu0 %v435
    %v470 = vpop.f32.mrf.mxu0
    %v471 = vadd.f32 0.0, %v470
    %v472 = vpop.f32.mrf.mxu0
    %v473 = vpop.f32.mrf.mxu0
    %v474 = vpop.f32.mrf.mxu0
    %475 = vdwg.mxu0
    %v476 = vadd.f32 %v433, %v471
    %v477 = vtanh.pop %v476
    %478 = vst [vmem:[#allocation3] sm:$0xff] %v477
    %479 = vst [vmem:[%s432] sm:$0xff] %v477
    %s480 = scalar_lea.vmem [#allocation2], 24
    %v481 = vld [vmem:[%s480] sm:$0xff]
    %v482 = vld [vmem:[#allocation3] sm:$0xff]
    %v483 = vpack.c.bf16 %v482, %v482
    %484 = vmatprep.subr.bf16.mxu0 0
    %485 = vmatpush1.bf16.msra.mxu0 %v331
    %486 = vmatprep.subr.bf16.mxu0 0
    %487 = vmatpush1.bf16.msra.mxu0 %v330
    %488 = vmatprep.subr.bf16.mxu0 0
    %489 = vmatpush1.bf16.msra.mxu0 %v329
    %490 = vmatprep.subr.bf16.mxu0 0
    %491 = vmatpush1.bf16.msra.mxu0 %v328
    %492 = vmatprep.subr.bf16.mxu0 0
    %493 = vmatpush1.bf16.msra.mxu0 %v327
    %494 = vmatprep.subr.bf16.mxu0 0
    %495 = vmatpush1.bf16.msra.mxu0 %v326
    %496 = vmatprep.subr.bf16.mxu0 0
    %497 = vmatpush1.bf16.msra.mxu0 %v325
    %498 = vmatprep.subr.bf16.mxu0 0
    %499 = vmatpush1.bf16.msra.mxu0 %v324
    %500 = vmatprep.subr.bf16.mxu0 0
    %501 = vmatpush2.bf16.msra.mxu0 0
    %502 = vmatprep.subr.bf16.mxu0 0
    %503 = vmatpush2.bf16.msra.mxu0 0
    %504 = vmatprep.subr.bf16.mxu0 0
    %505 = vmatpush2.bf16.msra.mxu0 0
    %506 = vmatprep.subr.bf16.mxu0 0
    %507 = vmatpush2.bf16.msra.mxu0 0
    %508 = vmatprep.subr.bf16.mxu0 0
    %509 = vmatpush2.bf16.msra.mxu0 0
    %510 = vmatprep.subr.bf16.mxu0 0
    %511 = vmatpush2.bf16.msra.mxu0 0
    %512 = vmatprep.subr.bf16.mxu0 0
    %513 = vmatpush2.bf16.msra.mxu0 0
    %514 = vmatprep.subr.bf16.mxu0 0
    %515 = vmatpush2.bf16.msra.mxu0 0
    %516 = vmatprep.mubr.bf16.mxu0 0
    %517 = vmatmul.mubr.bf16.gmra.mxu0 %v483
    %v518 = vpop.f32.mrf.mxu0
    %v519 = vadd.f32 0.0, %v518
    %v520 = vpop.f32.mrf.mxu0
    %v521 = vpop.f32.mrf.mxu0
    %v522 = vpop.f32.mrf.mxu0
    %523 = vdwg.mxu0
    %v524 = vadd.f32 %v481, %v519
    %v525 = vtanh.pop %v524
    %526 = vst [vmem:[#allocation3] sm:$0xff] %v525
    %527 = vst [vmem:[%s480] sm:$0xff] %v525
    %s528 = scalar_lea.vmem [#allocation2], 32
    %v529 = vld [vmem:[%s528] sm:$0xff]
    %v530 = vld [vmem:[#allocation3] sm:$0xff]
    %v531 = vpack.c.bf16 %v530, %v530
    %532 = vmatprep.subr.bf16.mxu0 0
    %533 = vmatpush1.bf16.msra.mxu0 %v331
    %534 = vmatprep.subr.bf16.mxu0 0
    %535 = vmatpush1.bf16.msra.mxu0 %v330
    %536 = vmatprep.subr.bf16.mxu0 0
    %537 = vmatpush1.bf16.msra.mxu0 %v329
    %538 = vmatprep.subr.bf16.mxu0 0
    %539 = vmatpush1.bf16.msra.mxu0 %v328
    %540 = vmatprep.subr.bf16.mxu0 0
    %541 = vmatpush1.bf16.msra.mxu0 %v327
    %542 = vmatprep.subr.bf16.mxu0 0
    %543 = vmatpush1.bf16.msra.mxu0 %v326
    %544 = vmatprep.subr.bf16.mxu0 0
    %545 = vmatpush1.bf16.msra.mxu0 %v325
    %546 = vmatprep.subr.bf16.mxu0 0
    %547 = vmatpush1.bf16.msra.mxu0 %v324
    %548 = vmatprep.subr.bf16.mxu0 0
    %549 = vmatpush2.bf16.msra.mxu0 0
    %550 = vmatprep.subr.bf16.mxu0 0
    %551 = vmatpush2.bf16.msra.mxu0 0
    %552 = vmatprep.subr.bf16.mxu0 0
    %553 = vmatpush2.bf16.msra.mxu0 0
    %554 = vmatprep.subr.bf16.mxu0 0
    %555 = vmatpush2.bf16.msra.mxu0 0
    %556 = vmatprep.subr.bf16.mxu0 0
    %557 = vmatpush2.bf16.msra.mxu0 0
    %558 = vmatprep.subr.bf16.mxu0 0
    %559 = vmatpush2.bf16.msra.mxu0 0
    %560 = vmatprep.subr.bf16.mxu0 0
    %561 = vmatpush2.bf16.msra.mxu0 0
    %562 = vmatprep.subr.bf16.mxu0 0
    %563 = vmatpush2.bf16.msra.mxu0 0
    %564 = vmatprep.mubr.bf16.mxu0 0
    %565 = vmatmul.mubr.bf16.gmra.mxu0 %v531
    %v566 = vpop.f32.mrf.mxu0
    %v567 = vadd.f32 0.0, %v566
    %v568 = vpop.f32.mrf.mxu0
    %v569 = vpop.f32.mrf.mxu0
    %v570 = vpop.f32.mrf.mxu0
    %571 = vdwg.mxu0
    %v572 = vadd.f32 %v529, %v567
    %v573 = vtanh.pop %v572
    %574 = vst [vmem:[#allocation3] sm:$0xff] %v573
    %575 = vst [vmem:[%s528] sm:$0xff] %v573
    %s576 = scalar_lea.vmem [#allocation2], 40
    %v577 = vld [vmem:[%s576] sm:$0xff]
    %v578 = vld [vmem:[#allocation3] sm:$0xff]
    %v579 = vpack.c.bf16 %v578, %v578
    %580 = vmatprep.subr.bf16.mxu0 0
    %581 = vmatpush1.bf16.msra.mxu0 %v331
    %582 = vmatprep.subr.bf16.mxu0 0
    %583 = vmatpush1.bf16.msra.mxu0 %v330
    %584 = vmatprep.subr.bf16.mxu0 0
    %585 = vmatpush1.bf16.msra.mxu0 %v329
    %586 = vmatprep.subr.bf16.mxu0 0
    %587 = vmatpush1.bf16.msra.mxu0 %v328
    %588 = vmatprep.subr.bf16.mxu0 0
    %589 = vmatpush1.bf16.msra.mxu0 %v327
    %590 = vmatprep.subr.bf16.mxu0 0
    %591 = vmatpush1.bf16.msra.mxu0 %v326
    %592 = vmatprep.subr.bf16.mxu0 0
    %593 = vmatpush1.bf16.msra.mxu0 %v325
    %594 = vmatprep.subr.bf16.mxu0 0
    %595 = vmatpush1.bf16.msra.mxu0 %v324
    %596 = vmatprep.subr.bf16.mxu0 0
    %597 = vmatpush2.bf16.msra.mxu0 0
    %598 = vmatprep.subr.bf16.mxu0 0
    %599 = vmatpush2.bf16.msra.mxu0 0
    %600 = vmatprep.subr.bf16.mxu0 0
    %601 = vmatpush2.bf16.msra.mxu0 0
    %602 = vmatprep.subr.bf16.mxu0 0
    %603 = vmatpush2.bf16.msra.mxu0 0
    %604 = vmatprep.subr.bf16.mxu0 0
    %605 = vmatpush2.bf16.msra.mxu0 0
    %606 = vmatprep.subr.bf16.mxu0 0
    %607 = vmatpush2.bf16.msra.mxu0 0
    %608 = vmatprep.subr.bf16.mxu0 0
    %609 = vmatpush2.bf16.msra.mxu0 0
    %610 = vmatprep.subr.bf16.mxu0 0
    %611 = vmatpush2.bf16.msra.mxu0 0
    %612 = vmatprep.mubr.bf16.mxu0 0
    %613 = vmatmul.mubr.bf16.gmra.mxu0 %v579
    %v614 = vpop.f32.mrf.mxu0
    %v615 = vadd.f32 0.0, %v614
    %v616 = vpop.f32.mrf.mxu0
    %v617 = vpop.f32.mrf.mxu0
    %v618 = vpop.f32.mrf.mxu0
    %619 = vdwg.mxu0
    %v620 = vadd.f32 %v577, %v615
    %v621 = vtanh.pop %v620
    %622 = vst [vmem:[#allocation3] sm:$0xff] %v621
    %623 = vst [vmem:[%s576] sm:$0xff] %v621
    %s624 = scalar_lea.vmem [#allocation2], 48
    %v625 = vld [vmem:[%s624] sm:$0xff]
    %v626 = vld [vmem:[#allocation3] sm:$0xff]
    %v627 = vpack.c.bf16 %v626, %v626
    %628 = vmatprep.subr.bf16.mxu0 0
    %629 = vmatpush1.bf16.msra.mxu0 %v331
    %630 = vmatprep.subr.bf16.mxu0 0
    %631 = vmatpush1.bf16.msra.mxu0 %v330
    %632 = vmatprep.subr.bf16.mxu0 0
    %633 = vmatpush1.bf16.msra.mxu0 %v329
    %634 = vmatprep.subr.bf16.mxu0 0
    %635 = vmatpush1.bf16.msra.mxu0 %v328
    %636 = vmatprep.subr.bf16.mxu0 0
    %637 = vmatpush1.bf16.msra.mxu0 %v327
    %638 = vmatprep.subr.bf16.mxu0 0
    %639 = vmatpush1.bf16.msra.mxu0 %v326
    %640 = vmatprep.subr.bf16.mxu0 0
    %641 = vmatpush1.bf16.msra.mxu0 %v325
    %642 = vmatprep.subr.bf16.mxu0 0
    %643 = vmatpush1.bf16.msra.mxu0 %v324
    %644 = vmatprep.subr.bf16.mxu0 0
    %645 = vmatpush2.bf16.msra.mxu0 0
    %646 = vmatprep.subr.bf16.mxu0 0
    %647 = vmatpush2.bf16.msra.mxu0 0
    %648 = vmatprep.subr.bf16.mxu0 0
    %649 = vmatpush2.bf16.msra.mxu0 0
    %650 = vmatprep.subr.bf16.mxu0 0
    %651 = vmatpush2.bf16.msra.mxu0 0
    %652 = vmatprep.subr.bf16.mxu0 0
    %653 = vmatpush2.bf16.msra.mxu0 0
    %654 = vmatprep.subr.bf16.mxu0 0
    %655 = vmatpush2.bf16.msra.mxu0 0
    %656 = vmatprep.subr.bf16.mxu0 0
    %657 = vmatpush2.bf16.msra.mxu0 0
    %658 = vmatprep.subr.bf16.mxu0 0
    %659 = vmatpush2.bf16.msra.mxu0 0
    %660 = vmatprep.mubr.bf16.mxu0 0
    %661 = vmatmul.mubr.bf16.gmra.mxu0 %v627
    %v662 = vpop.f32.mrf.mxu0
    %v663 = vadd.f32 0.0, %v662
    %v664 = vpop.f32.mrf.mxu0
    %v665 = vpop.f32.mrf.mxu0
    %v666 = vpop.f32.mrf.mxu0
    %667 = vdwg.mxu0
    %v668 = vadd.f32 %v625, %v663
    %v669 = vtanh.pop %v668
    %670 = vst [vmem:[#allocation3] sm:$0xff] %v669
    %671 = vst [vmem:[%s624] sm:$0xff] %v669
    %s672 = scalar_lea.vmem [#allocation2], 56
    %v673 = vld [vmem:[%s672] sm:$0xff]
    %v674 = vld [vmem:[#allocation3] sm:$0xff]
    %v675 = vpack.c.bf16 %v674, %v674
    %676 = vmatprep.subr.bf16.mxu0 0
    %677 = vmatpush1.bf16.msra.mxu0 %v331
    %678 = vmatprep.subr.bf16.mxu0 0
    %679 = vmatpush1.bf16.msra.mxu0 %v330
    %680 = vmatprep.subr.bf16.mxu0 0
    %681 = vmatpush1.bf16.msra.mxu0 %v329
    %682 = vmatprep.subr.bf16.mxu0 0
    %683 = vmatpush1.bf16.msra.mxu0 %v328
    %684 = vmatprep.subr.bf16.mxu0 0
    %685 = vmatpush1.bf16.msra.mxu0 %v327
    %686 = vmatprep.subr.bf16.mxu0 0
    %687 = vmatpush1.bf16.msra.mxu0 %v326
    %688 = vmatprep.subr.bf16.mxu0 0
    %689 = vmatpush1.bf16.msra.mxu0 %v325
    %690 = vmatprep.subr.bf16.mxu0 0
    %691 = vmatpush1.bf16.msra.mxu0 %v324
    %692 = vmatprep.subr.bf16.mxu0 0
    %693 = vmatpush2.bf16.msra.mxu0 0
    %694 = vmatprep.subr.bf16.mxu0 0
    %695 = vmatpush2.bf16.msra.mxu0 0
    %696 = vmatprep.subr.bf16.mxu0 0
    %697 = vmatpush2.bf16.msra.mxu0 0
    %698 = vmatprep.subr.bf16.mxu0 0
    %699 = vmatpush2.bf16.msra.mxu0 0
    %700 = vmatprep.subr.bf16.mxu0 0
    %701 = vmatpush2.bf16.msra.mxu0 0
    %702 = vmatprep.subr.bf16.mxu0 0
    %703 = vmatpush2.bf16.msra.mxu0 0
    %704 = vmatprep.subr.bf16.mxu0 0
    %705 = vmatpush2.bf16.msra.mxu0 0
    %706 = vmatprep.subr.bf16.mxu0 0
    %707 = vmatpush2.bf16.msra.mxu0 0
    %708 = vmatprep.mubr.bf16.mxu0 0
    %709 = vmatmul.mubr.bf16.gmra.mxu0 %v675
    %v710 = vpop.f32.mrf.mxu0
    %v711 = vadd.f32 0.0, %v710
    %v712 = vpop.f32.mrf.mxu0
    %v713 = vpop.f32.mrf.mxu0
    %v714 = vpop.f32.mrf.mxu0
    %715 = vdwg.mxu0
    %v716 = vadd.f32 %v673, %v711
    %v717 = vtanh.pop %v716
    %718 = vst [vmem:[#allocation3] sm:$0xff] %v717
    %719 = vst [vmem:[%s672] sm:$0xff] %v717
    %720 = vst [vmem:[#allocation3] sm:$0xff] 0.0
    %v721 = vld [vmem:[#allocation12] sm:$0xf]
    %v722 = vld [vmem:[#allocation12 + $0x4] sm:$0xf]
    %v723 = vld [vmem:[#allocation12 + $0x8] sm:$0xf]
    %v724 = vld [vmem:[#allocation12 + $0xc] sm:$0xf]
    %v725 = vld [vmem:[#allocation12 + $0x10] sm:$0xf]
    %v726 = vld [vmem:[#allocation12 + $0x14] sm:$0xf]
    %v727 = vld [vmem:[#allocation12 + $0x18] sm:$0xf]
    %v728 = vld [vmem:[#allocation12 + $0x1c] sm:$0xf]
    %v729 = vld [vmem:[#allocation12 + $0x20] sm:$0xf]
    %v730 = vld [vmem:[#allocation12 + $0x24] sm:$0xf]
    %v731 = vld [vmem:[#allocation12 + $0x28] sm:$0xf]
    %v732 = vld [vmem:[#allocation12 + $0x2c] sm:$0xf]
    %v733 = vld [vmem:[#allocation12 + $0x30] sm:$0xf]
    %v734 = vld [vmem:[#allocation12 + $0x34] sm:$0xf]
    %v735 = vld [vmem:[#allocation12 + $0x38] sm:$0xf]
    %v736 = vld [vmem:[#allocation12 + $0x3c] sm:$0xf]
    %v737 = vld [vmem:[#allocation2] sm:$0xff]
    %v738 = vld [vmem:[#allocation2 + $0x8] sm:$0xff]
    %v739 = vld [vmem:[#allocation2 + $0x10] sm:$0xff]
    %v740 = vld [vmem:[#allocation2 + $0x18] sm:$0xff]
    %v741 = vld [vmem:[#allocation2 + $0x20] sm:$0xff]
    %v742 = vld [vmem:[#allocation2 + $0x28] sm:$0xff]
    %v743 = vld [vmem:[#allocation2 + $0x30] sm:$0xff]
    %v744 = vld [vmem:[#allocation2 + $0x38] sm:$0xff]
    %v745 = vpack.c.bf16 %v738, %v737
    %v746 = vpack.c.bf16 %v740, %v739
    %v747 = vpack.c.bf16 %v742, %v741
    %v748 = vpack.c.bf16 %v744, %v743
    %v749 = vld [vmem:[#allocation10] sm:$0xf]
    %v750 = vld [vmem:[#allocation10 + $0x4] sm:$0xf]
    %v751 = vld [vmem:[#allocation10 + $0x8] sm:$0xf]
    %v752 = vld [vmem:[#allocation10 + $0xc] sm:$0xf]
    %v753 = vld [vmem:[#allocation10 + $0x10] sm:$0xf]
    %v754 = vld [vmem:[#allocation10 + $0x14] sm:$0xf]
    %v755 = vld [vmem:[#allocation10 + $0x18] sm:$0xf]
    %v756 = vld [vmem:[#allocation10 + $0x1c] sm:$0xf]
    %v757 = vld [vmem:[#allocation10 + $0x20] sm:$0xf]
    %v758 = vld [vmem:[#allocation10 + $0x24] sm:$0xf]
    %v759 = vld [vmem:[#allocation10 + $0x28] sm:$0xf]
    %v760 = vld [vmem:[#allocation10 + $0x2c] sm:$0xf]
    %v761 = vld [vmem:[#allocation10 + $0x30] sm:$0xf]
    %v762 = vld [vmem:[#allocation10 + $0x34] sm:$0xf]
    %v763 = vld [vmem:[#allocation10 + $0x38] sm:$0xf]
    %v764 = vld [vmem:[#allocation10 + $0x3c] sm:$0xf]
    %v765 = vld [vmem:[%s6] sm:$0x1]
    %v767 = vlaneseq
    %v768 = vshrl.u32 %v767, 7
    %v769 = vsub.s32 0, %v768
    %v770 = vrot.slane %v765, %v769
    %v788 = vunpack.c.l.b16 %v749
    %v789 = vunpack.c.l.b16 %v750
    %v790 = vunpack.c.l.b16 %v751
    %v791 = vunpack.c.l.b16 %v752
    %v792 = vunpack.c.l.b16 %v753
    %v793 = vunpack.c.l.b16 %v754
    %v794 = vunpack.c.l.b16 %v755
    %v795 = vunpack.c.l.b16 %v756
    %v796 = vunpack.c.l.b16 %v757
    %v797 = vunpack.c.l.b16 %v758
    %v798 = vunpack.c.l.b16 %v759
    %v799 = vunpack.c.l.b16 %v760
    %v800 = vunpack.c.l.b16 %v761
    %v801 = vunpack.c.l.b16 %v762
    %v802 = vunpack.c.l.b16 %v763
    %v803 = vunpack.c.l.b16 %v764
    %v804 = vpack.c.b16 %v789, %v788
    %v805 = vpack.c.b16 %v791, %v790
    %v806 = vpack.c.b16 %v793, %v792
    %v807 = vpack.c.b16 %v795, %v794
    %v808 = vpack.c.b16 %v797, %v796
    %v809 = vpack.c.b16 %v799, %v798
    %v810 = vpack.c.b16 %v801, %v800
    %v811 = vpack.c.b16 %v803, %v802
    %820 = vmatprep.subr.bf16.mxu0 0
    %821 = vmatpush1.bf16.msra.mxu0 %v811
    %822 = vmatprep.subr.bf16.mxu0 0
    %823 = vmatpush1.bf16.msra.mxu0 %v810
    %824 = vmatprep.subr.bf16.mxu0 0
    %825 = vmatpush1.bf16.msra.mxu0 %v809
    %826 = vmatprep.subr.bf16.mxu0 0
    %827 = vmatpush1.bf16.msra.mxu0 %v808
    %828 = vmatprep.subr.bf16.mxu0 0
    %829 = vmatpush1.bf16.msra.mxu0 %v807
    %830 = vmatprep.subr.bf16.mxu0 0
    %831 = vmatpush1.bf16.msra.mxu0 %v806
    %832 = vmatprep.subr.bf16.mxu0 0
    %833 = vmatpush1.bf16.msra.mxu0 %v805
    %834 = vmatprep.subr.bf16.mxu0 0
    %835 = vmatpush1.bf16.msra.mxu0 %v804
    %836 = vmatprep.subr.bf16.mxu0 0
    %837 = vmatpush2.bf16.msra.mxu0 0
    %838 = vmatprep.subr.bf16.mxu0 0
    %839 = vmatpush2.bf16.msra.mxu0 0
    %840 = vmatprep.subr.bf16.mxu0 0
    %841 = vmatpush2.bf16.msra.mxu0 0
    %842 = vmatprep.subr.bf16.mxu0 0
    %843 = vmatpush2.bf16.msra.mxu0 0
    %844 = vmatprep.subr.bf16.mxu0 0
    %845 = vmatpush2.bf16.msra.mxu0 0
    %846 = vmatprep.subr.bf16.mxu0 0
    %847 = vmatpush2.bf16.msra.mxu0 0
    %848 = vmatprep.subr.bf16.mxu0 0
    %849 = vmatpush2.bf16.msra.mxu0 0
    %850 = vmatprep.subr.bf16.mxu0 0
    %851 = vmatpush2.bf16.msra.mxu0 0
    %852 = vmatprep.mubr.bf16.mxu0 0
    %853 = vmatmul.mubr.bf16.gmra.mxu0 %v745
    %v854 = vpop.f32.mrf.mxu0
    %v855 = vadd.f32 %v770, %v854
    %v856 = vpop.f32.mrf.mxu0
    %v857 = vpop.f32.mrf.mxu0
    %v858 = vadd.f32 %v770, %v857
    %v859 = vpop.f32.mrf.mxu0
    %860 = vmatprep.mubr.bf16.mxu0 0
    %861 = vmatmul.mubr.bf16.gmra.mxu0 %v746
    %v862 = vpop.f32.mrf.mxu0
    %v863 = vadd.f32 %v770, %v862
    %v864 = vpop.f32.mrf.mxu0
    %v865 = vpop.f32.mrf.mxu0
    %v866 = vadd.f32 %v770, %v865
    %v867 = vpop.f32.mrf.mxu0
    %868 = vmatprep.mubr.bf16.mxu0 0
    %869 = vmatmul.mubr.bf16.gmra.mxu0 %v747
    %v870 = vpop.f32.mrf.mxu0
    %v871 = vadd.f32 %v770, %v870
    %v872 = vpop.f32.mrf.mxu0
    %v873 = vpop.f32.mrf.mxu0
    %v874 = vadd.f32 %v770, %v873
    %v875 = vpop.f32.mrf.mxu0
    %876 = vmatprep.mubr.bf16.mxu0 0
    %877 = vmatmul.mubr.bf16.gmra.mxu0 %v748
    %v878 = vpop.f32.mrf.mxu0
    %v879 = vadd.f32 %v770, %v878
    %v880 = vpop.f32.mrf.mxu0
    %v881 = vpop.f32.mrf.mxu0
    %v882 = vadd.f32 %v770, %v881
    %v883 = vpop.f32.mrf.mxu0
    %884 = vdwg.mxu0
    %885 = vst [vmem:[#allocation2] sm:$0xff] %v855
    %886 = vst [vmem:[#allocation2 + $0x8] sm:$0xff] %v858
    %887 = vst [vmem:[#allocation2 + $0x10] sm:$0xff] %v863
    %888 = vst [vmem:[#allocation2 + $0x18] sm:$0xff] %v866
    %889 = vst [vmem:[#allocation2 + $0x20] sm:$0xff] %v871
    %890 = vst [vmem:[#allocation2 + $0x28] sm:$0xff] %v874
    %891 = vst [vmem:[#allocation2 + $0x30] sm:$0xff] %v879
    %892 = vst [vmem:[#allocation2 + $0x38] sm:$0xff] %v882
    %v893 = vld [vmem:[#allocation2] sm:$0xff]
    %v894 = vld [vmem:[#allocation3] sm:$0xff]
    %v895 = vpack.c.bf16 %v894, %v894
    %v912 = vunpack.c.l.b16 %v721
    %v913 = vunpack.c.l.b16 %v722
    %v914 = vunpack.c.l.b16 %v723
    %v915 = vunpack.c.l.b16 %v724
    %v916 = vunpack.c.l.b16 %v725
    %v917 = vunpack.c.l.b16 %v726
    %v918 = vunpack.c.l.b16 %v727
    %v919 = vunpack.c.l.b16 %v728
    %v920 = vunpack.c.l.b16 %v729
    %v921 = vunpack.c.l.b16 %v730
    %v922 = vunpack.c.l.b16 %v731
    %v923 = vunpack.c.l.b16 %v732
    %v924 = vunpack.c.l.b16 %v733
    %v925 = vunpack.c.l.b16 %v734
    %v926 = vunpack.c.l.b16 %v735
    %v927 = vunpack.c.l.b16 %v736
    %v928 = vpack.c.b16 %v913, %v912
    %v929 = vpack.c.b16 %v915, %v914
    %v930 = vpack.c.b16 %v917, %v916
    %v931 = vpack.c.b16 %v919, %v918
    %v932 = vpack.c.b16 %v921, %v920
    %v933 = vpack.c.b16 %v923, %v922
    %v934 = vpack.c.b16 %v925, %v924
    %v935 = vpack.c.b16 %v927, %v926
    %944 = vmatprep.subr.bf16.mxu0 0
    %945 = vmatpush1.bf16.msra.mxu0 %v935
    %946 = vmatprep.subr.bf16.mxu0 0
    %947 = vmatpush1.bf16.msra.mxu0 %v934
    %948 = vmatprep.subr.bf16.mxu0 0
    %949 = vmatpush1.bf16.msra.mxu0 %v933
    %950 = vmatprep.subr.bf16.mxu0 0
    %951 = vmatpush1.bf16.msra.mxu0 %v932
    %952 = vmatprep.subr.bf16.mxu0 0
    %953 = vmatpush1.bf16.msra.mxu0 %v931
    %954 = vmatprep.subr.bf16.mxu0 0
    %955 = vmatpush1.bf16.msra.mxu0 %v930
    %956 = vmatprep.subr.bf16.mxu0 0
    %957 = vmatpush1.bf16.msra.mxu0 %v929
    %958 = vmatprep.subr.bf16.mxu0 0
    %959 = vmatpush1.bf16.msra.mxu0 %v928
    %960 = vmatprep.subr.bf16.mxu0 0
    %961 = vmatpush2.bf16.msra.mxu0 0
    %962 = vmatprep.subr.bf16.mxu0 0
    %963 = vmatpush2.bf16.msra.mxu0 0
    %964 = vmatprep.subr.bf16.mxu0 0
    %965 = vmatpush2.bf16.msra.mxu0 0
    %966 = vmatprep.subr.bf16.mxu0 0
    %967 = vmatpush2.bf16.msra.mxu0 0
    %968 = vmatprep.subr.bf16.mxu0 0
    %969 = vmatpush2.bf16.msra.mxu0 0
    %970 = vmatprep.subr.bf16.mxu0 0
    %971 = vmatpush2.bf16.msra.mxu0 0
    %972 = vmatprep.subr.bf16.mxu0 0
    %973 = vmatpush2.bf16.msra.mxu0 0
    %974 = vmatprep.subr.bf16.mxu0 0
    %975 = vmatpush2.bf16.msra.mxu0 0
    %976 = vmatprep.mubr.bf16.mxu0 0
    %977 = vmatmul.mubr.bf16.gmra.mxu0 %v895
    %v978 = vpop.f32.mrf.mxu0
    %v979 = vadd.f32 0.0, %v978
    %v980 = vpop.f32.mrf.mxu0
    %v981 = vpop.f32.mrf.mxu0
    %v982 = vpop.f32.mrf.mxu0
    %983 = vdwg.mxu0
    %v984 = vadd.f32 %v893, %v979
    %v985 = vtanh.pop %v984
    %986 = vst [vmem:[#allocation3] sm:$0xff] %v985
    %v987 = vld [vmem:[%s384] sm:$0xff]
    %v988 = vld [vmem:[#allocation3] sm:$0xff]
    %v989 = vpack.c.bf16 %v988, %v988
    %990 = vmatprep.subr.bf16.mxu0 0
    %991 = vmatpush1.bf16.msra.mxu0 %v935
    %992 = vmatprep.subr.bf16.mxu0 0
    %993 = vmatpush1.bf16.msra.mxu0 %v934
    %994 = vmatprep.subr.bf16.mxu0 0
    %995 = vmatpush1.bf16.msra.mxu0 %v933
    %996 = vmatprep.subr.bf16.mxu0 0
    %997 = vmatpush1.bf16.msra.mxu0 %v932
    %998 = vmatprep.subr.bf16.mxu0 0
    %999 = vmatpush1.bf16.msra.mxu0 %v931
    %1000 = vmatprep.subr.bf16.mxu0 0
    %1001 = vmatpush1.bf16.msra.mxu0 %v930
    %1002 = vmatprep.subr.bf16.mxu0 0
    %1003 = vmatpush1.bf16.msra.mxu0 %v929
    %1004 = vmatprep.subr.bf16.mxu0 0
    %1005 = vmatpush1.bf16.msra.mxu0 %v928
    %1006 = vmatprep.subr.bf16.mxu0 0
    %1007 = vmatpush2.bf16.msra.mxu0 0
    %1008 = vmatprep.subr.bf16.mxu0 0
    %1009 = vmatpush2.bf16.msra.mxu0 0
    %1010 = vmatprep.subr.bf16.mxu0 0
    %1011 = vmatpush2.bf16.msra.mxu0 0
    %1012 = vmatprep.subr.bf16.mxu0 0
    %1013 = vmatpush2.bf16.msra.mxu0 0
    %1014 = vmatprep.subr.bf16.mxu0 0
    %1015 = vmatpush2.bf16.msra.mxu0 0
    %1016 = vmatprep.subr.bf16.mxu0 0
    %1017 = vmatpush2.bf16.msra.mxu0 0
    %1018 = vmatprep.subr.bf16.mxu0 0
    %1019 = vmatpush2.bf16.msra.mxu0 0
    %1020 = vmatprep.subr.bf16.mxu0 0
    %1021 = vmatpush2.bf16.msra.mxu0 0
    %1022 = vmatprep.mubr.bf16.mxu0 0
    %1023 = vmatmul.mubr.bf16.gmra.mxu0 %v989
    %v1024 = vpop.f32.mrf.mxu0
    %v1025 = vadd.f32 0.0, %v1024
    %v1026 = vpop.f32.mrf.mxu0
    %v1027 = vpop.f32.mrf.mxu0
    %v1028 = vpop.f32.mrf.mxu0
    %1029 = vdwg.mxu0
    %v1030 = vadd.f32 %v987, %v1025
    %v1031 = vtanh.pop %v1030
    %1032 = vst [vmem:[#allocation3] sm:$0xff] %v1031
    %v1033 = vld [vmem:[%s432] sm:$0xff]
    %v1034 = vld [vmem:[#allocation3] sm:$0xff]
    %v1035 = vpack.c.bf16 %v1034, %v1034
    %1036 = vmatprep.subr.bf16.mxu0 0
    %1037 = vmatpush1.bf16.msra.mxu0 %v935
    %1038 = vmatprep.subr.bf16.mxu0 0
    %1039 = vmatpush1.bf16.msra.mxu0 %v934
    %1040 = vmatprep.subr.bf16.mxu0 0
    %1041 = vmatpush1.bf16.msra.mxu0 %v933
    %1042 = vmatprep.subr.bf16.mxu0 0
    %1043 = vmatpush1.bf16.msra.mxu0 %v932
    %1044 = vmatprep.subr.bf16.mxu0 0
    %1045 = vmatpush1.bf16.msra.mxu0 %v931
    %1046 = vmatprep.subr.bf16.mxu0 0
    %1047 = vmatpush1.bf16.msra.mxu0 %v930
    %1048 = vmatprep.subr.bf16.mxu0 0
    %1049 = vmatpush1.bf16.msra.mxu0 %v929
    %1050 = vmatprep.subr.bf16.mxu0 0
    %1051 = vmatpush1.bf16.msra.mxu0 %v928
    %1052 = vmatprep.subr.bf16.mxu0 0
    %1053 = vmatpush2.bf16.msra.mxu0 0
    %1054 = vmatprep.subr.bf16.mxu0 0
    %1055 = vmatpush2.bf16.msra.mxu0 0
    %1056 = vmatprep.subr.bf16.mxu0 0
    %1057 = vmatpush2.bf16.msra.mxu0 0
    %1058 = vmatprep.subr.bf16.mxu0 0
    %1059 = vmatpush2.bf16.msra.mxu0 0
    %1060 = vmatprep.subr.bf16.mxu0 0
    %1061 = vmatpush2.bf16.msra.mxu0 0
    %1062 = vmatprep.subr.bf16.mxu0 0
    %1063 = vmatpush2.bf16.msra.mxu0 0
    %1064 = vmatprep.subr.bf16.mxu0 0
    %1065 = vmatpush2.bf16.msra.mxu0 0
    %1066 = vmatprep.subr.bf16.mxu0 0
    %1067 = vmatpush2.bf16.msra.mxu0 0
    %1068 = vmatprep.mubr.bf16.mxu0 0
    %1069 = vmatmul.mubr.bf16.gmra.mxu0 %v1035
    %v1070 = vpop.f32.mrf.mxu0
    %v1071 = vadd.f32 0.0, %v1070
    %v1072 = vpop.f32.mrf.mxu0
    %v1073 = vpop.f32.mrf.mxu0
    %v1074 = vpop.f32.mrf.mxu0
    %1075 = vdwg.mxu0
    %v1076 = vadd.f32 %v1033, %v1071
    %v1077 = vtanh.pop %v1076
    %1078 = vst [vmem:[#allocation3] sm:$0xff] %v1077
    %v1079 = vld [vmem:[%s480] sm:$0xff]
    %v1080 = vld [vmem:[#allocation3] sm:$0xff]
    %v1081 = vpack.c.bf16 %v1080, %v1080
    %1082 = vmatprep.subr.bf16.mxu0 0
    %1083 = vmatpush1.bf16.msra.mxu0 %v935
    %1084 = vmatprep.subr.bf16.mxu0 0
    %1085 = vmatpush1.bf16.msra.mxu0 %v934
    %1086 = vmatprep.subr.bf16.mxu0 0
    %1087 = vmatpush1.bf16.msra.mxu0 %v933
    %1088 = vmatprep.subr.bf16.mxu0 0
    %1089 = vmatpush1.bf16.msra.mxu0 %v932
    %1090 = vmatprep.subr.bf16.mxu0 0
    %1091 = vmatpush1.bf16.msra.mxu0 %v931
    %1092 = vmatprep.subr.bf16.mxu0 0
    %1093 = vmatpush1.bf16.msra.mxu0 %v930
    %1094 = vmatprep.subr.bf16.mxu0 0
    %1095 = vmatpush1.bf16.msra.mxu0 %v929
    %1096 = vmatprep.subr.bf16.mxu0 0
    %1097 = vmatpush1.bf16.msra.mxu0 %v928
    %1098 = vmatprep.subr.bf16.mxu0 0
    %1099 = vmatpush2.bf16.msra.mxu0 0
    %1100 = vmatprep.subr.bf16.mxu0 0
    %1101 = vmatpush2.bf16.msra.mxu0 0
    %1102 = vmatprep.subr.bf16.mxu0 0
    %1103 = vmatpush2.bf16.msra.mxu0 0
    %1104 = vmatprep.subr.bf16.mxu0 0
    %1105 = vmatpush2.bf16.msra.mxu0 0
    %1106 = vmatprep.subr.bf16.mxu0 0
    %1107 = vmatpush2.bf16.msra.mxu0 0
    %1108 = vmatprep.subr.bf16.mxu0 0
    %1109 = vmatpush2.bf16.msra.mxu0 0
    %1110 = vmatprep.subr.bf16.mxu0 0
    %1111 = vmatpush2.bf16.msra.mxu0 0
    %1112 = vmatprep.subr.bf16.mxu0 0
    %1113 = vmatpush2.bf16.msra.mxu0 0
    %1114 = vmatprep.mubr.bf16.mxu0 0
    %1115 = vmatmul.mubr.bf16.gmra.mxu0 %v1081
    %v1116 = vpop.f32.mrf.mxu0
    %v1117 = vadd.f32 0.0, %v1116
    %v1118 = vpop.f32.mrf.mxu0
    %v1119 = vpop.f32.mrf.mxu0
    %v1120 = vpop.f32.mrf.mxu0
    %1121 = vdwg.mxu0
    %v1122 = vadd.f32 %v1079, %v1117
    %v1123 = vtanh.pop %v1122
    %1124 = vst [vmem:[#allocation3] sm:$0xff] %v1123
    %v1125 = vld [vmem:[%s528] sm:$0xff]
    %v1126 = vld [vmem:[#allocation3] sm:$0xff]
    %v1127 = vpack.c.bf16 %v1126, %v1126
    %1128 = vmatprep.subr.bf16.mxu0 0
    %1129 = vmatpush1.bf16.msra.mxu0 %v935
    %1130 = vmatprep.subr.bf16.mxu0 0
    %1131 = vmatpush1.bf16.msra.mxu0 %v934
    %1132 = vmatprep.subr.bf16.mxu0 0
    %1133 = vmatpush1.bf16.msra.mxu0 %v933
    %1134 = vmatprep.subr.bf16.mxu0 0
    %1135 = vmatpush1.bf16.msra.mxu0 %v932
    %1136 = vmatprep.subr.bf16.mxu0 0
    %1137 = vmatpush1.bf16.msra.mxu0 %v931
    %1138 = vmatprep.subr.bf16.mxu0 0
    %1139 = vmatpush1.bf16.msra.mxu0 %v930
    %1140 = vmatprep.subr.bf16.mxu0 0
    %1141 = vmatpush1.bf16.msra.mxu0 %v929
    %1142 = vmatprep.subr.bf16.mxu0 0
    %1143 = vmatpush1.bf16.msra.mxu0 %v928
    %1144 = vmatprep.subr.bf16.mxu0 0
    %1145 = vmatpush2.bf16.msra.mxu0 0
    %1146 = vmatprep.subr.bf16.mxu0 0
    %1147 = vmatpush2.bf16.msra.mxu0 0
    %1148 = vmatprep.subr.bf16.mxu0 0
    %1149 = vmatpush2.bf16.msra.mxu0 0
    %1150 = vmatprep.subr.bf16.mxu0 0
    %1151 = vmatpush2.bf16.msra.mxu0 0
    %1152 = vmatprep.subr.bf16.mxu0 0
    %1153 = vmatpush2.bf16.msra.mxu0 0
    %1154 = vmatprep.subr.bf16.mxu0 0
    %1155 = vmatpush2.bf16.msra.mxu0 0
    %1156 = vmatprep.subr.bf16.mxu0 0
    %1157 = vmatpush2.bf16.msra.mxu0 0
    %1158 = vmatprep.subr.bf16.mxu0 0
    %1159 = vmatpush2.bf16.msra.mxu0 0
    %1160 = vmatprep.mubr.bf16.mxu0 0
    %1161 = vmatmul.mubr.bf16.gmra.mxu0 %v1127
    %v1162 = vpop.f32.mrf.mxu0
    %v1163 = vadd.f32 0.0, %v1162
    %v1164 = vpop.f32.mrf.mxu0
    %v1165 = vpop.f32.mrf.mxu0
    %v1166 = vpop.f32.mrf.mxu0
    %1167 = vdwg.mxu0
    %v1168 = vadd.f32 %v1125, %v1163
    %v1169 = vtanh.pop %v1168
    %1170 = vst [vmem:[#allocation3] sm:$0xff] %v1169
    %v1171 = vld [vmem:[%s576] sm:$0xff]
    %v1172 = vld [vmem:[#allocation3] sm:$0xff]
    %v1173 = vpack.c.bf16 %v1172, %v1172
    %1174 = vmatprep.subr.bf16.mxu0 0
    %1175 = vmatpush1.bf16.msra.mxu0 %v935
    %1176 = vmatprep.subr.bf16.mxu0 0
    %1177 = vmatpush1.bf16.msra.mxu0 %v934
    %1178 = vmatprep.subr.bf16.mxu0 0
    %1179 = vmatpush1.bf16.msra.mxu0 %v933
    %1180 = vmatprep.subr.bf16.mxu0 0
    %1181 = vmatpush1.bf16.msra.mxu0 %v932
    %1182 = vmatprep.subr.bf16.mxu0 0
    %1183 = vmatpush1.bf16.msra.mxu0 %v931
    %1184 = vmatprep.subr.bf16.mxu0 0
    %1185 = vmatpush1.bf16.msra.mxu0 %v930
    %1186 = vmatprep.subr.bf16.mxu0 0
    %1187 = vmatpush1.bf16.msra.mxu0 %v929
    %1188 = vmatprep.subr.bf16.mxu0 0
    %1189 = vmatpush1.bf16.msra.mxu0 %v928
    %1190 = vmatprep.subr.bf16.mxu0 0
    %1191 = vmatpush2.bf16.msra.mxu0 0
    %1192 = vmatprep.subr.bf16.mxu0 0
    %1193 = vmatpush2.bf16.msra.mxu0 0
    %1194 = vmatprep.subr.bf16.mxu0 0
    %1195 = vmatpush2.bf16.msra.mxu0 0
    %1196 = vmatprep.subr.bf16.mxu0 0
    %1197 = vmatpush2.bf16.msra.mxu0 0
    %1198 = vmatprep.subr.bf16.mxu0 0
    %1199 = vmatpush2.bf16.msra.mxu0 0
    %1200 = vmatprep.subr.bf16.mxu0 0
    %1201 = vmatpush2.bf16.msra.mxu0 0
    %1202 = vmatprep.subr.bf16.mxu0 0
    %1203 = vmatpush2.bf16.msra.mxu0 0
    %1204 = vmatprep.subr.bf16.mxu0 0
    %1205 = vmatpush2.bf16.msra.mxu0 0
    %1206 = vmatprep.mubr.bf16.mxu0 0
    %1207 = vmatmul.mubr.bf16.gmra.mxu0 %v1173
    %v1208 = vpop.f32.mrf.mxu0
    %v1209 = vadd.f32 0.0, %v1208
    %v1210 = vpop.f32.mrf.mxu0
    %v1211 = vpop.f32.mrf.mxu0
    %v1212 = vpop.f32.mrf.mxu0
    %1213 = vdwg.mxu0
    %v1214 = vadd.f32 %v1171, %v1209
    %v1215 = vtanh.pop %v1214
    %1216 = vst [vmem:[#allocation3] sm:$0xff] %v1215
    %v1217 = vld [vmem:[%s624] sm:$0xff]
    %v1218 = vld [vmem:[#allocation3] sm:$0xff]
    %v1219 = vpack.c.bf16 %v1218, %v1218
    %1220 = vmatprep.subr.bf16.mxu0 0
    %1221 = vmatpush1.bf16.msra.mxu0 %v935
    %1222 = vmatprep.subr.bf16.mxu0 0
    %1223 = vmatpush1.bf16.msra.mxu0 %v934
    %1224 = vmatprep.subr.bf16.mxu0 0
    %1225 = vmatpush1.bf16.msra.mxu0 %v933
    %1226 = vmatprep.subr.bf16.mxu0 0
    %1227 = vmatpush1.bf16.msra.mxu0 %v932
    %1228 = vmatprep.subr.bf16.mxu0 0
    %1229 = vmatpush1.bf16.msra.mxu0 %v931
    %1230 = vmatprep.subr.bf16.mxu0 0
    %1231 = vmatpush1.bf16.msra.mxu0 %v930
    %1232 = vmatprep.subr.bf16.mxu0 0
    %1233 = vmatpush1.bf16.msra.mxu0 %v929
    %1234 = vmatprep.subr.bf16.mxu0 0
    %1235 = vmatpush1.bf16.msra.mxu0 %v928
    %1236 = vmatprep.subr.bf16.mxu0 0
    %1237 = vmatpush2.bf16.msra.mxu0 0
    %1238 = vmatprep.subr.bf16.mxu0 0
    %1239 = vmatpush2.bf16.msra.mxu0 0
    %1240 = vmatprep.subr.bf16.mxu0 0
    %1241 = vmatpush2.bf16.msra.mxu0 0
    %1242 = vmatprep.subr.bf16.mxu0 0
    %1243 = vmatpush2.bf16.msra.mxu0 0
    %1244 = vmatprep.subr.bf16.mxu0 0
    %1245 = vmatpush2.bf16.msra.mxu0 0
    %1246 = vmatprep.subr.bf16.mxu0 0
    %1247 = vmatpush2.bf16.msra.mxu0 0
    %1248 = vmatprep.subr.bf16.mxu0 0
    %1249 = vmatpush2.bf16.msra.mxu0 0
    %1250 = vmatprep.subr.bf16.mxu0 0
    %1251 = vmatpush2.bf16.msra.mxu0 0
    %1252 = vmatprep.mubr.bf16.mxu0 0
    %1253 = vmatmul.mubr.bf16.gmra.mxu0 %v1219
    %v1254 = vpop.f32.mrf.mxu0
    %v1255 = vadd.f32 0.0, %v1254
    %v1256 = vpop.f32.mrf.mxu0
    %v1257 = vpop.f32.mrf.mxu0
    %v1258 = vpop.f32.mrf.mxu0
    %1259 = vdwg.mxu0
    %v1260 = vadd.f32 %v1217, %v1255
    %v1261 = vtanh.pop %v1260
    %1262 = vst [vmem:[#allocation3] sm:$0xff] %v1261
    %v1263 = vld [vmem:[%s672] sm:$0xff]
    %v1264 = vld [vmem:[#allocation3] sm:$0xff]
    %v1265 = vpack.c.bf16 %v1264, %v1264
    %1266 = vmatprep.subr.bf16.mxu0 0
    %1267 = vmatpush1.bf16.msra.mxu0 %v935
    %1268 = vmatprep.subr.bf16.mxu0 0
    %1269 = vmatpush1.bf16.msra.mxu0 %v934
    %1270 = vmatprep.subr.bf16.mxu0 0
    %1271 = vmatpush1.bf16.msra.mxu0 %v933
    %1272 = vmatprep.subr.bf16.mxu0 0
    %1273 = vmatpush1.bf16.msra.mxu0 %v932
    %1274 = vmatprep.subr.bf16.mxu0 0
    %1275 = vmatpush1.bf16.msra.mxu0 %v931
    %1276 = vmatprep.subr.bf16.mxu0 0
    %1277 = vmatpush1.bf16.msra.mxu0 %v930
    %1278 = vmatprep.subr.bf16.mxu0 0
    %1279 = vmatpush1.bf16.msra.mxu0 %v929
    %1280 = vmatprep.subr.bf16.mxu0 0
    %1281 = vmatpush1.bf16.msra.mxu0 %v928
    %1282 = vmatprep.subr.bf16.mxu0 0
    %1283 = vmatpush2.bf16.msra.mxu0 0
    %1284 = vmatprep.subr.bf16.mxu0 0
    %1285 = vmatpush2.bf16.msra.mxu0 0
    %1286 = vmatprep.subr.bf16.mxu0 0
    %1287 = vmatpush2.bf16.msra.mxu0 0
    %1288 = vmatprep.subr.bf16.mxu0 0
    %1289 = vmatpush2.bf16.msra.mxu0 0
    %1290 = vmatprep.subr.bf16.mxu0 0
    %1291 = vmatpush2.bf16.msra.mxu0 0
    %1292 = vmatprep.subr.bf16.mxu0 0
    %1293 = vmatpush2.bf16.msra.mxu0 0
    %1294 = vmatprep.subr.bf16.mxu0 0
    %1295 = vmatpush2.bf16.msra.mxu0 0
    %1296 = vmatprep.subr.bf16.mxu0 0
    %1297 = vmatpush2.bf16.msra.mxu0 0
    %1298 = vmatprep.mubr.bf16.mxu0 0
    %1299 = vmatmul.mubr.bf16.gmra.mxu0 %v1265
    %v1300 = vpop.f32.mrf.mxu0
    %v1301 = vadd.f32 0.0, %v1300
    %v1302 = vpop.f32.mrf.mxu0
    %v1303 = vpop.f32.mrf.mxu0
    %v1304 = vpop.f32.mrf.mxu0
    %1305 = vdwg.mxu0
    %v1306 = vadd.f32 %v1263, %v1301
    %v1307 = vtanh.pop %v1306
    %1308 = vst [vmem:[#allocation3] sm:$0xff] %v1307
    %v1309 = vld [vmem:[#allocation3] sm:$0xff]
    %v1310 = vpack.c.bf16 %v1309, %v1309
    %v1311 = vld [vmem:[#allocation13] sm:$0xf]
    %v1312 = vld [vmem:[#allocation13 + $0x4] sm:$0xf]
    %v1313 = vld [vmem:[#allocation13 + $0x8] sm:$0xf]
    %v1314 = vld [vmem:[#allocation13 + $0xc] sm:$0xf]
    %v1315 = vld [vmem:[#allocation13 + $0x10] sm:$0xf]
    %v1316 = vld [vmem:[#allocation13 + $0x14] sm:$0xf]
    %v1317 = vld [vmem:[#allocation13 + $0x18] sm:$0xf]
    %v1318 = vld [vmem:[#allocation13 + $0x1c] sm:$0xf]
    %v1319 = vld [vmem:[#allocation13 + $0x20] sm:$0xf]
    %v1320 = vld [vmem:[#allocation13 + $0x24] sm:$0xf]
    %v1321 = vld [vmem:[#allocation13 + $0x28] sm:$0xf]
    %v1322 = vld [vmem:[#allocation13 + $0x2c] sm:$0xf]
    %v1323 = vld [vmem:[#allocation13 + $0x30] sm:$0xf]
    %v1324 = vld [vmem:[#allocation13 + $0x34] sm:$0xf]
    %v1325 = vld [vmem:[#allocation13 + $0x38] sm:$0xf]
    %v1326 = vld [vmem:[#allocation13 + $0x3c] sm:$0xf]
    %v1327 = vld [vmem:[%s8] sm:$0x1]
    %v1329 = vlaneseq
    %v1330 = vshrl.u32 %v1329, 7
    %v1331 = vsub.s32 0, %v1330
    %v1332 = vrot.slane %v1327, %v1331
    %v1350 = vunpack.c.l.b16 %v1311
    %v1351 = vunpack.c.l.b16 %v1312
    %v1352 = vunpack.c.l.b16 %v1313
    %v1353 = vunpack.c.l.b16 %v1314
    %v1354 = vunpack.c.l.b16 %v1315
    %v1355 = vunpack.c.l.b16 %v1316
    %v1356 = vunpack.c.l.b16 %v1317
    %v1357 = vunpack.c.l.b16 %v1318
    %v1358 = vunpack.c.l.b16 %v1319
    %v1359 = vunpack.c.l.b16 %v1320
    %v1360 = vunpack.c.l.b16 %v1321
    %v1361 = vunpack.c.l.b16 %v1322
    %v1362 = vunpack.c.l.b16 %v1323
    %v1363 = vunpack.c.l.b16 %v1324
    %v1364 = vunpack.c.l.b16 %v1325
    %v1365 = vunpack.c.l.b16 %v1326
    %v1366 = vpack.c.b16 %v1351, %v1350
    %v1367 = vpack.c.b16 %v1353, %v1352
    %v1368 = vpack.c.b16 %v1355, %v1354
    %v1369 = vpack.c.b16 %v1357, %v1356
    %v1370 = vpack.c.b16 %v1359, %v1358
    %v1371 = vpack.c.b16 %v1361, %v1360
    %v1372 = vpack.c.b16 %v1363, %v1362
    %v1373 = vpack.c.b16 %v1365, %v1364
    %1382 = vmatprep.subr.bf16.mxu0 0
    %1383 = vmatpush1.bf16.msra.mxu0 %v1373
    %1384 = vmatprep.subr.bf16.mxu0 0
    %1385 = vmatpush1.bf16.msra.mxu0 %v1372
    %1386 = vmatprep.subr.bf16.mxu0 0
    %1387 = vmatpush1.bf16.msra.mxu0 %v1371
    %1388 = vmatprep.subr.bf16.mxu0 0
    %1389 = vmatpush1.bf16.msra.mxu0 %v1370
    %1390 = vmatprep.subr.bf16.mxu0 0
    %1391 = vmatpush1.bf16.msra.mxu0 %v1369
    %1392 = vmatprep.subr.bf16.mxu0 0
    %1393 = vmatpush1.bf16.msra.mxu0 %v1368
    %1394 = vmatprep.subr.bf16.mxu0 0
    %1395 = vmatpush1.bf16.msra.mxu0 %v1367
    %1396 = vmatprep.subr.bf16.mxu0 0
    %1397 = vmatpush1.bf16.msra.mxu0 %v1366
    %1398 = vmatprep.subr.bf16.mxu0 0
    %1399 = vmatpush2.bf16.msra.mxu0 0
    %1400 = vmatprep.subr.bf16.mxu0 0
    %1401 = vmatpush2.bf16.msra.mxu0 0
    %1402 = vmatprep.subr.bf16.mxu0 0
    %1403 = vmatpush2.bf16.msra.mxu0 0
    %1404 = vmatprep.subr.bf16.mxu0 0
    %1405 = vmatpush2.bf16.msra.mxu0 0
    %1406 = vmatprep.subr.bf16.mxu0 0
    %1407 = vmatpush2.bf16.msra.mxu0 0
    %1408 = vmatprep.subr.bf16.mxu0 0
    %1409 = vmatpush2.bf16.msra.mxu0 0
    %1410 = vmatprep.subr.bf16.mxu0 0
    %1411 = vmatpush2.bf16.msra.mxu0 0
    %1412 = vmatprep.subr.bf16.mxu0 0
    %1413 = vmatpush2.bf16.msra.mxu0 0
    %1414 = vmatprep.mubr.bf16.mxu0 0
    %1415 = vmatmul.mubr.bf16.gmra.mxu0 %v1310
    %v1416 = vpop.f32.mrf.mxu0
    %v1417 = vadd.f32 %v1332, %v1416
    %v1418 = vpop.f32.mrf.mxu0
    %v1419 = vpop.f32.mrf.mxu0
    %v1420 = vpop.f32.mrf.mxu0
    %1421 = vdwg.mxu0
    %1422 = vst [vmem:[#allocation15] sm:$0xff] %v1417
    // Predicated region
    $region62: #{tpu_custom_call.1} parent=1 // pred_check
      _
    $region63: #{tpu_custom_call.1} parent=1 // pred_check_branch
      %1424 = sbr.rel (0) target = $region65
    $region64: #{tpu_custom_call.1} parent=1 // pred_region
      %s1426 = ssub.s32 128, 128
      %1427 = vsyncadd [#allocation6], %s1426
      %s1429 = sshll.u32 [#allocation15], 4
      %s1430 = int_to_ptr.vmem [resolvable:$true] %s1429
      %1432 = dma.vmem_to_hbm [thread:$0]  %s1430, 128, %s9, [#allocation6]
    $region65: #{tpu_custom_call.1} parent=1 // pred_fallthru
      _
    // Predicated region
    $region66: #{tpu_custom_call.1} parent=1 // pred_check
      _
    $region67: #{tpu_custom_call.1} parent=1 // pred_check_branch
      %1434 = sbr.rel (0) target = $region69
    $region68: #{tpu_custom_call.1} parent=1 // pred_region
      %1435 = dma.done [#allocation6], 128
    $region69: #{tpu_custom_call.1} parent=1 // pred_fallthru
      _
    %1436 = vsyncpa [#allocation5], 1
    %1437 = vsyncpa [#allocation8], 1
    %1438 = vsyncpa [#allocation11], 1
    %1439 = vsyncpa [#allocation14], 1
    %1440 = vsyncpa [#allocation6], 1

</llo_original>
